<compile_context>
chip_gen: v7x
topology: tpu7x:2x2x1
jax: 0.10.0
libtpu: 0.0.40
codegen_flags: <defaults>
</compile_context>

<pallas_src>
import functools

import numpy as np
import jax
import jax.numpy as jnp
from jax.experimental import pallas as pl
from jax.experimental.pallas import tpu as pltpu

F32 = jnp.float32


# ------------------------------- fused kernel -------------------------------

def _social_lstm_kernel(
    # per-step inputs
    vel_ref,        # [1, N, 2] velocity (zeros during prediction steps)
    pos_ref,        # [1, N, 2] observed positions (zeros during prediction steps)
    # resident (constant index-map) inputs
    sidc_ref,       # [N, 1] sequence id per pedestrian
    sidr_ref,       # [1, N] sequence id (row layout)
    w_emb_ref,      # [2, E]
    b_emb_ref,      # [1, E]
    w_pool_ref,     # [C, H, E]   pool_net weight, per grid cell
    b_pool_ref,     # [1, E]
    w_gx_ref,       # [E, 4H]     fused gate weights (input stream)
    w_gh_ref,       # [H, 4H]     fused gate weights (hidden stream)
    w_gs_ref,       # [E, 4H]     fused gate weights (social stream)
    b_g_ref,        # [1, 4H]
    w_out_ref,      # [H, 2]
    b_out_ref,      # [1, 2]
    # output
    out_ref,        # [pred_len, N, 2]  (resident, written back once at the end)
    # scratch (persists across grid steps)
    h_sc, c_sc, pos_sc,
    *, obs_len, grid_size, nbhd, h_dim, has_obs_pos):

    t = pl.program_id(0)
    n = h_sc.shape[0]
    hdim = h_dim
    e_dim = w_emb_ref.shape[1]
    G = grid_size
    C = G * G
    half = float(G // 2)
    gnorm = float(nbhd) / float(G - 1)

    # ------------------------------ state init ------------------------------
    @pl.when(t == 0)
    def _():
        h_sc[...] = jnp.zeros_like(h_sc)
        c_sc[...] = jnp.zeros_like(c_sc)
        pos_sc[...] = jnp.zeros_like(pos_sc)

    # ----------------- current position for observation steps ---------------
    if has_obs_pos:
        @pl.when(t < obs_len)
        def _():
            pos_sc[...] = pos_ref[0]
    else:
        @pl.when(jnp.logical_and(t > 0, t < obs_len))
        def _():
            pos_sc[...] = pos_sc[...] + vel_ref[0]

    h = h_sc[...]          # [N, H]  (pre-update hidden state)
    pos = pos_sc[...]      # [N, 2]

    # ------------------------------ social pooling --------------------------
    row_i = jax.lax.broadcasted_iota(jnp.int32, (n, n), 0)
    col_j = jax.lax.broadcasted_iota(jnp.int32, (n, n), 1)
    eye = row_i == col_j
    ones_nn = jnp.ones((n, n), jnp.float32)

    def lane_bcast(col):
        # [N,1] column -> [N,N] whose value varies along lanes (j index):
        # ones @ diag(col); avoids an in-kernel transpose/relayout.
        return jnp.dot(ones_nn, jnp.where(eye, col, 0.0),
                       preferred_element_type=jnp.float32)

    px_i = pos[:, 0:1]
    py_i = pos[:, 1:2]
    relx = lane_bcast(px_i) - px_i        # rel[i, j] = pos_x[j] - pos_x[i]
    rely = lane_bcast(py_i) - py_i

    rx = jnp.clip(relx / gnorm, -half, half)
    ry = jnp.clip(rely / gnorm, -half, half)
    # values are >= 0 after clamp+shift, so int truncation == torch .long()
    gx = (rx + half).astype(jnp.int32)
    gy = (ry + half).astype(jnp.int32)
    in_bounds = (gx >= 0) & (gx < G) & (gy >= 0) & (gy < G)
    same_seq = sidc_ref[...] == sidr_ref[...]
    valid = same_seq & (row_i != col_j) & in_bounds
    cell = gy * G + gx                    # matches the [gy, gx, H] flatten order

    # One-hot scatter matrix S[(c*N + i), j] = 1  iff ped j falls in cell c of
    # ped i.  Built with one compare; scatter-add becomes a single matmul.
    valid_f = jnp.where(valid, 1.0, 0.0)
    big_valid = jnp.concatenate([valid_f] * C, axis=0)   # [C*N, N]
    big_cell = jnp.concatenate([cell] * C, axis=0)       # [C*N, N]
    r_idx = jax.lax.broadcasted_iota(jnp.int32, (C * n, n), 0)
    diff = r_idx - n * big_cell                          # row r belongs to cell r // n
    S = jnp.where((diff >= 0) & (diff < n), big_valid, 0.0)

    pooled = jnp.dot(S, h, preferred_element_type=jnp.float32)   # [C*N, H]

    acc = jnp.zeros((n, e_dim), jnp.float32)
    for c in range(C):   # static unroll; sublane-aligned slices (N multiple of 8)
        acc = acc + jnp.dot(pooled[c * n:(c + 1) * n, :], w_pool_ref[c],
                            preferred_element_type=jnp.float32)
    social = jnp.maximum(acc + b_pool_ref[...], 0.0)     # pool_net: Linear + ReLU

    # ---------------- output head (consumed only in prediction phase) -------
    pred_vel = (jnp.dot(h, w_out_ref[...], preferred_element_type=jnp.float32)
                + b_out_ref[...])                        # [N, 2]

    @pl.when(t >= obs_len)
    def _():
        pos_sc[...] = pos_sc[...] + pred_vel
        out_ref[pl.ds(t - obs_len, 1)] = pred_vel.reshape(1, n, 2)

    # ------------------------------ input embedding -------------------------
    is_obs = (t < obs_len).astype(jnp.float32)
    vel_now = is_obs * vel_ref[0] + (1.0 - is_obs) * pred_vel
    emb = (jnp.dot(vel_now, w_emb_ref[...], preferred_element_type=jnp.float32)
           + b_emb_ref[...])                             # [N, E]

    # --------------------------- fused Social-LSTM cell ---------------------
    gates = (jnp.dot(emb, w_gx_ref[...], preferred_element_type=jnp.float32)
             + jnp.dot(h, w_gh_ref[...], preferred_element_type=jnp.float32)
             + jnp.dot(social, w_gs_ref[...], preferred_element_type=jnp.float32)
             + b_g_ref[...])                             # [N, 4H]  (4H = 128 lanes)
    i_g = jax.nn.sigmoid(gates[:, 0 * hdim:1 * hdim])
    f_g = jax.nn.sigmoid(gates[:, 1 * hdim:2 * hdim])
    o_g = jax.nn.sigmoid(gates[:, 2 * hdim:3 * hdim])
    g_g = jnp.tanh(gates[:, 3 * hdim:4 * hdim])
    c_new = f_g * c_sc[...] + i_g * g_g
    h_new = o_g * jnp.tanh(c_new)
    # dropout probability is 0.0 in this configuration -> identity.
    h_sc[...] = h_new
    c_sc[...] = c_new


# ------------------------------ forward wrapper ------------------------------

@functools.partial(
    jax.jit,
    static_argnames=("obs_len", "pred_len", "grid_size", "nbhd", "h_dim",
                     "has_obs_pos"))
def _social_lstm_forward(vel, pos_in, sid_col, sid_row, params, *,
                         obs_len, pred_len, grid_size, nbhd, h_dim,
                         has_obs_pos):
    (w_emb, b_emb, w_pool3, b_pool,
     w_gx, w_gh, w_gs, b_g, w_out, b_out) = params
    T = obs_len + pred_len
    n = vel.shape[1]

    kernel = functools.partial(
        _social_lstm_kernel, obs_len=obs_len, grid_size=grid_size,
        nbhd=nbhd, h_dim=h_dim, has_obs_pos=has_obs_pos)

    step_spec = pl.BlockSpec((1, n, 2), lambda t: (t, 0, 0))

    def resident(arr):
        nd = arr.ndim
        return pl.BlockSpec(arr.shape, lambda t: (0,) * nd)

    grid_spec = pltpu.PrefetchScalarGridSpec(
        num_scalar_prefetch=0,
        grid=(T,),
        in_specs=[
            step_spec,                              # velocities
            step_spec,                              # observed positions
            resident(sid_col), resident(sid_row),
            resident(w_emb), resident(b_emb),
            resident(w_pool3), resident(b_pool),
            resident(w_gx), resident(w_gh), resident(w_gs), resident(b_g),
            resident(w_out), resident(b_out),
        ],
        out_specs=pl.BlockSpec((pred_len, n, 2), lambda t: (0, 0, 0)),
        scratch_shapes=[
            pltpu.VMEM((n, h_dim), F32),    # h
            pltpu.VMEM((n, h_dim), F32),    # c
            pltpu.VMEM((n, 2), F32),        # curr_pos
        ],
    )
    return pl.pallas_call(
        kernel,
        grid_spec=grid_spec,
        out_shape=jax.ShapeDtypeStruct((pred_len, n, 2), F32),
        compiler_params=pltpu.CompilerParams(
            dimension_semantics=("arbitrary",)),
    )(vel, pos_in, sid_col, sid_row,
      w_emb, b_emb, w_pool3, b_pool, w_gx, w_gh, w_gs, b_g, w_out, b_out)


def _build_seq_id(seq_start_end, num_peds):
    # Pedestrians not covered by any (start, end) get a unique negative id so
    # they never pool with anyone (the reference simply skips them).
    sid = np.array([-(p + 1) for p in range(num_peds)], dtype=np.float32)
    for b, (s, e) in enumerate(seq_start_end):
        sid[int(s):int(e)] = float(b)
    return sid


class SocialLSTMPallas:
    def __init__(self, obs_len, pred_len, embedding_dim=16, h_dim=32,
                 num_layers=1, dropout=0.0, neighborhood_size=2.0,
                 grid_size=4, key=None):
        assert num_layers == 1   # matches the module's default configuration
        self.obs_len = int(obs_len)
        self.pred_len = int(pred_len)
        self.embedding_dim = int(embedding_dim)
        self.h_dim = int(h_dim)
        self.neighborhood_size = float(neighborhood_size)
        self.grid_size = int(grid_size)

        E, H, G = self.embedding_dim, self.h_dim, self.grid_size
        C = G * G
        ks = jax.random.split(key, 10)
        s = 0.1
        # input_embedding: Linear(2, E)
        self.w_emb = s * jax.random.normal(ks[0], (2, E), F32)
        self.b_emb = s * jax.random.normal(ks[1], (1, E), F32)
        # pool_net: Linear(H*G*G, E); stored as [cell, H, E] with
        # cell = gy*G + gx, matching the reference's [.., gy, gx, H] flatten.
        self.w_pool3 = s * jax.random.normal(ks[2], (C, H, E), F32)
        self.b_pool = s * jax.random.normal(ks[3], (1, E), F32)
        # SocialLSTMCell gates fused along the output axis as [i | f | o | g],
        # split per input stream (x / h_prev / social) -> 4H = 128 lane-dense.
        self.w_gx = s * jax.random.normal(ks[4], (E, 4 * H), F32)
        self.w_gh = s * jax.random.normal(ks[5], (H, 4 * H), F32)
        self.w_gs = s * jax.random.normal(ks[6], (E, 4 * H), F32)
        self.b_g = s * jax.random.normal(ks[7], (1, 4 * H), F32)
        # output_layer: Linear(H, 2)
        self.w_out = s * jax.random.normal(ks[8], (H, 2), F32)
        self.b_out = s * jax.random.normal(ks[9], (1, 2), F32)

    def __call__(self, obs_traj_rel, seq_start_end, obs_traj=None):
        obs_len, n, _ = obs_traj_rel.shape
        assert obs_len == self.obs_len

        sid = _build_seq_id(seq_start_end, n)
        sid_col = jnp.asarray(sid.reshape(n, 1))
        sid_row = jnp.asarray(sid.reshape(1, n))

        pad = jnp.zeros((self.pred_len, n, 2), F32)
        vel = jnp.concatenate([obs_traj_rel.astype(F32), pad], axis=0)
        if obs_traj is not None:
            pos_in = jnp.concatenate([obs_traj.astype(F32), pad], axis=0)
            has_obs_pos = True
        else:
            pos_in = jnp.zeros((obs_len + self.pred_len, n, 2), F32)
            has_obs_pos = False

        params = (self.w_emb, self.b_emb, self.w_pool3, self.b_pool,
                  self.w_gx, self.w_gh, self.w_gs, self.b_g,
                  self.w_out, self.b_out)
        return _social_lstm_forward(
            vel, pos_in, sid_col, sid_row, params,
            obs_len=int(obs_len), pred_len=self.pred_len,
            grid_size=self.grid_size, nbhd=self.neighborhood_size,
            h_dim=self.h_dim, has_obs_pos=has_obs_pos)


if __name__ == "__main__":
    key = jax.random.PRNGKey(0)
    k_vel, k_start, k_par = jax.random.split(key, 3)

    obs_len, pred_len, num_peds = 4, 3, 8
    obs_traj_rel = 0.5 * jax.random.normal(k_vel, (obs_len, num_peds, 2), F32)
    start_pos = jax.random.normal(k_start, (1, num_peds, 2), F32)
    obs_traj = start_pos + jnp.cumsum(obs_traj_rel, axis=0)
    seq_start_end = [(0, 5), (5, 8)]  # two scenes of 5 and 3 pedestrians

    model = SocialLSTMPallas(obs_len=obs_len, pred_len=pred_len,
                             embedding_dim=16, h_dim=32, num_layers=1,
                             neighborhood_size=2.0, grid_size=4, key=k_par)

    out = model(obs_traj_rel, seq_start_end, obs_traj)
    out = jax.block_until_ready(out)
    assert out.shape == (pred_len, num_peds, 2)
    assert out.dtype == jnp.float32
    assert bool(jnp.all(jnp.isfinite(out)))
    print("KERNEL_OK")
</pallas_src>

<mosaic_0001>
module attributes {stable_mosaic.version = 11 : i64} {
  func.func @_social_lstm_kernel(%arg0: i32, %arg1: memref<1x8x2xf32, #tpu.memory_space<vmem>>, %arg2: memref<1x8x2xf32, #tpu.memory_space<vmem>>, %arg3: memref<8x1xf32, #tpu.memory_space<vmem>>, %arg4: memref<1x8xf32, #tpu.memory_space<vmem>>, %arg5: memref<2x16xf32, #tpu.memory_space<vmem>>, %arg6: memref<1x16xf32, #tpu.memory_space<vmem>>, %arg7: memref<16x32x16xf32, #tpu.memory_space<vmem>>, %arg8: memref<1x16xf32, #tpu.memory_space<vmem>>, %arg9: memref<16x128xf32, #tpu.memory_space<vmem>>, %arg10: memref<32x128xf32, #tpu.memory_space<vmem>>, %arg11: memref<16x128xf32, #tpu.memory_space<vmem>>, %arg12: memref<1x128xf32, #tpu.memory_space<vmem>>, %arg13: memref<32x2xf32, #tpu.memory_space<vmem>>, %arg14: memref<1x2xf32, #tpu.memory_space<vmem>>, %arg15: memref<3x8x2xf32, #tpu.memory_space<vmem>>, %arg16: memref<8x32xf32, #tpu.memory_space<vmem>>, %arg17: memref<8x32xf32, #tpu.memory_space<vmem>>, %arg18: memref<8x2xf32, #tpu.memory_space<vmem>>) attributes {dimension_semantics = [#tpu.dimension_semantics<arbitrary>], iteration_bounds = array<i64: 7>, scalar_prefetch = 0 : i64, scratch_operands = 3 : i64, tpu.core_type = #tpu.core_type<tc>, window_params = [{transform_indices = @transform_0, window_bounds = array<i64: 1, 8, 2>}, {transform_indices = @transform_1, window_bounds = array<i64: 1, 8, 2>}, {pipeline_mode = #tpu.pipeline_mode<synchronous>, transform_indices = @transform_2, window_bounds = array<i64: 8, 1>}, {pipeline_mode = #tpu.pipeline_mode<synchronous>, transform_indices = @transform_3, window_bounds = array<i64: 1, 8>}, {pipeline_mode = #tpu.pipeline_mode<synchronous>, transform_indices = @transform_4, window_bounds = array<i64: 2, 16>}, {pipeline_mode = #tpu.pipeline_mode<synchronous>, transform_indices = @transform_5, window_bounds = array<i64: 1, 16>}, {pipeline_mode = #tpu.pipeline_mode<synchronous>, transform_indices = @transform_6, window_bounds = array<i64: 16, 32, 16>}, {pipeline_mode = #tpu.pipeline_mode<synchronous>, transform_indices = @transform_7, window_bounds = array<i64: 1, 16>}, {pipeline_mode = #tpu.pipeline_mode<synchronous>, transform_indices = @transform_8, window_bounds = array<i64: 16, 128>}, {pipeline_mode = #tpu.pipeline_mode<synchronous>, transform_indices = @transform_9, window_bounds = array<i64: 32, 128>}, {pipeline_mode = #tpu.pipeline_mode<synchronous>, transform_indices = @transform_10, window_bounds = array<i64: 16, 128>}, {pipeline_mode = #tpu.pipeline_mode<synchronous>, transform_indices = @transform_11, window_bounds = array<i64: 1, 128>}, {pipeline_mode = #tpu.pipeline_mode<synchronous>, transform_indices = @transform_12, window_bounds = array<i64: 32, 2>}, {pipeline_mode = #tpu.pipeline_mode<synchronous>, transform_indices = @transform_13, window_bounds = array<i64: 1, 2>}, {pipeline_mode = #tpu.pipeline_mode<synchronous>, transform_indices = @transform_14, window_bounds = array<i64: 3, 8, 2>}]} {
    %c0_i32 = arith.constant 0 : i32
    %0 = arith.cmpi eq, %arg0, %c0_i32 : i32
    %1 = arith.extui %0 : i1 to i32
    %c0_i32_0 = arith.constant 0 : i32
    %2 = arith.cmpi ne, %1, %c0_i32_0 : i32
    scf.if %2 {
      %cst_122 = arith.constant 0.000000e+00 : f32
      %234 = vector.broadcast %cst_122 : f32 to vector<8x32xf32>
      %c0_123 = arith.constant 0 : index
      %c0_124 = arith.constant 0 : index
      %235 = vector.load %arg16[%c0_123, %c0_124] : memref<8x32xf32, #tpu.memory_space<vmem>>, vector<8x32xf32>
      tpu.vector_store %arg16[%c0_123, %c0_124], %234 {strides = array<i32>} : memref<8x32xf32, #tpu.memory_space<vmem>>, vector<8x32xf32>,
      %cst_125 = arith.constant 0.000000e+00 : f32
      %236 = vector.broadcast %cst_125 : f32 to vector<8x32xf32>
      %c0_126 = arith.constant 0 : index
      %c0_127 = arith.constant 0 : index
      %237 = vector.load %arg17[%c0_126, %c0_127] : memref<8x32xf32, #tpu.memory_space<vmem>>, vector<8x32xf32>
      tpu.vector_store %arg17[%c0_126, %c0_127], %236 {strides = array<i32>} : memref<8x32xf32, #tpu.memory_space<vmem>>, vector<8x32xf32>,
      %cst_128 = arith.constant 0.000000e+00 : f32
      %238 = vector.broadcast %cst_128 : f32 to vector<8x2xf32>
      %c0_129 = arith.constant 0 : index
      %c0_130 = arith.constant 0 : index
      %239 = vector.load %arg18[%c0_129, %c0_130] : memref<8x2xf32, #tpu.memory_space<vmem>>, vector<8x2xf32>
      tpu.vector_store %arg18[%c0_129, %c0_130], %238 {strides = array<i32>} : memref<8x2xf32, #tpu.memory_space<vmem>>, vector<8x2xf32>,
    } else {
    }
    %c4_i32 = arith.constant 4 : i32
    %3 = arith.cmpi slt, %arg0, %c4_i32 : i32
    %4 = arith.extui %3 : i1 to i32
    %c0_i32_1 = arith.constant 0 : i32
    %5 = arith.cmpi ne, %4, %c0_i32_1 : i32
    scf.if %5 {
      %c0_122 = arith.constant 0 : index
      %c0_123 = arith.constant 0 : index
      %c0_124 = arith.constant 0 : index
      %234 = vector.load %arg2[%c0_122, %c0_123, %c0_124] : memref<1x8x2xf32, #tpu.memory_space<vmem>>, vector<1x8x2xf32>
      %235 = vector.shape_cast %234 : vector<1x8x2xf32> to vector<8x2xf32>
      %c0_125 = arith.constant 0 : index
      %c0_126 = arith.constant 0 : index
      %236 = vector.load %arg18[%c0_125, %c0_126] : memref<8x2xf32, #tpu.memory_space<vmem>>, vector<8x2xf32>
      tpu.vector_store %arg18[%c0_125, %c0_126], %235 {strides = array<i32>} : memref<8x2xf32, #tpu.memory_space<vmem>>, vector<8x2xf32>,
    } else {
    }
    %c0 = arith.constant 0 : index
    %c0_2 = arith.constant 0 : index
    %6 = vector.load %arg16[%c0, %c0_2] : memref<8x32xf32, #tpu.memory_space<vmem>>, vector<8x32xf32>
    %c0_3 = arith.constant 0 : index
    %c0_4 = arith.constant 0 : index
    %7 = vector.load %arg18[%c0_3, %c0_4] : memref<8x2xf32, #tpu.memory_space<vmem>>, vector<8x2xf32>
    %8 = tpu.iota {dimensions = array<i32: 0>} : vector<8x8xi32>
    %9 = tpu.iota {dimensions = array<i32: 1>} : vector<8x8xi32>
    %10 = arith.cmpi eq, %8, %9 : vector<8x8xi32>
    %cst = arith.constant 1.000000e+00 : f32
    %11 = vector.broadcast %cst : f32 to vector<8x8xf32>
    %12 = vector.extract_strided_slice %7 {offsets = [0, 0], sizes = [8, 1], strides = [1, 1]} : vector<8x2xf32> to vector<8x1xf32>
    %13 = vector.extract_strided_slice %7 {offsets = [0, 1], sizes = [8, 1], strides = [1, 1]} : vector<8x2xf32> to vector<8x1xf32>
    %cst_5 = arith.constant 0.000000e+00 : f32
    %14 = vector.shape_cast %12 : vector<8x1xf32> to vector<8x1xf32>
    %15 = vector.broadcast %14 : vector<8x1xf32> to vector<8x8xf32>
    %16 = vector.broadcast %cst_5 : f32 to vector<8x8xf32>
    %17 = arith.select %10, %15, %16 : vector<8x8xi1>, vector<8x8xf32>
    %cst_6 = arith.constant dense<0.000000e+00> : vector<8x8xf32>
    %18 = tpu.matmul %11, %17, %cst_6 {dimension_numbers = #tpu.dot_dimension_numbers<[1], [0], [0], [1], [0, 0, 1, 1], [], []>} : vector<8x8xf32>, vector<8x8xf32>, vector<8x8xf32> -> vector<8x8xf32>
    %19 = vector.broadcast %12 : vector<8x1xf32> to vector<8x8xf32>
    %20 = arith.subf %18, %19 : vector<8x8xf32>
    %cst_7 = arith.constant 0.000000e+00 : f32
    %21 = vector.shape_cast %13 : vector<8x1xf32> to vector<8x1xf32>
    %22 = vector.broadcast %21 : vector<8x1xf32> to vector<8x8xf32>
    %23 = vector.broadcast %cst_7 : f32 to vector<8x8xf32>
    %24 = arith.select %10, %22, %23 : vector<8x8xi1>, vector<8x8xf32>
    %cst_8 = arith.constant dense<0.000000e+00> : vector<8x8xf32>
    %25 = tpu.matmul %11, %24, %cst_8 {dimension_numbers = #tpu.dot_dimension_numbers<[1], [0], [0], [1], [0, 0, 1, 1], [], []>} : vector<8x8xf32>, vector<8x8xf32>, vector<8x8xf32> -> vector<8x8xf32>
    %26 = vector.broadcast %13 : vector<8x1xf32> to vector<8x8xf32>
    %27 = arith.subf %25, %26 : vector<8x8xf32>
    %cst_9 = arith.constant 0.666666686 : f32
    %28 = vector.broadcast %cst_9 : f32 to vector<8x8xf32>
    %29 = arith.divf %20, %28 : vector<8x8xf32>
    %cst_10 = arith.constant -2.000000e+00 : f32
    %cst_11 = arith.constant 2.000000e+00 : f32
    %30 = vector.broadcast %cst_10 : f32 to vector<8x8xf32>
    %31 = arith.maximumf %30, %29 : vector<8x8xf32>
    %32 = vector.broadcast %cst_11 : f32 to vector<8x8xf32>
    %33 = arith.minimumf %32, %31 : vector<8x8xf32>
    %cst_12 = arith.constant 0.666666686 : f32
    %34 = vector.broadcast %cst_12 : f32 to vector<8x8xf32>
    %35 = arith.divf %27, %34 : vector<8x8xf32>
    %cst_13 = arith.constant -2.000000e+00 : f32
    %cst_14 = arith.constant 2.000000e+00 : f32
    %36 = vector.broadcast %cst_13 : f32 to vector<8x8xf32>
    %37 = arith.maximumf %36, %35 : vector<8x8xf32>
    %38 = vector.broadcast %cst_14 : f32 to vector<8x8xf32>
    %39 = arith.minimumf %38, %37 : vector<8x8xf32>
    %cst_15 = arith.constant 2.000000e+00 : f32
    %40 = vector.broadcast %cst_15 : f32 to vector<8x8xf32>
    %41 = arith.addf %33, %40 : vector<8x8xf32>
    %42 = arith.fptosi %41 : vector<8x8xf32> to vector<8x8xi32>
    %cst_16 = arith.constant 2.000000e+00 : f32
    %43 = vector.broadcast %cst_16 : f32 to vector<8x8xf32>
    %44 = arith.addf %39, %43 : vector<8x8xf32>
    %45 = arith.fptosi %44 : vector<8x8xf32> to vector<8x8xi32>
    %c0_i32_17 = arith.constant 0 : i32
    %46 = vector.broadcast %c0_i32_17 : i32 to vector<8x8xi32>
    %47 = arith.cmpi sge, %42, %46 : vector<8x8xi32>
    %c4_i32_18 = arith.constant 4 : i32
    %48 = vector.broadcast %c4_i32_18 : i32 to vector<8x8xi32>
    %49 = arith.cmpi slt, %42, %48 : vector<8x8xi32>
    %50 = arith.andi %47, %49 : vector<8x8xi1>
    %c0_i32_19 = arith.constant 0 : i32
    %51 = vector.broadcast %c0_i32_19 : i32 to vector<8x8xi32>
    %52 = arith.cmpi sge, %45, %51 : vector<8x8xi32>
    %53 = arith.andi %50, %52 : vector<8x8xi1>
    %c4_i32_20 = arith.constant 4 : i32
    %54 = vector.broadcast %c4_i32_20 : i32 to vector<8x8xi32>
    %55 = arith.cmpi slt, %45, %54 : vector<8x8xi32>
    %56 = arith.andi %53, %55 : vector<8x8xi1>
    %c0_21 = arith.constant 0 : index
    %c0_22 = arith.constant 0 : index
    %57 = vector.load %arg3[%c0_21, %c0_22] : memref<8x1xf32, #tpu.memory_space<vmem>>, vector<8x1xf32>
    %c0_23 = arith.constant 0 : index
    %c0_24 = arith.constant 0 : index
    %58 = vector.load %arg4[%c0_23, %c0_24] : memref<1x8xf32, #tpu.memory_space<vmem>>, vector<1x8xf32>
    %59 = vector.broadcast %57 : vector<8x1xf32> to vector<8x8xf32>
    %60 = vector.broadcast %58 : vector<1x8xf32> to vector<8x8xf32>
    %61 = arith.cmpf oeq, %59, %60 : vector<8x8xf32>
    %62 = arith.cmpi ne, %8, %9 : vector<8x8xi32>
    %63 = arith.andi %61, %62 : vector<8x8xi1>
    %64 = arith.andi %63, %56 : vector<8x8xi1>
    %c4_i32_25 = arith.constant 4 : i32
    %65 = vector.broadcast %c4_i32_25 : i32 to vector<8x8xi32>
    %66 = arith.muli %45, %65 : vector<8x8xi32>
    %67 = arith.addi %66, %42 : vector<8x8xi32>
    %cst_26 = arith.constant 1.000000e+00 : f32
    %cst_27 = arith.constant 0.000000e+00 : f32
    %68 = vector.broadcast %cst_26 : f32 to vector<8x8xf32>
    %69 = vector.broadcast %cst_27 : f32 to vector<8x8xf32>
    %70 = arith.select %64, %68, %69 : vector<8x8xi1>, vector<8x8xf32>
    %71 = tpu.concatenate %70, %70, %70, %70, %70, %70, %70, %70, %70, %70, %70, %70, %70, %70, %70, %70 in 0 : vector<8x8xf32>, vector<8x8xf32>, vector<8x8xf32>, vector<8x8xf32>, vector<8x8xf32>, vector<8x8xf32>, vector<8x8xf32>, vector<8x8xf32>, vector<8x8xf32>, vector<8x8xf32>, vector<8x8xf32>, vector<8x8xf32>, vector<8x8xf32>, vector<8x8xf32>, vector<8x8xf32>, vector<8x8xf32> -> vector<128x8xf32>
    %72 = tpu.concatenate %67, %67, %67, %67, %67, %67, %67, %67, %67, %67, %67, %67, %67, %67, %67, %67 in 0 : vector<8x8xi32>, vector<8x8xi32>, vector<8x8xi32>, vector<8x8xi32>, vector<8x8xi32>, vector<8x8xi32>, vector<8x8xi32>, vector<8x8xi32>, vector<8x8xi32>, vector<8x8xi32>, vector<8x8xi32>, vector<8x8xi32>, vector<8x8xi32>, vector<8x8xi32>, vector<8x8xi32>, vector<8x8xi32> -> vector<128x8xi32>
    %73 = tpu.iota {dimensions = array<i32: 0>} : vector<128x8xi32>
    %c8_i32 = arith.constant 8 : i32
    %74 = vector.broadcast %c8_i32 : i32 to vector<128x8xi32>
    %75 = arith.muli %74, %72 : vector<128x8xi32>
    %76 = arith.subi %73, %75 : vector<128x8xi32>
    %c0_i32_28 = arith.constant 0 : i32
    %77 = vector.broadcast %c0_i32_28 : i32 to vector<128x8xi32>
    %78 = arith.cmpi sge, %76, %77 : vector<128x8xi32>
    %c8_i32_29 = arith.constant 8 : i32
    %79 = vector.broadcast %c8_i32_29 : i32 to vector<128x8xi32>
    %80 = arith.cmpi slt, %76, %79 : vector<128x8xi32>
    %81 = arith.andi %78, %80 : vector<128x8xi1>
    %cst_30 = arith.constant 0.000000e+00 : f32
    %82 = vector.broadcast %cst_30 : f32 to vector<128x8xf32>
    %83 = arith.select %81, %71, %82 : vector<128x8xi1>, vector<128x8xf32>
    %cst_31 = arith.constant dense<0.000000e+00> : vector<128x32xf32>
    %84 = tpu.matmul %83, %6, %cst_31 {dimension_numbers = #tpu.dot_dimension_numbers<[1], [0], [0], [1], [0, 0, 1, 1], [], []>} : vector<128x8xf32>, vector<8x32xf32>, vector<128x32xf32> -> vector<128x32xf32>
    %cst_32 = arith.constant 0.000000e+00 : f32
    %85 = vector.broadcast %cst_32 : f32 to vector<8x16xf32>
    %86 = vector.extract_strided_slice %84 {offsets = [0, 0], sizes = [8, 32], strides = [1, 1]} : vector<128x32xf32> to vector<8x32xf32>
    %c0_33 = arith.constant 0 : index
    %c0_34 = arith.constant 0 : index
    %c0_35 = arith.constant 0 : index
    %87 = vector.load %arg7[%c0_33, %c0_34, %c0_35] : memref<16x32x16xf32, #tpu.memory_space<vmem>>, vector<1x32x16xf32>
    %88 = vector.shape_cast %87 : vector<1x32x16xf32> to vector<32x16xf32>
    %cst_36 = arith.constant dense<0.000000e+00> : vector<8x16xf32>
    %89 = tpu.matmul %86, %88, %cst_36 {dimension_numbers = #tpu.dot_dimension_numbers<[1], [0], [0], [1], [0, 0, 1, 1], [], []>} : vector<8x32xf32>, vector<32x16xf32>, vector<8x16xf32> -> vector<8x16xf32>
    %90 = arith.addf %85, %89 : vector<8x16xf32>
    %91 = vector.extract_strided_slice %84 {offsets = [8, 0], sizes = [8, 32], strides = [1, 1]} : vector<128x32xf32> to vector<8x32xf32>
    %c1 = arith.constant 1 : index
    %c0_37 = arith.constant 0 : index
    %c0_38 = arith.constant 0 : index
    %92 = vector.load %arg7[%c1, %c0_37, %c0_38] : memref<16x32x16xf32, #tpu.memory_space<vmem>>, vector<1x32x16xf32>
    %93 = vector.shape_cast %92 : vector<1x32x16xf32> to vector<32x16xf32>
    %cst_39 = arith.constant dense<0.000000e+00> : vector<8x16xf32>
    %94 = tpu.matmul %91, %93, %cst_39 {dimension_numbers = #tpu.dot_dimension_numbers<[1], [0], [0], [1], [0, 0, 1, 1], [], []>} : vector<8x32xf32>, vector<32x16xf32>, vector<8x16xf32> -> vector<8x16xf32>
    %95 = arith.addf %90, %94 : vector<8x16xf32>
    %96 = vector.extract_strided_slice %84 {offsets = [16, 0], sizes = [8, 32], strides = [1, 1]} : vector<128x32xf32> to vector<8x32xf32>
    %c2 = arith.constant 2 : index
    %c0_40 = arith.constant 0 : index
    %c0_41 = arith.constant 0 : index
    %97 = vector.load %arg7[%c2, %c0_40, %c0_41] : memref<16x32x16xf32, #tpu.memory_space<vmem>>, vector<1x32x16xf32>
    %98 = vector.shape_cast %97 : vector<1x32x16xf32> to vector<32x16xf32>
    %cst_42 = arith.constant dense<0.000000e+00> : vector<8x16xf32>
    %99 = tpu.matmul %96, %98, %cst_42 {dimension_numbers = #tpu.dot_dimension_numbers<[1], [0], [0], [1], [0, 0, 1, 1], [], []>} : vector<8x32xf32>, vector<32x16xf32>, vector<8x16xf32> -> vector<8x16xf32>
    %100 = arith.addf %95, %99 : vector<8x16xf32>
    %101 = vector.extract_strided_slice %84 {offsets = [24, 0], sizes = [8, 32], strides = [1, 1]} : vector<128x32xf32> to vector<8x32xf32>
    %c3 = arith.constant 3 : index
    %c0_43 = arith.constant 0 : index
    %c0_44 = arith.constant 0 : index
    %102 = vector.load %arg7[%c3, %c0_43, %c0_44] : memref<16x32x16xf32, #tpu.memory_space<vmem>>, vector<1x32x16xf32>
    %103 = vector.shape_cast %102 : vector<1x32x16xf32> to vector<32x16xf32>
    %cst_45 = arith.constant dense<0.000000e+00> : vector<8x16xf32>
    %104 = tpu.matmul %101, %103, %cst_45 {dimension_numbers = #tpu.dot_dimension_numbers<[1], [0], [0], [1], [0, 0, 1, 1], [], []>} : vector<8x32xf32>, vector<32x16xf32>, vector<8x16xf32> -> vector<8x16xf32>
    %105 = arith.addf %100, %104 : vector<8x16xf32>
    %106 = vector.extract_strided_slice %84 {offsets = [32, 0], sizes = [8, 32], strides = [1, 1]} : vector<128x32xf32> to vector<8x32xf32>
    %c4 = arith.constant 4 : index
    %c0_46 = arith.constant 0 : index
    %c0_47 = arith.constant 0 : index
    %107 = vector.load %arg7[%c4, %c0_46, %c0_47] : memref<16x32x16xf32, #tpu.memory_space<vmem>>, vector<1x32x16xf32>
    %108 = vector.shape_cast %107 : vector<1x32x16xf32> to vector<32x16xf32>
    %cst_48 = arith.constant dense<0.000000e+00> : vector<8x16xf32>
    %109 = tpu.matmul %106, %108, %cst_48 {dimension_numbers = #tpu.dot_dimension_numbers<[1], [0], [0], [1], [0, 0, 1, 1], [], []>} : vector<8x32xf32>, vector<32x16xf32>, vector<8x16xf32> -> vector<8x16xf32>
    %110 = arith.addf %105, %109 : vector<8x16xf32>
    %111 = vector.extract_strided_slice %84 {offsets = [40, 0], sizes = [8, 32], strides = [1, 1]} : vector<128x32xf32> to vector<8x32xf32>
    %c5 = arith.constant 5 : index
    %c0_49 = arith.constant 0 : index
    %c0_50 = arith.constant 0 : index
    %112 = vector.load %arg7[%c5, %c0_49, %c0_50] : memref<16x32x16xf32, #tpu.memory_space<vmem>>, vector<1x32x16xf32>
    %113 = vector.shape_cast %112 : vector<1x32x16xf32> to vector<32x16xf32>
    %cst_51 = arith.constant dense<0.000000e+00> : vector<8x16xf32>
    %114 = tpu.matmul %111, %113, %cst_51 {dimension_numbers = #tpu.dot_dimension_numbers<[1], [0], [0], [1], [0, 0, 1, 1], [], []>} : vector<8x32xf32>, vector<32x16xf32>, vector<8x16xf32> -> vector<8x16xf32>
    %115 = arith.addf %110, %114 : vector<8x16xf32>
    %116 = vector.extract_strided_slice %84 {offsets = [48, 0], sizes = [8, 32], strides = [1, 1]} : vector<128x32xf32> to vector<8x32xf32>
    %c6 = arith.constant 6 : index
    %c0_52 = arith.constant 0 : index
    %c0_53 = arith.constant 0 : index
    %117 = vector.load %arg7[%c6, %c0_52, %c0_53] : memref<16x32x16xf32, #tpu.memory_space<vmem>>, vector<1x32x16xf32>
    %118 = vector.shape_cast %117 : vector<1x32x16xf32> to vector<32x16xf32>
    %cst_54 = arith.constant dense<0.000000e+00> : vector<8x16xf32>
    %119 = tpu.matmul %116, %118, %cst_54 {dimension_numbers = #tpu.dot_dimension_numbers<[1], [0], [0], [1], [0, 0, 1, 1], [], []>} : vector<8x32xf32>, vector<32x16xf32>, vector<8x16xf32> -> vector<8x16xf32>
    %120 = arith.addf %115, %119 : vector<8x16xf32>
    %121 = vector.extract_strided_slice %84 {offsets = [56, 0], sizes = [8, 32], strides = [1, 1]} : vector<128x32xf32> to vector<8x32xf32>
    %c7 = arith.constant 7 : index
    %c0_55 = arith.constant 0 : index
    %c0_56 = arith.constant 0 : index
    %122 = vector.load %arg7[%c7, %c0_55, %c0_56] : memref<16x32x16xf32, #tpu.memory_space<vmem>>, vector<1x32x16xf32>
    %123 = vector.shape_cast %122 : vector<1x32x16xf32> to vector<32x16xf32>
    %cst_57 = arith.constant dense<0.000000e+00> : vector<8x16xf32>
    %124 = tpu.matmul %121, %123, %cst_57 {dimension_numbers = #tpu.dot_dimension_numbers<[1], [0], [0], [1], [0, 0, 1, 1], [], []>} : vector<8x32xf32>, vector<32x16xf32>, vector<8x16xf32> -> vector<8x16xf32>
    %125 = arith.addf %120, %124 : vector<8x16xf32>
    %126 = vector.extract_strided_slice %84 {offsets = [64, 0], sizes = [8, 32], strides = [1, 1]} : vector<128x32xf32> to vector<8x32xf32>
    %c8 = arith.constant 8 : index
    %c0_58 = arith.constant 0 : index
    %c0_59 = arith.constant 0 : index
    %127 = vector.load %arg7[%c8, %c0_58, %c0_59] : memref<16x32x16xf32, #tpu.memory_space<vmem>>, vector<1x32x16xf32>
    %128 = vector.shape_cast %127 : vector<1x32x16xf32> to vector<32x16xf32>
    %cst_60 = arith.constant dense<0.000000e+00> : vector<8x16xf32>
    %129 = tpu.matmul %126, %128, %cst_60 {dimension_numbers = #tpu.dot_dimension_numbers<[1], [0], [0], [1], [0, 0, 1, 1], [], []>} : vector<8x32xf32>, vector<32x16xf32>, vector<8x16xf32> -> vector<8x16xf32>
    %130 = arith.addf %125, %129 : vector<8x16xf32>
    %131 = vector.extract_strided_slice %84 {offsets = [72, 0], sizes = [8, 32], strides = [1, 1]} : vector<128x32xf32> to vector<8x32xf32>
    %c9 = arith.constant 9 : index
    %c0_61 = arith.constant 0 : index
    %c0_62 = arith.constant 0 : index
    %132 = vector.load %arg7[%c9, %c0_61, %c0_62] : memref<16x32x16xf32, #tpu.memory_space<vmem>>, vector<1x32x16xf32>
    %133 = vector.shape_cast %132 : vector<1x32x16xf32> to vector<32x16xf32>
    %cst_63 = arith.constant dense<0.000000e+00> : vector<8x16xf32>
    %134 = tpu.matmul %131, %133, %cst_63 {dimension_numbers = #tpu.dot_dimension_numbers<[1], [0], [0], [1], [0, 0, 1, 1], [], []>} : vector<8x32xf32>, vector<32x16xf32>, vector<8x16xf32> -> vector<8x16xf32>
    %135 = arith.addf %130, %134 : vector<8x16xf32>
    %136 = vector.extract_strided_slice %84 {offsets = [80, 0], sizes = [8, 32], strides = [1, 1]} : vector<128x32xf32> to vector<8x32xf32>
    %c10 = arith.constant 10 : index
    %c0_64 = arith.constant 0 : index
    %c0_65 = arith.constant 0 : index
    %137 = vector.load %arg7[%c10, %c0_64, %c0_65] : memref<16x32x16xf32, #tpu.memory_space<vmem>>, vector<1x32x16xf32>
    %138 = vector.shape_cast %137 : vector<1x32x16xf32> to vector<32x16xf32>
    %cst_66 = arith.constant dense<0.000000e+00> : vector<8x16xf32>
    %139 = tpu.matmul %136, %138, %cst_66 {dimension_numbers = #tpu.dot_dimension_numbers<[1], [0], [0], [1], [0, 0, 1, 1], [], []>} : vector<8x32xf32>, vector<32x16xf32>, vector<8x16xf32> -> vector<8x16xf32>
    %140 = arith.addf %135, %139 : vector<8x16xf32>
    %141 = vector.extract_strided_slice %84 {offsets = [88, 0], sizes = [8, 32], strides = [1, 1]} : vector<128x32xf32> to vector<8x32xf32>
    %c11 = arith.constant 11 : index
    %c0_67 = arith.constant 0 : index
    %c0_68 = arith.constant 0 : index
    %142 = vector.load %arg7[%c11, %c0_67, %c0_68] : memref<16x32x16xf32, #tpu.memory_space<vmem>>, vector<1x32x16xf32>
    %143 = vector.shape_cast %142 : vector<1x32x16xf32> to vector<32x16xf32>
    %cst_69 = arith.constant dense<0.000000e+00> : vector<8x16xf32>
    %144 = tpu.matmul %141, %143, %cst_69 {dimension_numbers = #tpu.dot_dimension_numbers<[1], [0], [0], [1], [0, 0, 1, 1], [], []>} : vector<8x32xf32>, vector<32x16xf32>, vector<8x16xf32> -> vector<8x16xf32>
    %145 = arith.addf %140, %144 : vector<8x16xf32>
    %146 = vector.extract_strided_slice %84 {offsets = [96, 0], sizes = [8, 32], strides = [1, 1]} : vector<128x32xf32> to vector<8x32xf32>
    %c12 = arith.constant 12 : index
    %c0_70 = arith.constant 0 : index
    %c0_71 = arith.constant 0 : index
    %147 = vector.load %arg7[%c12, %c0_70, %c0_71] : memref<16x32x16xf32, #tpu.memory_space<vmem>>, vector<1x32x16xf32>
    %148 = vector.shape_cast %147 : vector<1x32x16xf32> to vector<32x16xf32>
    %cst_72 = arith.constant dense<0.000000e+00> : vector<8x16xf32>
    %149 = tpu.matmul %146, %148, %cst_72 {dimension_numbers = #tpu.dot_dimension_numbers<[1], [0], [0], [1], [0, 0, 1, 1], [], []>} : vector<8x32xf32>, vector<32x16xf32>, vector<8x16xf32> -> vector<8x16xf32>
    %150 = arith.addf %145, %149 : vector<8x16xf32>
    %151 = vector.extract_strided_slice %84 {offsets = [104, 0], sizes = [8, 32], strides = [1, 1]} : vector<128x32xf32> to vector<8x32xf32>
    %c13 = arith.constant 13 : index
    %c0_73 = arith.constant 0 : index
    %c0_74 = arith.constant 0 : index
    %152 = vector.load %arg7[%c13, %c0_73, %c0_74] : memref<16x32x16xf32, #tpu.memory_space<vmem>>, vector<1x32x16xf32>
    %153 = vector.shape_cast %152 : vector<1x32x16xf32> to vector<32x16xf32>
    %cst_75 = arith.constant dense<0.000000e+00> : vector<8x16xf32>
    %154 = tpu.matmul %151, %153, %cst_75 {dimension_numbers = #tpu.dot_dimension_numbers<[1], [0], [0], [1], [0, 0, 1, 1], [], []>} : vector<8x32xf32>, vector<32x16xf32>, vector<8x16xf32> -> vector<8x16xf32>
    %155 = arith.addf %150, %154 : vector<8x16xf32>
    %156 = vector.extract_strided_slice %84 {offsets = [112, 0], sizes = [8, 32], strides = [1, 1]} : vector<128x32xf32> to vector<8x32xf32>
    %c14 = arith.constant 14 : index
    %c0_76 = arith.constant 0 : index
    %c0_77 = arith.constant 0 : index
    %157 = vector.load %arg7[%c14, %c0_76, %c0_77] : memref<16x32x16xf32, #tpu.memory_space<vmem>>, vector<1x32x16xf32>
    %158 = vector.shape_cast %157 : vector<1x32x16xf32> to vector<32x16xf32>
    %cst_78 = arith.constant dense<0.000000e+00> : vector<8x16xf32>
    %159 = tpu.matmul %156, %158, %cst_78 {dimension_numbers = #tpu.dot_dimension_numbers<[1], [0], [0], [1], [0, 0, 1, 1], [], []>} : vector<8x32xf32>, vector<32x16xf32>, vector<8x16xf32> -> vector<8x16xf32>
    %160 = arith.addf %155, %159 : vector<8x16xf32>
    %161 = vector.extract_strided_slice %84 {offsets = [120, 0], sizes = [8, 32], strides = [1, 1]} : vector<128x32xf32> to vector<8x32xf32>
    %c15 = arith.constant 15 : index
    %c0_79 = arith.constant 0 : index
    %c0_80 = arith.constant 0 : index
    %162 = vector.load %arg7[%c15, %c0_79, %c0_80] : memref<16x32x16xf32, #tpu.memory_space<vmem>>, vector<1x32x16xf32>
    %163 = vector.shape_cast %162 : vector<1x32x16xf32> to vector<32x16xf32>
    %cst_81 = arith.constant dense<0.000000e+00> : vector<8x16xf32>
    %164 = tpu.matmul %161, %163, %cst_81 {dimension_numbers = #tpu.dot_dimension_numbers<[1], [0], [0], [1], [0, 0, 1, 1], [], []>} : vector<8x32xf32>, vector<32x16xf32>, vector<8x16xf32> -> vector<8x16xf32>
    %165 = arith.addf %160, %164 : vector<8x16xf32>
    %c0_82 = arith.constant 0 : index
    %c0_83 = arith.constant 0 : index
    %166 = vector.load %arg8[%c0_82, %c0_83] : memref<1x16xf32, #tpu.memory_space<vmem>>, vector<1x16xf32>
    %167 = vector.broadcast %166 : vector<1x16xf32> to vector<8x16xf32>
    %168 = arith.addf %165, %167 : vector<8x16xf32>
    %cst_84 = arith.constant 0.000000e+00 : f32
    %169 = vector.broadcast %cst_84 : f32 to vector<8x16xf32>
    %170 = arith.maximumf %168, %169 : vector<8x16xf32>
    %c0_85 = arith.constant 0 : index
    %c0_86 = arith.constant 0 : index
    %171 = vector.load %arg13[%c0_85, %c0_86] : memref<32x2xf32, #tpu.memory_space<vmem>>, vector<32x2xf32>
    %cst_87 = arith.constant dense<0.000000e+00> : vector<8x2xf32>
    %172 = tpu.matmul %6, %171, %cst_87 {dimension_numbers = #tpu.dot_dimension_numbers<[1], [0], [0], [1], [0, 0, 1, 1], [], []>} : vector<8x32xf32>, vector<32x2xf32>, vector<8x2xf32> -> vector<8x2xf32>
    %c0_88 = arith.constant 0 : index
    %c0_89 = arith.constant 0 : index
    %173 = vector.load %arg14[%c0_88, %c0_89] : memref<1x2xf32, #tpu.memory_space<vmem>>, vector<1x2xf32>
    %174 = vector.broadcast %173 : vector<1x2xf32> to vector<8x2xf32>
    %175 = arith.addf %172, %174 : vector<8x2xf32>
    %c4_i32_90 = arith.constant 4 : i32
    %176 = arith.cmpi sge, %arg0, %c4_i32_90 : i32
    %177 = arith.extui %176 : i1 to i32
    %c0_i32_91 = arith.constant 0 : i32
    %178 = arith.cmpi ne, %177, %c0_i32_91 : i32
    scf.if %178 {
      %c0_122 = arith.constant 0 : index
      %c0_123 = arith.constant 0 : index
      %234 = vector.load %arg18[%c0_122, %c0_123] : memref<8x2xf32, #tpu.memory_space<vmem>>, vector<8x2xf32>
      %235 = arith.addf %234, %175 : vector<8x2xf32>
      %c0_124 = arith.constant 0 : index
      %c0_125 = arith.constant 0 : index
      %236 = vector.load %arg18[%c0_124, %c0_125] : memref<8x2xf32, #tpu.memory_space<vmem>>, vector<8x2xf32>
      tpu.vector_store %arg18[%c0_124, %c0_125], %235 {strides = array<i32>} : memref<8x2xf32, #tpu.memory_space<vmem>>, vector<8x2xf32>,
      %237 = vector.shape_cast %175 : vector<8x2xf32> to vector<1x8x2xf32>
      %c4_i32_126 = arith.constant 4 : i32
      %238 = arith.subi %arg0, %c4_i32_126 : i32
      %239 = arith.index_cast %238 : i32 to index
      %c0_127 = arith.constant 0 : index
      %c0_128 = arith.constant 0 : index
      %240 = vector.load %arg15[%239, %c0_127, %c0_128] : memref<3x8x2xf32, #tpu.memory_space<vmem>>, vector<1x8x2xf32>
      tpu.vector_store %arg15[%239, %c0_127, %c0_128], %237 {strides = array<i32>} : memref<3x8x2xf32, #tpu.memory_space<vmem>>, vector<1x8x2xf32>,
    } else {
    }
    %c4_i32_92 = arith.constant 4 : i32
    %179 = arith.cmpi slt, %arg0, %c4_i32_92 : i32
    %180 = arith.extui %179 : i1 to i32
    %181 = arith.sitofp %180 : i32 to f32
    %c0_93 = arith.constant 0 : index
    %c0_94 = arith.constant 0 : index
    %c0_95 = arith.constant 0 : index
    %182 = vector.load %arg1[%c0_93, %c0_94, %c0_95] : memref<1x8x2xf32, #tpu.memory_space<vmem>>, vector<1x8x2xf32>
    %183 = vector.shape_cast %182 : vector<1x8x2xf32> to vector<8x2xf32>
    %184 = vector.broadcast %181 : f32 to vector<8x2xf32>
    %185 = arith.mulf %184, %183 : vector<8x2xf32>
    %cst_96 = arith.constant 1.000000e+00 : f32
    %186 = arith.subf %cst_96, %181 : f32
    %187 = vector.broadcast %186 : f32 to vector<8x2xf32>
    %188 = arith.mulf %187, %175 : vector<8x2xf32>
    %189 = arith.addf %185, %188 : vector<8x2xf32>
    %c0_97 = arith.constant 0 : index
    %c0_98 = arith.constant 0 : index
    %190 = vector.load %arg5[%c0_97, %c0_98] : memref<2x16xf32, #tpu.memory_space<vmem>>, vector<2x16xf32>
    %cst_99 = arith.constant dense<0.000000e+00> : vector<8x16xf32>
    %191 = tpu.matmul %189, %190, %cst_99 {dimension_numbers = #tpu.dot_dimension_numbers<[1], [0], [0], [1], [0, 0, 1, 1], [], []>} : vector<8x2xf32>, vector<2x16xf32>, vector<8x16xf32> -> vector<8x16xf32>
    %c0_100 = arith.constant 0 : index
    %c0_101 = arith.constant 0 : index
    %192 = vector.load %arg6[%c0_100, %c0_101] : memref<1x16xf32, #tpu.memory_space<vmem>>, vector<1x16xf32>
    %193 = vector.broadcast %192 : vector<1x16xf32> to vector<8x16xf32>
    %194 = arith.addf %191, %193 : vector<8x16xf32>
    %c0_102 = arith.constant 0 : index
    %c0_103 = arith.constant 0 : index
    %195 = vector.load %arg9[%c0_102, %c0_103] : memref<16x128xf32, #tpu.memory_space<vmem>>, vector<16x128xf32>
    %cst_104 = arith.constant dense<0.000000e+00> : vector<8x128xf32>
    %196 = tpu.matmul %194, %195, %cst_104 {dimension_numbers = #tpu.dot_dimension_numbers<[1], [0], [0], [1], [0, 0, 1, 1], [], []>} : vector<8x16xf32>, vector<16x128xf32>, vector<8x128xf32> -> vector<8x128xf32>
    %c0_105 = arith.constant 0 : index
    %c0_106 = arith.constant 0 : index
    %197 = vector.load %arg10[%c0_105, %c0_106] : memref<32x128xf32, #tpu.memory_space<vmem>>, vector<32x128xf32>
    %cst_107 = arith.constant dense<0.000000e+00> : vector<8x128xf32>
    %198 = tpu.matmul %6, %197, %cst_107 {dimension_numbers = #tpu.dot_dimension_numbers<[1], [0], [0], [1], [0, 0, 1, 1], [], []>} : vector<8x32xf32>, vector<32x128xf32>, vector<8x128xf32> -> vector<8x128xf32>
    %199 = arith.addf %196, %198 : vector<8x128xf32>
    %c0_108 = arith.constant 0 : index
    %c0_109 = arith.constant 0 : index
    %200 = vector.load %arg11[%c0_108, %c0_109] : memref<16x128xf32, #tpu.memory_space<vmem>>, vector<16x128xf32>
    %cst_110 = arith.constant dense<0.000000e+00> : vector<8x128xf32>
    %201 = tpu.matmul %170, %200, %cst_110 {dimension_numbers = #tpu.dot_dimension_numbers<[1], [0], [0], [1], [0, 0, 1, 1], [], []>} : vector<8x16xf32>, vector<16x128xf32>, vector<8x128xf32> -> vector<8x128xf32>
    %202 = arith.addf %199, %201 : vector<8x128xf32>
    %c0_111 = arith.constant 0 : index
    %c0_112 = arith.constant 0 : index
    %203 = vector.load %arg12[%c0_111, %c0_112] : memref<1x128xf32, #tpu.memory_space<vmem>>, vector<1x128xf32>
    %204 = vector.broadcast %203 : vector<1x128xf32> to vector<8x128xf32>
    %205 = arith.addf %202, %204 : vector<8x128xf32>
    %206 = vector.extract_strided_slice %205 {offsets = [0, 0], sizes = [8, 32], strides = [1, 1]} : vector<8x128xf32> to vector<8x32xf32>
    %207 = arith.negf %206 : vector<8x32xf32>
    %208 = math.exp %207 : vector<8x32xf32>
    %cst_113 = arith.constant 1.000000e+00 : f32
    %209 = vector.broadcast %cst_113 : f32 to vector<8x32xf32>
    %210 = arith.addf %209, %208 : vector<8x32xf32>
    %211 = arith.divf %209, %210 : vector<8x32xf32>
    %212 = vector.extract_strided_slice %205 {offsets = [0, 32], sizes = [8, 32], strides = [1, 1]} : vector<8x128xf32> to vector<8x32xf32>
    %213 = arith.negf %212 : vector<8x32xf32>
    %214 = math.exp %213 : vector<8x32xf32>
    %cst_114 = arith.constant 1.000000e+00 : f32
    %215 = vector.broadcast %cst_114 : f32 to vector<8x32xf32>
    %216 = arith.addf %215, %214 : vector<8x32xf32>
    %217 = arith.divf %215, %216 : vector<8x32xf32>
    %218 = vector.extract_strided_slice %205 {offsets = [0, 64], sizes = [8, 32], strides = [1, 1]} : vector<8x128xf32> to vector<8x32xf32>
    %219 = arith.negf %218 : vector<8x32xf32>
    %220 = math.exp %219 : vector<8x32xf32>
    %cst_115 = arith.constant 1.000000e+00 : f32
    %221 = vector.broadcast %cst_115 : f32 to vector<8x32xf32>
    %222 = arith.addf %221, %220 : vector<8x32xf32>
    %223 = arith.divf %221, %222 : vector<8x32xf32>
    %224 = vector.extract_strided_slice %205 {offsets = [0, 96], sizes = [8, 32], strides = [1, 1]} : vector<8x128xf32> to vector<8x32xf32>
    %225 = math.tanh %224 : vector<8x32xf32>
    %c0_116 = arith.constant 0 : index
    %c0_117 = arith.constant 0 : index
    %226 = vector.load %arg17[%c0_116, %c0_117] : memref<8x32xf32, #tpu.memory_space<vmem>>, vector<8x32xf32>
    %227 = arith.mulf %217, %226 : vector<8x32xf32>
    %228 = arith.mulf %211, %225 : vector<8x32xf32>
    %229 = arith.addf %227, %228 : vector<8x32xf32>
    %230 = math.tanh %229 : vector<8x32xf32>
    %231 = arith.mulf %223, %230 : vector<8x32xf32>
    %c0_118 = arith.constant 0 : index
    %c0_119 = arith.constant 0 : index
    %232 = vector.load %arg16[%c0_118, %c0_119] : memref<8x32xf32, #tpu.memory_space<vmem>>, vector<8x32xf32>
    tpu.vector_store %arg16[%c0_118, %c0_119], %231 {strides = array<i32>} : memref<8x32xf32, #tpu.memory_space<vmem>>, vector<8x32xf32>,
    %c0_120 = arith.constant 0 : index
    %c0_121 = arith.constant 0 : index
    %233 = vector.load %arg17[%c0_120, %c0_121] : memref<8x32xf32, #tpu.memory_space<vmem>>, vector<8x32xf32>
    tpu.vector_store %arg17[%c0_120, %c0_121], %229 {strides = array<i32>} : memref<8x32xf32, #tpu.memory_space<vmem>>, vector<8x32xf32>,
    return
  }
  func.func @transform_0(%arg0: i32) -> (i32, i32, i32) {
    %c0_i32 = arith.constant 0 : i32
    %c0_i32_0 = arith.constant 0 : i32
    %c0_i32_1 = arith.constant 0 : i32
    return %arg0, %c0_i32, %c0_i32_0 : i32, i32, i32
  }
  func.func @transform_1(%arg0: i32) -> (i32, i32, i32) {
    %c0_i32 = arith.constant 0 : i32
    %c0_i32_0 = arith.constant 0 : i32
    %c0_i32_1 = arith.constant 0 : i32
    return %arg0, %c0_i32, %c0_i32_0 : i32, i32, i32
  }
  func.func @transform_2(%arg0: i32) -> (i32, i32) {
    %c0_i32 = arith.constant 0 : i32
    %c0_i32_0 = arith.constant 0 : i32
    %c0_i32_1 = arith.constant 0 : i32
    return %c0_i32, %c0_i32_0 : i32, i32
  }
  func.func @transform_3(%arg0: i32) -> (i32, i32) {
    %c0_i32 = arith.constant 0 : i32
    %c0_i32_0 = arith.constant 0 : i32
    %c0_i32_1 = arith.constant 0 : i32
    return %c0_i32, %c0_i32_0 : i32, i32
  }
  func.func @transform_4(%arg0: i32) -> (i32, i32) {
    %c0_i32 = arith.constant 0 : i32
    %c0_i32_0 = arith.constant 0 : i32
    %c0_i32_1 = arith.constant 0 : i32
    return %c0_i32, %c0_i32_0 : i32, i32
  }
  func.func @transform_5(%arg0: i32) -> (i32, i32) {
    %c0_i32 = arith.constant 0 : i32
    %c0_i32_0 = arith.constant 0 : i32
    %c0_i32_1 = arith.constant 0 : i32
    return %c0_i32, %c0_i32_0 : i32, i32
  }
  func.func @transform_6(%arg0: i32) -> (i32, i32, i32) {
    %c0_i32 = arith.constant 0 : i32
    %c0_i32_0 = arith.constant 0 : i32
    %c0_i32_1 = arith.constant 0 : i32
    %c0_i32_2 = arith.constant 0 : i32
    return %c0_i32, %c0_i32_0, %c0_i32_1 : i32, i32, i32
  }
  func.func @transform_7(%arg0: i32) -> (i32, i32) {
    %c0_i32 = arith.constant 0 : i32
    %c0_i32_0 = arith.constant 0 : i32
    %c0_i32_1 = arith.constant 0 : i32
    return %c0_i32, %c0_i32_0 : i32, i32
  }
  func.func @transform_8(%arg0: i32) -> (i32, i32) {
    %c0_i32 = arith.constant 0 : i32
    %c0_i32_0 = arith.constant 0 : i32
    %c0_i32_1 = arith.constant 0 : i32
    return %c0_i32, %c0_i32_0 : i32, i32
  }
  func.func @transform_9(%arg0: i32) -> (i32, i32) {
    %c0_i32 = arith.constant 0 : i32
    %c0_i32_0 = arith.constant 0 : i32
    %c0_i32_1 = arith.constant 0 : i32
    return %c0_i32, %c0_i32_0 : i32, i32
  }
  func.func @transform_10(%arg0: i32) -> (i32, i32) {
    %c0_i32 = arith.constant 0 : i32
    %c0_i32_0 = arith.constant 0 : i32
    %c0_i32_1 = arith.constant 0 : i32
    return %c0_i32, %c0_i32_0 : i32, i32
  }
  func.func @transform_11(%arg0: i32) -> (i32, i32) {
    %c0_i32 = arith.constant 0 : i32
    %c0_i32_0 = arith.constant 0 : i32
    %c0_i32_1 = arith.constant 0 : i32
    return %c0_i32, %c0_i32_0 : i32, i32
  }
  func.func @transform_12(%arg0: i32) -> (i32, i32) {
    %c0_i32 = arith.constant 0 : i32
    %c0_i32_0 = arith.constant 0 : i32
    %c0_i32_1 = arith.constant 0 : i32
    return %c0_i32, %c0_i32_0 : i32, i32
  }
  func.func @transform_13(%arg0: i32) -> (i32, i32) {
    %c0_i32 = arith.constant 0 : i32
    %c0_i32_0 = arith.constant 0 : i32
    %c0_i32_1 = arith.constant 0 : i32
    return %c0_i32, %c0_i32_0 : i32, i32
  }
  func.func @transform_14(%arg0: i32) -> (i32, i32, i32) {
    %c0_i32 = arith.constant 0 : i32
    %c0_i32_0 = arith.constant 0 : i32
    %c0_i32_1 = arith.constant 0 : i32
    %c0_i32_2 = arith.constant 0 : i32
    return %c0_i32, %c0_i32_0, %c0_i32_1 : i32, i32, i32
  }
}

</mosaic_0001>

<llo_original>
// kernel: _social_lstm_forward.1
$region0: #{_social_lstm_forward.1}
  #allocation0 [shape = 'u32[]', space=smem, size = 0x4, offset = 0x4, fixed_abs, tag = 'smem constant byte address 0x4 - core index']
  #allocation1 [shape = 'u32[144,128]{1,0:T(1,128)}', space=vmem, size = 0x12000, scoped, tag = 'internal scratch']
  #allocation2 [shape = 'f32[8,32]{1,0:T(8,128)}', space=vmem, size = 0x1000, scoped, tag = 'scratch operand']
  #allocation3 [shape = 'f32[8,32]{1,0:T(8,128)}', space=vmem, size = 0x1000, scoped, tag = 'scratch operand']
  #allocation4 [shape = 'f32[8,2]{1,0:T(8,128)}', space=vmem, size = 0x1000, scoped, tag = 'scratch operand']
  %s0 = inlined_call_operand.vmem [shape: f32[7,8,2], index: 0, kind: input, shape index: {}]
  %s1 = inlined_call_operand.vmem [shape: f32[7,8,2], index: 1, kind: input, shape index: {}]
  %s2 = inlined_call_operand.vmem [shape: f32[8,1], index: 2, kind: input, shape index: {}]
  %s3 = inlined_call_operand.vmem [shape: f32[1,8], index: 3, kind: input, shape index: {}]
  %s4 = inlined_call_operand.vmem [shape: f32[2,16], index: 4, kind: input, shape index: {}]
  %s5 = inlined_call_operand.vmem [shape: f32[1,16], index: 5, kind: input, shape index: {}]
  %s6 = inlined_call_operand.vmem [shape: f32[16,32,16], index: 6, kind: input, shape index: {}]
  %s7 = inlined_call_operand.vmem [shape: f32[1,16], index: 7, kind: input, shape index: {}]
  %s8 = inlined_call_operand.vmem [shape: f32[16,128], index: 8, kind: input, shape index: {}]
  %s9 = inlined_call_operand.vmem [shape: f32[32,128], index: 9, kind: input, shape index: {}]
  %s10 = inlined_call_operand.vmem [shape: f32[16,128], index: 10, kind: input, shape index: {}]
  %s11 = inlined_call_operand.vmem [shape: f32[1,128], index: 11, kind: input, shape index: {}]
  %s12 = inlined_call_operand.vmem [shape: f32[32,2], index: 12, kind: input, shape index: {}]
  %s13 = inlined_call_operand.vmem [shape: f32[1,2], index: 13, kind: input, shape index: {}]
  %s14 = inlined_call_operand.vmem [shape: f32[3,8,2], index: 14, kind: output, shape index: {}]
  %s15 = sld [smem:[#allocation0]]
  $region101: #{_social_lstm_forward.1} parent=0
    _
  %s17 = ssub.s32 1, %s15
  %s18 = scalar_select 0, %s17, %s15
  loop: start=0, step=1, limit=9
  $region2: #{_social_lstm_forward.1} parent=0 // loop_pre_header
    _
  $region3: #{_social_lstm_forward.1} parent=0 // loop_header
    %s20 = sphi 0, %s24
    %p21 = scmp.ge.s32.totalorder %s20, 9
    %s30 = sphi 0, %s32
    %s33 = sphi 0, %s30
    %s34 = sphi 0, %s33
    %s50 = sphi 0, %s34
    %s56 = sphi 0, %s58
    %s59 = sphi 0, %s56
    %s60 = sphi 0, %s59
    %s76 = sphi 0, %s60
    %s80 = sphi 0, %s80
    %s82 = sphi 0, %s80
    %s83 = sphi 0, %s82
    %s97 = sphi 0, %s83
    %s101 = sphi 0, %s101
    %s103 = sphi 0, %s101
    %s104 = sphi 0, %s103
    %s118 = sphi 0, %s104
    %s122 = sphi 0, %s122
    %s124 = sphi 0, %s122
    %s125 = sphi 0, %s124
    %s139 = sphi 0, %s125
    %s143 = sphi 0, %s143
    %s145 = sphi 0, %s143
    %s146 = sphi 0, %s145
    %s160 = sphi 0, %s146
    %s164 = sphi 0, %s164
    %s166 = sphi 0, %s164
    %s167 = sphi 0, %s166
    %s181 = sphi 0, %s167
    %s185 = sphi 0, %s185
    %s187 = sphi 0, %s185
    %s188 = sphi 0, %s187
    %s202 = sphi 0, %s188
    %s206 = sphi 0, %s206
    %s208 = sphi 0, %s206
    %s209 = sphi 0, %s208
    %s223 = sphi 0, %s209
    %s227 = sphi 0, %s227
    %s229 = sphi 0, %s227
    %s230 = sphi 0, %s229
    %s244 = sphi 0, %s230
    %s248 = sphi 0, %s248
    %s250 = sphi 0, %s248
    %s251 = sphi 0, %s250
    %s265 = sphi 0, %s251
    %s269 = sphi 0, %s269
    %s271 = sphi 0, %s269
    %s272 = sphi 0, %s271
    %s286 = sphi 0, %s272
    %s290 = sphi 0, %s290
    %s292 = sphi 0, %s290
    %s293 = sphi 0, %s292
    %s307 = sphi 0, %s293
    %s311 = sphi 0, %s311
    %s313 = sphi 0, %s311
    %s314 = sphi 0, %s313
    %s328 = sphi 0, %s314
    %s332 = sphi 0, %s332
    %s334 = sphi 0, %s332
    %s335 = sphi 0, %s334
    %s349 = sphi 0, %s335
  $region4: #{_social_lstm_forward.1} parent=0 // loop_header_branch
    %23 = sbr.rel (%p21) target = $region8
  $region5: #{_social_lstm_forward.1} parent=0 // loop_body
    %s25 = ssub.s32 %s20, 1
    %s26 = ssub.s32 %s20, 2
    %s27 = sadd.s32 %s20, 1
    %s28 = ssub.s32 %s20, %s27
    %p29 = scmp.eq.s32.totalorder %s28, 0
    %s31 = sadd.s32 %s30, 1
    %s32 = scalar_select %p29, %s30, %s31
    %p35 = pneg %p29
    %p36 = scmp.eq.s32.totalorder %s20, 6
    %p37 = por %p35, %p36
    %p38 = scmp.ne.s32.totalorder %s30, %s33
    %p39 = scmp.eq.s32.totalorder %s20, 0
    %p40 = por %p38, %p39
    %p41 = scmp.ne.s32.totalorder %s30, %s33
    %p42 = scmp.eq.s32.totalorder %s25, 6
    %p43 = por %p41, %p42
    %p44 = scmp.ne.s32.totalorder %s33, %s34
    %p45 = scmp.eq.s32.totalorder %s25, 0
    %p46 = por %p44, %p45
    %p47 = scmp.ne.s32.totalorder %s33, %s34
    %p48 = scmp.eq.s32.totalorder %s26, 6
    %p49 = por %p47, %p48
    %p51 = scmp.ne.s32.totalorder %s34, %s50
    %p52 = scmp.eq.s32.totalorder %s26, 0
    %p53 = por %p51, %p52
    %s54 = ssub.s32 %s20, %s27
    %p55 = scmp.eq.s32.totalorder %s54, 0
    %s57 = sadd.s32 %s56, 1
    %s58 = scalar_select %p55, %s56, %s57
    %p61 = pneg %p55
    %p62 = scmp.eq.s32.totalorder %s20, 6
    %p63 = por %p61, %p62
    %p64 = scmp.ne.s32.totalorder %s56, %s59
    %p65 = scmp.eq.s32.totalorder %s20, 0
    %p66 = por %p64, %p65
    %p67 = scmp.ne.s32.totalorder %s56, %s59
    %p68 = scmp.eq.s32.totalorder %s25, 6
    %p69 = por %p67, %p68
    %p70 = scmp.ne.s32.totalorder %s59, %s60
    %p71 = scmp.eq.s32.totalorder %s25, 0
    %p72 = por %p70, %p71
    %p73 = scmp.ne.s32.totalorder %s59, %s60
    %p74 = scmp.eq.s32.totalorder %s26, 6
    %p75 = por %p73, %p74
    %p77 = scmp.ne.s32.totalorder %s60, %s76
    %p78 = scmp.eq.s32.totalorder %s26, 0
    %p79 = por %p77, %p78
    %s81 = sadd.s32 %s80, 1
    %p84 = scmp.eq.s32.totalorder %s20, 6
    %p85 = scmp.ne.s32.totalorder %s80, %s82
    %p86 = scmp.eq.s32.totalorder %s20, 0
    %p87 = por %p85, %p86
    %p88 = scmp.ne.s32.totalorder %s80, %s82
    %p89 = scmp.eq.s32.totalorder %s25, 6
    %p90 = por %p88, %p89
    %p91 = scmp.ne.s32.totalorder %s82, %s83
    %p92 = scmp.eq.s32.totalorder %s25, 0
    %p93 = por %p91, %p92
    %p94 = scmp.ne.s32.totalorder %s82, %s83
    %p95 = scmp.eq.s32.totalorder %s26, 6
    %p96 = por %p94, %p95
    %p98 = scmp.ne.s32.totalorder %s83, %s97
    %p99 = scmp.eq.s32.totalorder %s26, 0
    %p100 = por %p98, %p99
    %s102 = sadd.s32 %s101, 1
    %p105 = scmp.eq.s32.totalorder %s20, 6
    %p106 = scmp.ne.s32.totalorder %s101, %s103
    %p107 = scmp.eq.s32.totalorder %s20, 0
    %p108 = por %p106, %p107
    %p109 = scmp.ne.s32.totalorder %s101, %s103
    %p110 = scmp.eq.s32.totalorder %s25, 6
    %p111 = por %p109, %p110
    %p112 = scmp.ne.s32.totalorder %s103, %s104
    %p113 = scmp.eq.s32.totalorder %s25, 0
    %p114 = por %p112, %p113
    %p115 = scmp.ne.s32.totalorder %s103, %s104
    %p116 = scmp.eq.s32.totalorder %s26, 6
    %p117 = por %p115, %p116
    %p119 = scmp.ne.s32.totalorder %s104, %s118
    %p120 = scmp.eq.s32.totalorder %s26, 0
    %p121 = por %p119, %p120
    %s123 = sadd.s32 %s122, 1
    %p126 = scmp.eq.s32.totalorder %s20, 6
    %p127 = scmp.ne.s32.totalorder %s122, %s124
    %p128 = scmp.eq.s32.totalorder %s20, 0
    %p129 = por %p127, %p128
    %p130 = scmp.ne.s32.totalorder %s122, %s124
    %p131 = scmp.eq.s32.totalorder %s25, 6
    %p132 = por %p130, %p131
    %p133 = scmp.ne.s32.totalorder %s124, %s125
    %p134 = scmp.eq.s32.totalorder %s25, 0
    %p135 = por %p133, %p134
    %p136 = scmp.ne.s32.totalorder %s124, %s125
    %p137 = scmp.eq.s32.totalorder %s26, 6
    %p138 = por %p136, %p137
    %p140 = scmp.ne.s32.totalorder %s125, %s139
    %p141 = scmp.eq.s32.totalorder %s26, 0
    %p142 = por %p140, %p141
    %s144 = sadd.s32 %s143, 1
    %p147 = scmp.eq.s32.totalorder %s20, 6
    %p148 = scmp.ne.s32.totalorder %s143, %s145
    %p149 = scmp.eq.s32.totalorder %s20, 0
    %p150 = por %p148, %p149
    %p151 = scmp.ne.s32.totalorder %s143, %s145
    %p152 = scmp.eq.s32.totalorder %s25, 6
    %p153 = por %p151, %p152
    %p154 = scmp.ne.s32.totalorder %s145, %s146
    %p155 = scmp.eq.s32.totalorder %s25, 0
    %p156 = por %p154, %p155
    %p157 = scmp.ne.s32.totalorder %s145, %s146
    %p158 = scmp.eq.s32.totalorder %s26, 6
    %p159 = por %p157, %p158
    %p161 = scmp.ne.s32.totalorder %s146, %s160
    %p162 = scmp.eq.s32.totalorder %s26, 0
    %p163 = por %p161, %p162
    %s165 = sadd.s32 %s164, 1
    %p168 = scmp.eq.s32.totalorder %s20, 6
    %p169 = scmp.ne.s32.totalorder %s164, %s166
    %p170 = scmp.eq.s32.totalorder %s20, 0
    %p171 = por %p169, %p170
    %p172 = scmp.ne.s32.totalorder %s164, %s166
    %p173 = scmp.eq.s32.totalorder %s25, 6
    %p174 = por %p172, %p173
    %p175 = scmp.ne.s32.totalorder %s166, %s167
    %p176 = scmp.eq.s32.totalorder %s25, 0
    %p177 = por %p175, %p176
    %p178 = scmp.ne.s32.totalorder %s166, %s167
    %p179 = scmp.eq.s32.totalorder %s26, 6
    %p180 = por %p178, %p179
    %p182 = scmp.ne.s32.totalorder %s167, %s181
    %p183 = scmp.eq.s32.totalorder %s26, 0
    %p184 = por %p182, %p183
    %s186 = sadd.s32 %s185, 1
    %p189 = scmp.eq.s32.totalorder %s20, 6
    %p190 = scmp.ne.s32.totalorder %s185, %s187
    %p191 = scmp.eq.s32.totalorder %s20, 0
    %p192 = por %p190, %p191
    %p193 = scmp.ne.s32.totalorder %s185, %s187
    %p194 = scmp.eq.s32.totalorder %s25, 6
    %p195 = por %p193, %p194
    %p196 = scmp.ne.s32.totalorder %s187, %s188
    %p197 = scmp.eq.s32.totalorder %s25, 0
    %p198 = por %p196, %p197
    %p199 = scmp.ne.s32.totalorder %s187, %s188
    %p200 = scmp.eq.s32.totalorder %s26, 6
    %p201 = por %p199, %p200
    %p203 = scmp.ne.s32.totalorder %s188, %s202
    %p204 = scmp.eq.s32.totalorder %s26, 0
    %p205 = por %p203, %p204
    %s207 = sadd.s32 %s206, 1
    %p210 = scmp.eq.s32.totalorder %s20, 6
    %p211 = scmp.ne.s32.totalorder %s206, %s208
    %p212 = scmp.eq.s32.totalorder %s20, 0
    %p213 = por %p211, %p212
    %p214 = scmp.ne.s32.totalorder %s206, %s208
    %p215 = scmp.eq.s32.totalorder %s25, 6
    %p216 = por %p214, %p215
    %p217 = scmp.ne.s32.totalorder %s208, %s209
    %p218 = scmp.eq.s32.totalorder %s25, 0
    %p219 = por %p217, %p218
    %p220 = scmp.ne.s32.totalorder %s208, %s209
    %p221 = scmp.eq.s32.totalorder %s26, 6
    %p222 = por %p220, %p221
    %p224 = scmp.ne.s32.totalorder %s209, %s223
    %p225 = scmp.eq.s32.totalorder %s26, 0
    %p226 = por %p224, %p225
    %s228 = sadd.s32 %s227, 1
    %p231 = scmp.eq.s32.totalorder %s20, 6
    %p232 = scmp.ne.s32.totalorder %s227, %s229
    %p233 = scmp.eq.s32.totalorder %s20, 0
    %p234 = por %p232, %p233
    %p235 = scmp.ne.s32.totalorder %s227, %s229
    %p236 = scmp.eq.s32.totalorder %s25, 6
    %p237 = por %p235, %p236
    %p238 = scmp.ne.s32.totalorder %s229, %s230
    %p239 = scmp.eq.s32.totalorder %s25, 0
    %p240 = por %p238, %p239
    %p241 = scmp.ne.s32.totalorder %s229, %s230
    %p242 = scmp.eq.s32.totalorder %s26, 6
    %p243 = por %p241, %p242
    %p245 = scmp.ne.s32.totalorder %s230, %s244
    %p246 = scmp.eq.s32.totalorder %s26, 0
    %p247 = por %p245, %p246
    %s249 = sadd.s32 %s248, 1
    %p252 = scmp.eq.s32.totalorder %s20, 6
    %p253 = scmp.ne.s32.totalorder %s248, %s250
    %p254 = scmp.eq.s32.totalorder %s20, 0
    %p255 = por %p253, %p254
    %p256 = scmp.ne.s32.totalorder %s248, %s250
    %p257 = scmp.eq.s32.totalorder %s25, 6
    %p258 = por %p256, %p257
    %p259 = scmp.ne.s32.totalorder %s250, %s251
    %p260 = scmp.eq.s32.totalorder %s25, 0
    %p261 = por %p259, %p260
    %p262 = scmp.ne.s32.totalorder %s250, %s251
    %p263 = scmp.eq.s32.totalorder %s26, 6
    %p264 = por %p262, %p263
    %p266 = scmp.ne.s32.totalorder %s251, %s265
    %p267 = scmp.eq.s32.totalorder %s26, 0
    %p268 = por %p266, %p267
    %s270 = sadd.s32 %s269, 1
    %p273 = scmp.eq.s32.totalorder %s20, 6
    %p274 = scmp.ne.s32.totalorder %s269, %s271
    %p275 = scmp.eq.s32.totalorder %s20, 0
    %p276 = por %p274, %p275
    %p277 = scmp.ne.s32.totalorder %s269, %s271
    %p278 = scmp.eq.s32.totalorder %s25, 6
    %p279 = por %p277, %p278
    %p280 = scmp.ne.s32.totalorder %s271, %s272
    %p281 = scmp.eq.s32.totalorder %s25, 0
    %p282 = por %p280, %p281
    %p283 = scmp.ne.s32.totalorder %s271, %s272
    %p284 = scmp.eq.s32.totalorder %s26, 6
    %p285 = por %p283, %p284
    %p287 = scmp.ne.s32.totalorder %s272, %s286
    %p288 = scmp.eq.s32.totalorder %s26, 0
    %p289 = por %p287, %p288
    %s291 = sadd.s32 %s290, 1
    %p294 = scmp.eq.s32.totalorder %s20, 6
    %p295 = scmp.ne.s32.totalorder %s290, %s292
    %p296 = scmp.eq.s32.totalorder %s20, 0
    %p297 = por %p295, %p296
    %p298 = scmp.ne.s32.totalorder %s290, %s292
    %p299 = scmp.eq.s32.totalorder %s25, 6
    %p300 = por %p298, %p299
    %p301 = scmp.ne.s32.totalorder %s292, %s293
    %p302 = scmp.eq.s32.totalorder %s25, 0
    %p303 = por %p301, %p302
    %p304 = scmp.ne.s32.totalorder %s292, %s293
    %p305 = scmp.eq.s32.totalorder %s26, 6
    %p306 = por %p304, %p305
    %p308 = scmp.ne.s32.totalorder %s293, %s307
    %p309 = scmp.eq.s32.totalorder %s26, 0
    %p310 = por %p308, %p309
    %s312 = sadd.s32 %s311, 1
    %p315 = scmp.eq.s32.totalorder %s20, 6
    %p316 = scmp.ne.s32.totalorder %s311, %s313
    %p317 = scmp.eq.s32.totalorder %s20, 0
    %p318 = por %p316, %p317
    %p319 = scmp.ne.s32.totalorder %s311, %s313
    %p320 = scmp.eq.s32.totalorder %s25, 6
    %p321 = por %p319, %p320
    %p322 = scmp.ne.s32.totalorder %s313, %s314
    %p323 = scmp.eq.s32.totalorder %s25, 0
    %p324 = por %p322, %p323
    %p325 = scmp.ne.s32.totalorder %s313, %s314
    %p326 = scmp.eq.s32.totalorder %s26, 6
    %p327 = por %p325, %p326
    %p329 = scmp.ne.s32.totalorder %s314, %s328
    %p330 = scmp.eq.s32.totalorder %s26, 0
    %p331 = por %p329, %p330
    %s333 = sadd.s32 %s332, 1
    %p336 = scmp.eq.s32.totalorder %s20, 6
    %p337 = scmp.ne.s32.totalorder %s332, %s334
    %p338 = scmp.eq.s32.totalorder %s20, 0
    %p339 = por %p337, %p338
    %p340 = scmp.ne.s32.totalorder %s332, %s334
    %p341 = scmp.eq.s32.totalorder %s25, 6
    %p342 = por %p340, %p341
    %p343 = scmp.ne.s32.totalorder %s334, %s335
    %p344 = scmp.eq.s32.totalorder %s25, 0
    %p345 = por %p343, %p344
    %p346 = scmp.ne.s32.totalorder %s334, %s335
    %p347 = scmp.eq.s32.totalorder %s26, 6
    %p348 = por %p346, %p347
    %p350 = scmp.ne.s32.totalorder %s335, %s349
    %p351 = scmp.eq.s32.totalorder %s26, 0
    %p352 = por %p350, %p351
    %p353 = scmp.le.s32.totalorder 1, %s20
    %p354 = scmp.lt.s32.totalorder %s20, 8
    %p355 = pnand %p353, %p354
    %p356 = pneg %p355
    // Predicated region
    $region9: #{_social_lstm_forward.1} parent=5 // pred_check
      _
    $region10: #{_social_lstm_forward.1} parent=5 // pred_check_branch
      %358 = sbr.rel (%p355) target = $region12
    $region11: #{_social_lstm_forward.1} parent=5 // pred_region
      %s359 = ssub.s32 %s20, 1
      // Predicated region
      $region13: #{_social_lstm_forward.1} parent=11 // pred_check
        %p360 = pneg %p93
      $region14: #{_social_lstm_forward.1} parent=11 // pred_check_branch
        %362 = sbr.rel (%p360) target = $region16
      $region15: #{_social_lstm_forward.1} parent=11 // pred_region
        _
      $region16: #{_social_lstm_forward.1} parent=11 // pred_fallthru
        _
      // Predicated region
      $region17: #{_social_lstm_forward.1} parent=11 // pred_check
        %p363 = pneg %p114
      $region18: #{_social_lstm_forward.1} parent=11 // pred_check_branch
        %365 = sbr.rel (%p363) target = $region20
      $region19: #{_social_lstm_forward.1} parent=11 // pred_region
        _
      $region20: #{_social_lstm_forward.1} parent=11 // pred_fallthru
        _
      // Predicated region
      $region21: #{_social_lstm_forward.1} parent=11 // pred_check
        %p366 = pneg %p135
      $region22: #{_social_lstm_forward.1} parent=11 // pred_check_branch
        %368 = sbr.rel (%p366) target = $region24
      $region23: #{_social_lstm_forward.1} parent=11 // pred_region
        _
      $region24: #{_social_lstm_forward.1} parent=11 // pred_fallthru
        _
      // Predicated region
      $region25: #{_social_lstm_forward.1} parent=11 // pred_check
        %p369 = pneg %p156
      $region26: #{_social_lstm_forward.1} parent=11 // pred_check_branch
        %371 = sbr.rel (%p369) target = $region28
      $region27: #{_social_lstm_forward.1} parent=11 // pred_region
        _
      $region28: #{_social_lstm_forward.1} parent=11 // pred_fallthru
        _
      // Predicated region
      $region29: #{_social_lstm_forward.1} parent=11 // pred_check
        %p372 = pneg %p177
      $region30: #{_social_lstm_forward.1} parent=11 // pred_check_branch
        %374 = sbr.rel (%p372) target = $region32
      $region31: #{_social_lstm_forward.1} parent=11 // pred_region
        _
      $region32: #{_social_lstm_forward.1} parent=11 // pred_fallthru
        _
      // Predicated region
      $region33: #{_social_lstm_forward.1} parent=11 // pred_check
        %p375 = pneg %p198
      $region34: #{_social_lstm_forward.1} parent=11 // pred_check_branch
        %377 = sbr.rel (%p375) target = $region36
      $region35: #{_social_lstm_forward.1} parent=11 // pred_region
        _
      $region36: #{_social_lstm_forward.1} parent=11 // pred_fallthru
        _
      // Predicated region
      $region37: #{_social_lstm_forward.1} parent=11 // pred_check
        %p378 = pneg %p219
      $region38: #{_social_lstm_forward.1} parent=11 // pred_check_branch
        %380 = sbr.rel (%p378) target = $region40
      $region39: #{_social_lstm_forward.1} parent=11 // pred_region
        _
      $region40: #{_social_lstm_forward.1} parent=11 // pred_fallthru
        _
      // Predicated region
      $region41: #{_social_lstm_forward.1} parent=11 // pred_check
        %p381 = pneg %p240
      $region42: #{_social_lstm_forward.1} parent=11 // pred_check_branch
        %383 = sbr.rel (%p381) target = $region44
      $region43: #{_social_lstm_forward.1} parent=11 // pred_region
        _
      $region44: #{_social_lstm_forward.1} parent=11 // pred_fallthru
        _
      // Predicated region
      $region45: #{_social_lstm_forward.1} parent=11 // pred_check
        %p384 = pneg %p261
      $region46: #{_social_lstm_forward.1} parent=11 // pred_check_branch
        %386 = sbr.rel (%p384) target = $region48
      $region47: #{_social_lstm_forward.1} parent=11 // pred_region
        _
      $region48: #{_social_lstm_forward.1} parent=11 // pred_fallthru
        _
      // Predicated region
      $region49: #{_social_lstm_forward.1} parent=11 // pred_check
        %p387 = pneg %p282
      $region50: #{_social_lstm_forward.1} parent=11 // pred_check_branch
        %389 = sbr.rel (%p387) target = $region52
      $region51: #{_social_lstm_forward.1} parent=11 // pred_region
        _
      $region52: #{_social_lstm_forward.1} parent=11 // pred_fallthru
        _
      // Predicated region
      $region53: #{_social_lstm_forward.1} parent=11 // pred_check
        %p390 = pneg %p303
      $region54: #{_social_lstm_forward.1} parent=11 // pred_check_branch
        %392 = sbr.rel (%p390) target = $region56
      $region55: #{_social_lstm_forward.1} parent=11 // pred_region
        _
      $region56: #{_social_lstm_forward.1} parent=11 // pred_fallthru
        _
      // Predicated region
      $region57: #{_social_lstm_forward.1} parent=11 // pred_check
        %p393 = pneg %p324
      $region58: #{_social_lstm_forward.1} parent=11 // pred_check_branch
        %395 = sbr.rel (%p393) target = $region60
      $region59: #{_social_lstm_forward.1} parent=11 // pred_region
        _
      $region60: #{_social_lstm_forward.1} parent=11 // pred_fallthru
        _
    $region12: #{_social_lstm_forward.1} parent=5 // pred_fallthru
      _
    %p396 = scmp.lt.s32.totalorder %s20, 7
    // Predicated region
    $region61: #{_social_lstm_forward.1} parent=5 // pred_check
      %p397 = pneg %p396
    $region62: #{_social_lstm_forward.1} parent=5 // pred_check_branch
      %399 = sbr.rel (%p397) target = $region64
    $region63: #{_social_lstm_forward.1} parent=5 // pred_region
      // Predicated region
      $region65: #{_social_lstm_forward.1} parent=63 // pred_check
        %p400 = pneg %p40
      $region66: #{_social_lstm_forward.1} parent=63 // pred_check_branch
        %402 = sbr.rel (%p400) target = $region68
      $region67: #{_social_lstm_forward.1} parent=63 // pred_region
        %p403 = scmp.lt.s32.totalorder %s20, 6
        %s404 = scalar_select %p403, %s20, 6
        %s405 = smul.addr %s404, 8
        %s406 = scalar_lea.vmem %s0, %s405
      $region68: #{_social_lstm_forward.1} parent=63 // pred_fallthru
        _
      // Predicated region
      $region69: #{_social_lstm_forward.1} parent=63 // pred_check
        %p407 = pneg %p66
      $region70: #{_social_lstm_forward.1} parent=63 // pred_check_branch
        %409 = sbr.rel (%p407) target = $region72
      $region71: #{_social_lstm_forward.1} parent=63 // pred_region
        %p410 = scmp.lt.s32.totalorder %s20, 6
        %s411 = scalar_select %p410, %s20, 6
        %s412 = smul.addr %s411, 8
        %s413 = scalar_lea.vmem %s1, %s412
      $region72: #{_social_lstm_forward.1} parent=63 // pred_fallthru
        _
    $region64: #{_social_lstm_forward.1} parent=5 // pred_fallthru
      _
    %p414 = scmp.le.s32.totalorder 1, %s20
    %p415 = scmp.lt.s32.totalorder %s20, 8
    %p416 = pnand %p414, %p415
    %p417 = pneg %p416
    // Predicated region
    $region73: #{_social_lstm_forward.1} parent=5 // pred_check
      _
    $region74: #{_social_lstm_forward.1} parent=5 // pred_check_branch
      %419 = sbr.rel (%p416) target = $region76
    $region75: #{_social_lstm_forward.1} parent=5 // pred_region
      %s420 = ssub.s32 %s20, 1
      %p421 = scmp.lt.s32.totalorder %s25, 6
      %s422 = scalar_select %p421, %s25, 6
      %s423 = smul.addr %s422, 8
      %s424 = scalar_lea.vmem %s0, %s423
      %p425 = pneg %p46
      %p426 = pneg %p43
      %p427 = scmp.lt.s32.totalorder %s25, 6
      %s428 = scalar_select %p427, %s25, 6
      %s429 = smul.addr %s428, 8
      %s430 = scalar_lea.vmem %s1, %s429
      %p431 = pneg %p72
      %p432 = pneg %p69
      %p433 = pneg %p93
      %p434 = pneg %p90
      %p435 = pneg %p114
      %p436 = pneg %p111
      %p437 = pneg %p135
      %p438 = pneg %p132
      %p439 = pneg %p156
      %p440 = pneg %p153
      %p441 = pneg %p177
      %p442 = pneg %p174
      %p443 = pneg %p198
      %p444 = pneg %p195
      %p445 = pneg %p219
      %p446 = pneg %p216
      %p447 = pneg %p240
      %p448 = pneg %p237
      %p449 = pneg %p261
      %p450 = pneg %p258
      %p451 = pneg %p282
      %p452 = pneg %p279
      %p453 = pneg %p303
      %p454 = pneg %p300
      %p455 = pneg %p324
      %p456 = pneg %p321
      %p457 = pneg %p345
      %p458 = pneg %p342
      %p459 = scmp.lt.s32.totalorder %s25, 6
      %s460 = scalar_select %p459, %s25, 6
      %s461 = smul.addr %s460, 8
      %s462 = scalar_lea.vmem %s0, %s461
      %p463 = scmp.lt.s32.totalorder %s25, 6
      %s464 = scalar_select %p463, %s25, 6
      %s465 = smul.addr %s464, 8
      %s466 = scalar_lea.vmem %s1, %s465
      %p467 = scmp.eq.s32.totalorder %s25, 0
      // Predicated region
      $region77: #{_social_lstm_forward.1} parent=75 // pred_check
        %p468 = pneg %p467
      $region78: #{_social_lstm_forward.1} parent=75 // pred_check_branch
        %470 = sbr.rel (%p468) target = $region80
      $region79: #{_social_lstm_forward.1} parent=75 // pred_region
        %vm471 = vcmask 261120
        %472 = vst.msk [vmem:[#allocation2] sm:$0xff] %vm471, 0.0
        %473 = vst.msk [vmem:[#allocation3] sm:$0xff] %vm471, 0.0
        %vm474 = vcmask 15360
        %475 = vst.msk [vmem:[#allocation4] sm:$0xff] %vm474, 0.0
      $region80: #{_social_lstm_forward.1} parent=75 // pred_fallthru
        _
      %p476 = scmp.lt.s32.totalorder %s25, 4
      // Predicated region
      $region81: #{_social_lstm_forward.1} parent=75 // pred_check
        %p477 = pneg %p476
      $region82: #{_social_lstm_forward.1} parent=75 // pred_check_branch
        %479 = sbr.rel (%p477) target = $region84
      $region83: #{_social_lstm_forward.1} parent=75 // pred_region
        %v480 = vld [vmem:[%s466] sm:$0xff]
        %vm481 = vcmask 15360
        %482 = vst.msk [vmem:[#allocation4] sm:$0xff] %vm481, %v480
      $region84: #{_social_lstm_forward.1} parent=75 // pred_fallthru
        _
      %v483 = vld [vmem:[#allocation2] sm:$0xff]
      %v484 = vld [vmem:[#allocation4] sm:$0xff]
      %v485 = vlaneseq
      %v486 = vshrl.u32 %v485, 7
      %v487 = vlaneseq
      %v488 = vand.u32 %v487, 127
      %vm489 = vcmp.eq.s32.totalorder %v486, %v488
      %491 = vset.pattern.permute.xlu0 0
      %492 = vperm.xlu0 %491, %v484
      %v493 = vpop.permute.xlu0 %492
      %v495 = vsel %vm489, %v493, 0.0
      %vm496 = vcmask 64512
      %v498 = vsel %vm496, 1.0, 0
      %500 = vmatprep.subr.mxu0 0.0
      %501 = vmatpush1.msra.mxu0 %v495
      %502 = vmatprep.subr.mxu0 0.0
      %503 = vmatpush1.msra.mxu0 0.0
      %504 = vmatprep.subr.mxu0 0.0
      %505 = vmatpush1.msra.mxu0 0.0
      %506 = vmatprep.subr.mxu0 0.0
      %507 = vmatpush1.msra.mxu0 0.0
      %508 = vmatprep.subr.mxu0 0.0
      %509 = vmatpush1.msra.mxu0 0.0
      %510 = vmatprep.subr.mxu0 0.0
      %511 = vmatpush1.msra.mxu0 0.0
      %512 = vmatprep.subr.mxu0 0.0
      %513 = vmatpush1.msra.mxu0 0.0
      %514 = vmatprep.subr.mxu0 0.0
      %515 = vmatpush1.msra.mxu0 0.0
      %516 = vmatprep.subr.mxu0 0.0
      %517 = vmatpush1.msra.mxu0 0.0
      %518 = vmatprep.subr.mxu0 0.0
      %519 = vmatpush1.msra.mxu0 0.0
      %520 = vmatprep.subr.mxu0 0.0
      %521 = vmatpush1.msra.mxu0 0.0
      %522 = vmatprep.subr.mxu0 0.0
      %523 = vmatpush1.msra.mxu0 0.0
      %524 = vmatprep.subr.mxu0 0.0
      %525 = vmatpush1.msra.mxu0 0.0
      %526 = vmatprep.subr.mxu0 0.0
      %527 = vmatpush1.msra.mxu0 0.0
      %528 = vmatprep.subr.mxu0 0.0
      %529 = vmatpush1.msra.mxu0 0.0
      %530 = vmatprep.subr.mxu0 0.0
      %531 = vmatpush1.msra.mxu0 0.0
      %532 = vmatprep.subr.mxu0 0.0
      %533 = vmatpush1.msra.mxu0 0.0
      %534 = vmatprep.subr.mxu0 0.0
      %535 = vmatpush1.msra.mxu0 0.0
      %536 = vmatprep.subr.mxu0 0.0
      %537 = vmatpush1.msra.mxu0 0.0
      %538 = vmatprep.subr.mxu0 0.0
      %539 = vmatpush1.msra.mxu0 0.0
      %540 = vmatprep.subr.mxu0 0.0
      %541 = vmatpush1.msra.mxu0 0.0
      %542 = vmatprep.subr.mxu0 0.0
      %543 = vmatpush1.msra.mxu0 0.0
      %544 = vmatprep.subr.mxu0 0.0
      %545 = vmatpush1.msra.mxu0 0.0
      %546 = vmatprep.subr.mxu0 0.0
      %547 = vmatpush1.msra.mxu0 0.0
      %548 = vmatprep.subr.mxu0 0.0
      %549 = vmatpush1.msra.mxu0 0.0
      %550 = vmatprep.subr.mxu0 0.0
      %551 = vmatpush1.msra.mxu0 0.0
      %552 = vmatprep.subr.mxu0 0.0
      %553 = vmatpush1.msra.mxu0 0.0
      %554 = vmatprep.subr.mxu0 0.0
      %555 = vmatpush1.msra.mxu0 0.0
      %556 = vmatprep.subr.mxu0 0.0
      %557 = vmatpush1.msra.mxu0 0.0
      %558 = vmatprep.subr.mxu0 0.0
      %559 = vmatpush1.msra.mxu0 0.0
      %560 = vmatprep.subr.mxu0 0.0
      %561 = vmatpush1.msra.mxu0 0.0
      %562 = vmatprep.subr.mxu0 0.0
      %563 = vmatpush1.msra.mxu0 0.0
      %564 = vmatprep.mubr.f32.mxu0 0.0
      %565 = vmatmul.mubr.f32.gmra.mrb[0].mxu0 %v498
      %v566 = vpop.f32.mrb[0].mxu0
      %v567 = vadd.f32 0.0, %v566
      %v568 = vpop.f32.mrb[0].mxu0
      %569 = vdwg.mxu0
      %v570 = vsub.f32 %v567, %v493
      %571 = vset.pattern.permute.xlu0 1
      %572 = vperm.xlu0 %571, %v484
      %v573 = vpop.permute.xlu0 %572
      %v575 = vsel %vm489, %v573, 0.0
      %576 = vmatprep.subr.mxu0 0.0
      %577 = vmatpush1.msra.mxu0 %v575
      %578 = vmatprep.subr.mxu0 0.0
      %579 = vmatpush1.msra.mxu0 0.0
      %580 = vmatprep.subr.mxu0 0.0
      %581 = vmatpush1.msra.mxu0 0.0
      %582 = vmatprep.subr.mxu0 0.0
      %583 = vmatpush1.msra.mxu0 0.0
      %584 = vmatprep.subr.mxu0 0.0
      %585 = vmatpush1.msra.mxu0 0.0
      %586 = vmatprep.subr.mxu0 0.0
      %587 = vmatpush1.msra.mxu0 0.0
      %588 = vmatprep.subr.mxu0 0.0
      %589 = vmatpush1.msra.mxu0 0.0
      %590 = vmatprep.subr.mxu0 0.0
      %591 = vmatpush1.msra.mxu0 0.0
      %592 = vmatprep.subr.mxu0 0.0
      %593 = vmatpush1.msra.mxu0 0.0
      %594 = vmatprep.subr.mxu0 0.0
      %595 = vmatpush1.msra.mxu0 0.0
      %596 = vmatprep.subr.mxu0 0.0
      %597 = vmatpush1.msra.mxu0 0.0
      %598 = vmatprep.subr.mxu0 0.0
      %599 = vmatpush1.msra.mxu0 0.0
      %600 = vmatprep.subr.mxu0 0.0
      %601 = vmatpush1.msra.mxu0 0.0
      %602 = vmatprep.subr.mxu0 0.0
      %603 = vmatpush1.msra.mxu0 0.0
      %604 = vmatprep.subr.mxu0 0.0
      %605 = vmatpush1.msra.mxu0 0.0
      %606 = vmatprep.subr.mxu0 0.0
      %607 = vmatpush1.msra.mxu0 0.0
      %608 = vmatprep.subr.mxu0 0.0
      %609 = vmatpush1.msra.mxu0 0.0
      %610 = vmatprep.subr.mxu0 0.0
      %611 = vmatpush1.msra.mxu0 0.0
      %612 = vmatprep.subr.mxu0 0.0
      %613 = vmatpush1.msra.mxu0 0.0
      %614 = vmatprep.subr.mxu0 0.0
      %615 = vmatpush1.msra.mxu0 0.0
      %616 = vmatprep.subr.mxu0 0.0
      %617 = vmatpush1.msra.mxu0 0.0
      %618 = vmatprep.subr.mxu0 0.0
      %619 = vmatpush1.msra.mxu0 0.0
      %620 = vmatprep.subr.mxu0 0.0
      %621 = vmatpush1.msra.mxu0 0.0
      %622 = vmatprep.subr.mxu0 0.0
      %623 = vmatpush1.msra.mxu0 0.0
      %624 = vmatprep.subr.mxu0 0.0
      %625 = vmatpush1.msra.mxu0 0.0
      %626 = vmatprep.subr.mxu0 0.0
      %627 = vmatpush1.msra.mxu0 0.0
      %628 = vmatprep.subr.mxu0 0.0
      %629 = vmatpush1.msra.mxu0 0.0
      %630 = vmatprep.subr.mxu0 0.0
      %631 = vmatpush1.msra.mxu0 0.0
      %632 = vmatprep.subr.mxu0 0.0
      %633 = vmatpush1.msra.mxu0 0.0
      %634 = vmatprep.subr.mxu0 0.0
      %635 = vmatpush1.msra.mxu0 0.0
      %636 = vmatprep.subr.mxu0 0.0
      %637 = vmatpush1.msra.mxu0 0.0
      %638 = vmatprep.subr.mxu0 0.0
      %639 = vmatpush1.msra.mxu0 0.0
      %640 = vmatprep.mubr.f32.mxu0 0.0
      %641 = vmatmul.mubr.f32.gmra.mrb[0].mxu0 %v498
      %v642 = vpop.f32.mrb[0].mxu0
      %v643 = vadd.f32 0.0, %v642
      %v644 = vpop.f32.mrb[0].mxu0
      %645 = vdwg.mxu0
      %v646 = vsub.f32 %v643, %v573
      %v647 = vrcp.pop 0.6666667
      %v648 = vmul.f32 %v570, %v647
      %v649 = vmax.f32 %v648, -2.0
      %v650 = vmin.f32 %v649, 2.0
      %v651 = vmul.f32 %v646, %v647
      %v652 = vmax.f32 %v651, -2.0
      %v653 = vmin.f32 %v652, 2.0
      %v654 = vadd.f32 %v650, 2.0
      %v655 = vcvt.f32.s32.to.zero.pseudo %v654
      %v656 = vadd.f32 %v653, 2.0
      %v657 = vcvt.f32.s32.to.zero.pseudo %v656
      %vm658 = vcmp.ge.s32.totalorder %v655, 0
      %vm659 = vcmp.lt.s32.totalorder %v655, 4
      %vm660 = vmand %vm658, %vm659
      %vm661 = vcmp.ge.s32.totalorder %v657, 0
      %vm662 = vmand %vm660, %vm661
      %vm663 = vcmp.lt.s32.totalorder %v657, 4
      %vm664 = vmand %vm662, %vm663
      %v665 = vld [vmem:[%s2] sm:$0xff]
      %v666 = vld [vmem:[%s3] sm:$0x1]
      %668 = vset.pattern.permute.xlu0 0
      %669 = vperm.xlu0 %668, %v665
      %v670 = vpop.permute.xlu0 %669
      %v673 = vlaneseq
      %v674 = vshrl.u32 %v673, 7
      %v675 = vsub.s32 0, %v674
      %v676 = vrot.slane %v666, %v675
      %vm678 = vcmp.eq.f32.partialorder %v670, %v676
      %vm679 = vcmp.ne.s32.totalorder %v486, %v488
      %vm680 = vmand %vm678, %vm679
      %vm681 = vmand %vm680, %vm664
      %v682 = vmul.u32 %v657, 4
      %v683 = vadd.s32 %v682, %v655
      %v684 = vsel %vm681, 1.0, 0.0
      %v685 = vadd.s32 %v486, 8
      %v686 = vadd.s32 %v486, 16
      %v687 = vadd.s32 %v486, 24
      %v688 = vadd.s32 %v486, 32
      %v689 = vadd.s32 %v486, 40
      %v690 = vadd.s32 %v486, 48
      %v691 = vadd.s32 %v486, 56
      %v692 = vadd.s32 %v486, 64
      %v693 = vadd.s32 %v486, 72
      %v694 = vadd.s32 %v486, 80
      %v695 = vadd.s32 %v486, 88
      %v696 = vadd.s32 %v486, 96
      %v697 = vadd.s32 %v486, 104
      %v698 = vadd.s32 %v486, 112
      %v699 = vadd.s32 %v486, 120
      %v700 = vmul.u32 %v683, 8
      %v701 = vsub.s32 %v486, %v700
      %v702 = vsub.s32 %v685, %v700
      %v703 = vsub.s32 %v686, %v700
      %v704 = vsub.s32 %v687, %v700
      %v705 = vsub.s32 %v688, %v700
      %v706 = vsub.s32 %v689, %v700
      %v707 = vsub.s32 %v690, %v700
      %v708 = vsub.s32 %v691, %v700
      %v709 = vsub.s32 %v692, %v700
      %v710 = vsub.s32 %v693, %v700
      %v711 = vsub.s32 %v694, %v700
      %v712 = vsub.s32 %v695, %v700
      %v713 = vsub.s32 %v696, %v700
      %v714 = vsub.s32 %v697, %v700
      %v715 = vsub.s32 %v698, %v700
      %v716 = vsub.s32 %v699, %v700
      %vm717 = vcmp.ge.s32.totalorder %v701, 0
      %vm718 = vcmp.ge.s32.totalorder %v702, 0
      %vm719 = vcmp.ge.s32.totalorder %v703, 0
      %vm720 = vcmp.ge.s32.totalorder %v704, 0
      %vm721 = vcmp.ge.s32.totalorder %v705, 0
      %vm722 = vcmp.ge.s32.totalorder %v706, 0
      %vm723 = vcmp.ge.s32.totalorder %v707, 0
      %vm724 = vcmp.ge.s32.totalorder %v708, 0
      %vm725 = vcmp.ge.s32.totalorder %v709, 0
      %vm726 = vcmp.ge.s32.totalorder %v710, 0
      %vm727 = vcmp.ge.s32.totalorder %v711, 0
      %vm728 = vcmp.ge.s32.totalorder %v712, 0
      %vm729 = vcmp.ge.s32.totalorder %v713, 0
      %vm730 = vcmp.ge.s32.totalorder %v714, 0
      %vm731 = vcmp.ge.s32.totalorder %v715, 0
      %vm732 = vcmp.ge.s32.totalorder %v716, 0
      %vm733 = vcmp.lt.s32.totalorder %v701, 8
      %vm734 = vcmp.lt.s32.totalorder %v702, 8
      %vm735 = vcmp.lt.s32.totalorder %v703, 8
      %vm736 = vcmp.lt.s32.totalorder %v704, 8
      %vm737 = vcmp.lt.s32.totalorder %v705, 8
      %vm738 = vcmp.lt.s32.totalorder %v706, 8
      %vm739 = vcmp.lt.s32.totalorder %v707, 8
      %vm740 = vcmp.lt.s32.totalorder %v708, 8
      %vm741 = vcmp.lt.s32.totalorder %v709, 8
      %vm742 = vcmp.lt.s32.totalorder %v710, 8
      %vm743 = vcmp.lt.s32.totalorder %v711, 8
      %vm744 = vcmp.lt.s32.totalorder %v712, 8
      %vm745 = vcmp.lt.s32.totalorder %v713, 8
      %vm746 = vcmp.lt.s32.totalorder %v714, 8
      %vm747 = vcmp.lt.s32.totalorder %v715, 8
      %vm748 = vcmp.lt.s32.totalorder %v716, 8
      %vm749 = vmand %vm717, %vm733
      %vm750 = vmand %vm718, %vm734
      %vm751 = vmand %vm719, %vm735
      %vm752 = vmand %vm720, %vm736
      %vm753 = vmand %vm721, %vm737
      %vm754 = vmand %vm722, %vm738
      %vm755 = vmand %vm723, %vm739
      %vm756 = vmand %vm724, %vm740
      %vm757 = vmand %vm725, %vm741
      %vm758 = vmand %vm726, %vm742
      %vm759 = vmand %vm727, %vm743
      %vm760 = vmand %vm728, %vm744
      %vm761 = vmand %vm729, %vm745
      %vm762 = vmand %vm730, %vm746
      %vm763 = vmand %vm731, %vm747
      %vm764 = vmand %vm732, %vm748
      %v765 = vsel %vm749, %v684, 0.0
      %v766 = vsel %vm750, %v684, 0.0
      %v767 = vsel %vm751, %v684, 0.0
      %v768 = vsel %vm752, %v684, 0.0
      %v769 = vsel %vm753, %v684, 0.0
      %v770 = vsel %vm754, %v684, 0.0
      %v771 = vsel %vm755, %v684, 0.0
      %v772 = vsel %vm756, %v684, 0.0
      %v773 = vsel %vm757, %v684, 0.0
      %v774 = vsel %vm758, %v684, 0.0
      %v775 = vsel %vm759, %v684, 0.0
      %v776 = vsel %vm760, %v684, 0.0
      %v777 = vsel %vm761, %v684, 0.0
      %v778 = vsel %vm762, %v684, 0.0
      %v779 = vsel %vm763, %v684, 0.0
      %v780 = vsel %vm764, %v684, 0.0
      %v782 = vsel %vm496, %v765, 0
      %v785 = vsel %vm496, %v766, 0
      %v788 = vsel %vm496, %v767, 0
      %v791 = vsel %vm496, %v768, 0
      %v794 = vsel %vm496, %v769, 0
      %v797 = vsel %vm496, %v770, 0
      %v800 = vsel %vm496, %v771, 0
      %v803 = vsel %vm496, %v772, 0
      %v806 = vsel %vm496, %v773, 0
      %v809 = vsel %vm496, %v774, 0
      %v812 = vsel %vm496, %v775, 0
      %v815 = vsel %vm496, %v776, 0
      %v818 = vsel %vm496, %v777, 0
      %v821 = vsel %vm496, %v778, 0
      %v824 = vsel %vm496, %v779, 0
      %v827 = vsel %vm496, %v780, 0
      %829 = vmatprep.subr.mxu0 0.0
      %830 = vmatpush1.msra.mxu0 %v483
      %831 = vmatprep.subr.mxu0 0.0
      %832 = vmatpush1.msra.mxu0 0.0
      %833 = vmatprep.subr.mxu0 0.0
      %834 = vmatpush1.msra.mxu0 0.0
      %835 = vmatprep.subr.mxu0 0.0
      %836 = vmatpush1.msra.mxu0 0.0
      %837 = vmatprep.subr.mxu0 0.0
      %838 = vmatpush1.msra.mxu0 0.0
      %839 = vmatprep.subr.mxu0 0.0
      %840 = vmatpush1.msra.mxu0 0.0
      %841 = vmatprep.subr.mxu0 0.0
      %842 = vmatpush1.msra.mxu0 0.0
      %843 = vmatprep.subr.mxu0 0.0
      %844 = vmatpush1.msra.mxu0 0.0
      %845 = vmatprep.subr.mxu0 0.0
      %846 = vmatpush1.msra.mxu0 0.0
      %847 = vmatprep.subr.mxu0 0.0
      %848 = vmatpush1.msra.mxu0 0.0
      %849 = vmatprep.subr.mxu0 0.0
      %850 = vmatpush1.msra.mxu0 0.0
      %851 = vmatprep.subr.mxu0 0.0
      %852 = vmatpush1.msra.mxu0 0.0
      %853 = vmatprep.subr.mxu0 0.0
      %854 = vmatpush1.msra.mxu0 0.0
      %855 = vmatprep.subr.mxu0 0.0
      %856 = vmatpush1.msra.mxu0 0.0
      %857 = vmatprep.subr.mxu0 0.0
      %858 = vmatpush1.msra.mxu0 0.0
      %859 = vmatprep.subr.mxu0 0.0
      %860 = vmatpush1.msra.mxu0 0.0
      %861 = vmatprep.subr.mxu0 0.0
      %862 = vmatpush1.msra.mxu0 0.0
      %863 = vmatprep.subr.mxu0 0.0
      %864 = vmatpush1.msra.mxu0 0.0
      %865 = vmatprep.subr.mxu0 0.0
      %866 = vmatpush1.msra.mxu0 0.0
      %867 = vmatprep.subr.mxu0 0.0
      %868 = vmatpush1.msra.mxu0 0.0
      %869 = vmatprep.subr.mxu0 0.0
      %870 = vmatpush1.msra.mxu0 0.0
      %871 = vmatprep.subr.mxu0 0.0
      %872 = vmatpush1.msra.mxu0 0.0
      %873 = vmatprep.subr.mxu0 0.0
      %874 = vmatpush1.msra.mxu0 0.0
      %875 = vmatprep.subr.mxu0 0.0
      %876 = vmatpush1.msra.mxu0 0.0
      %877 = vmatprep.subr.mxu0 0.0
      %878 = vmatpush1.msra.mxu0 0.0
      %879 = vmatprep.subr.mxu0 0.0
      %880 = vmatpush1.msra.mxu0 0.0
      %881 = vmatprep.subr.mxu0 0.0
      %882 = vmatpush1.msra.mxu0 0.0
      %883 = vmatprep.subr.mxu0 0.0
      %884 = vmatpush1.msra.mxu0 0.0
      %885 = vmatprep.subr.mxu0 0.0
      %886 = vmatpush1.msra.mxu0 0.0
      %887 = vmatprep.subr.mxu0 0.0
      %888 = vmatpush1.msra.mxu0 0.0
      %889 = vmatprep.subr.mxu0 0.0
      %890 = vmatpush1.msra.mxu0 0.0
      %891 = vmatprep.subr.mxu0 0.0
      %892 = vmatpush1.msra.mxu0 0.0
      %893 = vmatprep.mubr.f32.mxu0 0.0
      %894 = vmatmul.mubr.f32.gmra.mrb[0].mxu0 %v782
      %v895 = vpop.f32.mrb[0].mxu0
      %v896 = vadd.f32 0.0, %v895
      %v897 = vpop.f32.mrb[0].mxu0
      %898 = vmatprep.mubr.f32.mxu0 0.0
      %899 = vmatmul.mubr.f32.gmra.mrb[0].mxu0 %v785
      %v900 = vpop.f32.mrb[0].mxu0
      %v901 = vadd.f32 0.0, %v900
      %v902 = vpop.f32.mrb[0].mxu0
      %903 = vmatprep.mubr.f32.mxu0 0.0
      %904 = vmatmul.mubr.f32.gmra.mrb[0].mxu0 %v788
      %v905 = vpop.f32.mrb[0].mxu0
      %v906 = vadd.f32 0.0, %v905
      %v907 = vpop.f32.mrb[0].mxu0
      %908 = vmatprep.mubr.f32.mxu0 0.0
      %909 = vmatmul.mubr.f32.gmra.mrb[0].mxu0 %v791
      %v910 = vpop.f32.mrb[0].mxu0
      %v911 = vadd.f32 0.0, %v910
      %v912 = vpop.f32.mrb[0].mxu0
      %913 = vmatprep.mubr.f32.mxu0 0.0
      %914 = vmatmul.mubr.f32.gmra.mrb[0].mxu0 %v794
      %v915 = vpop.f32.mrb[0].mxu0
      %v916 = vadd.f32 0.0, %v915
      %v917 = vpop.f32.mrb[0].mxu0
      %918 = vmatprep.mubr.f32.mxu0 0.0
      %919 = vmatmul.mubr.f32.gmra.mrb[0].mxu0 %v797
      %v920 = vpop.f32.mrb[0].mxu0
      %v921 = vadd.f32 0.0, %v920
      %v922 = vpop.f32.mrb[0].mxu0
      %923 = vmatprep.mubr.f32.mxu0 0.0
      %924 = vmatmul.mubr.f32.gmra.mrb[0].mxu0 %v800
      %v925 = vpop.f32.mrb[0].mxu0
      %v926 = vadd.f32 0.0, %v925
      %v927 = vpop.f32.mrb[0].mxu0
      %928 = vmatprep.mubr.f32.mxu0 0.0
      %929 = vmatmul.mubr.f32.gmra.mrb[0].mxu0 %v803
      %v930 = vpop.f32.mrb[0].mxu0
      %v931 = vadd.f32 0.0, %v930
      %v932 = vpop.f32.mrb[0].mxu0
      %933 = vmatprep.mubr.f32.mxu0 0.0
      %934 = vmatmul.mubr.f32.gmra.mrb[0].mxu0 %v806
      %v935 = vpop.f32.mrb[0].mxu0
      %v936 = vadd.f32 0.0, %v935
      %v937 = vpop.f32.mrb[0].mxu0
      %938 = vmatprep.mubr.f32.mxu0 0.0
      %939 = vmatmul.mubr.f32.gmra.mrb[0].mxu0 %v809
      %v940 = vpop.f32.mrb[0].mxu0
      %v941 = vadd.f32 0.0, %v940
      %v942 = vpop.f32.mrb[0].mxu0
      %943 = vmatprep.mubr.f32.mxu0 0.0
      %944 = vmatmul.mubr.f32.gmra.mrb[0].mxu0 %v812
      %v945 = vpop.f32.mrb[0].mxu0
      %v946 = vadd.f32 0.0, %v945
      %v947 = vpop.f32.mrb[0].mxu0
      %948 = vmatprep.mubr.f32.mxu0 0.0
      %949 = vmatmul.mubr.f32.gmra.mrb[0].mxu0 %v815
      %v950 = vpop.f32.mrb[0].mxu0
      %v951 = vadd.f32 0.0, %v950
      %v952 = vpop.f32.mrb[0].mxu0
      %953 = vmatprep.mubr.f32.mxu0 0.0
      %954 = vmatmul.mubr.f32.gmra.mrb[0].mxu0 %v818
      %v955 = vpop.f32.mrb[0].mxu0
      %v956 = vadd.f32 0.0, %v955
      %v957 = vpop.f32.mrb[0].mxu0
      %958 = vmatprep.mubr.f32.mxu0 0.0
      %959 = vmatmul.mubr.f32.gmra.mrb[0].mxu0 %v821
      %v960 = vpop.f32.mrb[0].mxu0
      %v961 = vadd.f32 0.0, %v960
      %v962 = vpop.f32.mrb[0].mxu0
      %963 = vmatprep.mubr.f32.mxu0 0.0
      %964 = vmatmul.mubr.f32.gmra.mrb[0].mxu0 %v824
      %v965 = vpop.f32.mrb[0].mxu0
      %v966 = vadd.f32 0.0, %v965
      %v967 = vpop.f32.mrb[0].mxu0
      %968 = vmatprep.mubr.f32.mxu0 0.0
      %969 = vmatmul.mubr.f32.gmra.mrb[0].mxu0 %v827
      %v970 = vpop.f32.mrb[0].mxu0
      %v971 = vadd.f32 0.0, %v970
      %v972 = vpop.f32.mrb[0].mxu0
      %973 = vdwg.mxu0
      %v974 = vld [vmem:[%s6] sm:$0xff]
      %v975 = vld [vmem:[%s6 + $0x8] sm:$0xff]
      %v976 = vld [vmem:[%s6 + $0x10] sm:$0xff]
      %v977 = vld [vmem:[%s6 + $0x18] sm:$0xff]
      %s978 = scalar_lea.vmem %s6, 32
      %v979 = vld [vmem:[%s978] sm:$0xff]
      %v980 = vld [vmem:[%s978 + $0x8] sm:$0xff]
      %v981 = vld [vmem:[%s978 + $0x10] sm:$0xff]
      %v982 = vld [vmem:[%s978 + $0x18] sm:$0xff]
      %vm983 = vcmask 261120
      %v985 = vsel %vm983, %v901, 0
      %987 = vmatprep.subr.mxu0 0.0
      %988 = vmatpush1.msra.mxu0 %v979
      %989 = vmatprep.subr.mxu0 0.0
      %990 = vmatpush1.msra.mxu0 %v980
      %991 = vmatprep.subr.mxu0 0.0
      %992 = vmatpush1.msra.mxu0 %v981
      %993 = vmatprep.subr.mxu0 0.0
      %994 = vmatpush1.msra.mxu0 %v982
      %995 = vmatprep.subr.mxu0 0.0
      %996 = vmatpush1.msra.mxu0 0.0
      %997 = vmatprep.subr.mxu0 0.0
      %998 = vmatpush1.msra.mxu0 0.0
      %999 = vmatprep.subr.mxu0 0.0
      %1000 = vmatpush1.msra.mxu0 0.0
      %1001 = vmatprep.subr.mxu0 0.0
      %1002 = vmatpush1.msra.mxu0 0.0
      %1003 = vmatprep.subr.mxu0 0.0
      %1004 = vmatpush1.msra.mxu0 0.0
      %1005 = vmatprep.subr.mxu0 0.0
      %1006 = vmatpush1.msra.mxu0 0.0
      %1007 = vmatprep.subr.mxu0 0.0
      %1008 = vmatpush1.msra.mxu0 0.0
      %1009 = vmatprep.subr.mxu0 0.0
      %1010 = vmatpush1.msra.mxu0 0.0
      %1011 = vmatprep.subr.mxu0 0.0
      %1012 = vmatpush1.msra.mxu0 0.0
      %1013 = vmatprep.subr.mxu0 0.0
      %1014 = vmatpush1.msra.mxu0 0.0
      %1015 = vmatprep.subr.mxu0 0.0
      %1016 = vmatpush1.msra.mxu0 0.0
      %1017 = vmatprep.subr.mxu0 0.0
      %1018 = vmatpush1.msra.mxu0 0.0
      %1019 = vmatprep.subr.mxu0 0.0
      %1020 = vmatpush1.msra.mxu0 0.0
      %1021 = vmatprep.subr.mxu0 0.0
      %1022 = vmatpush1.msra.mxu0 0.0
      %1023 = vmatprep.subr.mxu0 0.0
      %1024 = vmatpush1.msra.mxu0 0.0
      %1025 = vmatprep.subr.mxu0 0.0
      %1026 = vmatpush1.msra.mxu0 0.0
      %1027 = vmatprep.subr.mxu0 0.0
      %1028 = vmatpush1.msra.mxu0 0.0
      %1029 = vmatprep.subr.mxu0 0.0
      %1030 = vmatpush1.msra.mxu0 0.0
      %1031 = vmatprep.subr.mxu0 0.0
      %1032 = vmatpush1.msra.mxu0 0.0
      %1033 = vmatprep.subr.mxu0 0.0
      %1034 = vmatpush1.msra.mxu0 0.0
      %1035 = vmatprep.subr.mxu0 0.0
      %1036 = vmatpush1.msra.mxu0 0.0
      %1037 = vmatprep.subr.mxu0 0.0
      %1038 = vmatpush1.msra.mxu0 0.0
      %1039 = vmatprep.subr.mxu0 0.0
      %1040 = vmatpush1.msra.mxu0 0.0
      %1041 = vmatprep.subr.mxu0 0.0
      %1042 = vmatpush1.msra.mxu0 0.0
      %1043 = vmatprep.subr.mxu0 0.0
      %1044 = vmatpush1.msra.mxu0 0.0
      %1045 = vmatprep.subr.mxu0 0.0
      %1046 = vmatpush1.msra.mxu0 0.0
      %1047 = vmatprep.subr.mxu0 0.0
      %1048 = vmatpush1.msra.mxu0 0.0
      %1049 = vmatprep.subr.mxu0 0.0
      %1050 = vmatpush1.msra.mxu0 0.0
      %1051 = vmatprep.mubr.f32.mxu0 0.0
      %1052 = vmatmul.mubr.f32.gmra.mrb[0].mxu0 %v985
      %v1053 = vpop.f32.mrb[0].mxu0
      %v1054 = vadd.f32 0.0, %v1053
      %v1055 = vpop.f32.mrb[0].mxu0
      %1056 = vdwg.mxu0
      %v1058 = vsel %vm983, %v896, 0
      %1060 = vmatprep.subr.mxu0 0.0
      %1061 = vmatpush1.msra.mxu0 %v974
      %1062 = vmatprep.subr.mxu0 0.0
      %1063 = vmatpush1.msra.mxu0 %v975
      %1064 = vmatprep.subr.mxu0 0.0
      %1065 = vmatpush1.msra.mxu0 %v976
      %1066 = vmatprep.subr.mxu0 0.0
      %1067 = vmatpush1.msra.mxu0 %v977
      %1068 = vmatprep.subr.mxu0 0.0
      %1069 = vmatpush1.msra.mxu0 0.0
      %1070 = vmatprep.subr.mxu0 0.0
      %1071 = vmatpush1.msra.mxu0 0.0
      %1072 = vmatprep.subr.mxu0 0.0
      %1073 = vmatpush1.msra.mxu0 0.0
      %1074 = vmatprep.subr.mxu0 0.0
      %1075 = vmatpush1.msra.mxu0 0.0
      %1076 = vmatprep.subr.mxu0 0.0
      %1077 = vmatpush1.msra.mxu0 0.0
      %1078 = vmatprep.subr.mxu0 0.0
      %1079 = vmatpush1.msra.mxu0 0.0
      %1080 = vmatprep.subr.mxu0 0.0
      %1081 = vmatpush1.msra.mxu0 0.0
      %1082 = vmatprep.subr.mxu0 0.0
      %1083 = vmatpush1.msra.mxu0 0.0
      %1084 = vmatprep.subr.mxu0 0.0
      %1085 = vmatpush1.msra.mxu0 0.0
      %1086 = vmatprep.subr.mxu0 0.0
      %1087 = vmatpush1.msra.mxu0 0.0
      %1088 = vmatprep.subr.mxu0 0.0
      %1089 = vmatpush1.msra.mxu0 0.0
      %1090 = vmatprep.subr.mxu0 0.0
      %1091 = vmatpush1.msra.mxu0 0.0
      %1092 = vmatprep.subr.mxu0 0.0
      %1093 = vmatpush1.msra.mxu0 0.0
      %1094 = vmatprep.subr.mxu0 0.0
      %1095 = vmatpush1.msra.mxu0 0.0
      %1096 = vmatprep.subr.mxu0 0.0
      %1097 = vmatpush1.msra.mxu0 0.0
      %1098 = vmatprep.subr.mxu0 0.0
      %1099 = vmatpush1.msra.mxu0 0.0
      %1100 = vmatprep.subr.mxu0 0.0
      %1101 = vmatpush1.msra.mxu0 0.0
      %1102 = vmatprep.subr.mxu0 0.0
      %1103 = vmatpush1.msra.mxu0 0.0
      %1104 = vmatprep.subr.mxu0 0.0
      %1105 = vmatpush1.msra.mxu0 0.0
      %1106 = vmatprep.subr.mxu0 0.0
      %1107 = vmatpush1.msra.mxu0 0.0
      %1108 = vmatprep.subr.mxu0 0.0
      %1109 = vmatpush1.msra.mxu0 0.0
      %1110 = vmatprep.subr.mxu0 0.0
      %1111 = vmatpush1.msra.mxu0 0.0
      %1112 = vmatprep.subr.mxu0 0.0
      %1113 = vmatpush1.msra.mxu0 0.0
      %1114 = vmatprep.subr.mxu0 0.0
      %1115 = vmatpush1.msra.mxu0 0.0
      %1116 = vmatprep.subr.mxu0 0.0
      %1117 = vmatpush1.msra.mxu0 0.0
      %1118 = vmatprep.subr.mxu0 0.0
      %1119 = vmatpush1.msra.mxu0 0.0
      %1120 = vmatprep.subr.mxu0 0.0
      %1121 = vmatpush1.msra.mxu0 0.0
      %1122 = vmatprep.subr.mxu0 0.0
      %1123 = vmatpush1.msra.mxu0 0.0
      %1124 = vmatprep.mubr.f32.mxu0 0.0
      %1125 = vmatmul.mubr.f32.gmra.mrb[0].mxu0 %v1058
      %v1126 = vpop.f32.mrb[0].mxu0
      %v1127 = vadd.f32 %v1054, %v1126
      %v1128 = vpop.f32.mrb[0].mxu0
      %1129 = vdwg.mxu0
      %s1130 = scalar_lea.vmem %s6, 64
      %v1131 = vld [vmem:[%s1130] sm:$0xff]
      %v1132 = vld [vmem:[%s1130 + $0x8] sm:$0xff]
      %v1133 = vld [vmem:[%s1130 + $0x10] sm:$0xff]
      %v1134 = vld [vmem:[%s1130 + $0x18] sm:$0xff]
      %v1136 = vsel %vm983, %v906, 0
      %1138 = vmatprep.subr.mxu0 0.0
      %1139 = vmatpush1.msra.mxu0 %v1131
      %1140 = vmatprep.subr.mxu0 0.0
      %1141 = vmatpush1.msra.mxu0 %v1132
      %1142 = vmatprep.subr.mxu0 0.0
      %1143 = vmatpush1.msra.mxu0 %v1133
      %1144 = vmatprep.subr.mxu0 0.0
      %1145 = vmatpush1.msra.mxu0 %v1134
      %1146 = vmatprep.subr.mxu0 0.0
      %1147 = vmatpush1.msra.mxu0 0.0
      %1148 = vmatprep.subr.mxu0 0.0
      %1149 = vmatpush1.msra.mxu0 0.0
      %1150 = vmatprep.subr.mxu0 0.0
      %1151 = vmatpush1.msra.mxu0 0.0
      %1152 = vmatprep.subr.mxu0 0.0
      %1153 = vmatpush1.msra.mxu0 0.0
      %1154 = vmatprep.subr.mxu0 0.0
      %1155 = vmatpush1.msra.mxu0 0.0
      %1156 = vmatprep.subr.mxu0 0.0
      %1157 = vmatpush1.msra.mxu0 0.0
      %1158 = vmatprep.subr.mxu0 0.0
      %1159 = vmatpush1.msra.mxu0 0.0
      %1160 = vmatprep.subr.mxu0 0.0
      %1161 = vmatpush1.msra.mxu0 0.0
      %1162 = vmatprep.subr.mxu0 0.0
      %1163 = vmatpush1.msra.mxu0 0.0
      %1164 = vmatprep.subr.mxu0 0.0
      %1165 = vmatpush1.msra.mxu0 0.0
      %1166 = vmatprep.subr.mxu0 0.0
      %1167 = vmatpush1.msra.mxu0 0.0
      %1168 = vmatprep.subr.mxu0 0.0
      %1169 = vmatpush1.msra.mxu0 0.0
      %1170 = vmatprep.subr.mxu0 0.0
      %1171 = vmatpush1.msra.mxu0 0.0
      %1172 = vmatprep.subr.mxu0 0.0
      %1173 = vmatpush1.msra.mxu0 0.0
      %1174 = vmatprep.subr.mxu0 0.0
      %1175 = vmatpush1.msra.mxu0 0.0
      %1176 = vmatprep.subr.mxu0 0.0
      %1177 = vmatpush1.msra.mxu0 0.0
      %1178 = vmatprep.subr.mxu0 0.0
      %1179 = vmatpush1.msra.mxu0 0.0
      %1180 = vmatprep.subr.mxu0 0.0
      %1181 = vmatpush1.msra.mxu0 0.0
      %1182 = vmatprep.subr.mxu0 0.0
      %1183 = vmatpush1.msra.mxu0 0.0
      %1184 = vmatprep.subr.mxu0 0.0
      %1185 = vmatpush1.msra.mxu0 0.0
      %1186 = vmatprep.subr.mxu0 0.0
      %1187 = vmatpush1.msra.mxu0 0.0
      %1188 = vmatprep.subr.mxu0 0.0
      %1189 = vmatpush1.msra.mxu0 0.0
      %1190 = vmatprep.subr.mxu0 0.0
      %1191 = vmatpush1.msra.mxu0 0.0
      %1192 = vmatprep.subr.mxu0 0.0
      %1193 = vmatpush1.msra.mxu0 0.0
      %1194 = vmatprep.subr.mxu0 0.0
      %1195 = vmatpush1.msra.mxu0 0.0
      %1196 = vmatprep.subr.mxu0 0.0
      %1197 = vmatpush1.msra.mxu0 0.0
      %1198 = vmatprep.subr.mxu0 0.0
      %1199 = vmatpush1.msra.mxu0 0.0
      %1200 = vmatprep.subr.mxu0 0.0
      %1201 = vmatpush1.msra.mxu0 0.0
      %1202 = vmatprep.mubr.f32.mxu0 0.0
      %1203 = vmatmul.mubr.f32.gmra.mrb[0].mxu0 %v1136
      %v1204 = vpop.f32.mrb[0].mxu0
      %v1205 = vadd.f32 0.0, %v1204
      %v1206 = vpop.f32.mrb[0].mxu0
      %1207 = vdwg.mxu0
      %v1208 = vadd.f32 %v1127, %v1205
      %s1209 = scalar_lea.vmem %s6, 96
      %v1210 = vld [vmem:[%s1209] sm:$0xff]
      %v1211 = vld [vmem:[%s1209 + $0x8] sm:$0xff]
      %v1212 = vld [vmem:[%s1209 + $0x10] sm:$0xff]
      %v1213 = vld [vmem:[%s1209 + $0x18] sm:$0xff]
      %v1215 = vsel %vm983, %v911, 0
      %1217 = vmatprep.subr.mxu0 0.0
      %1218 = vmatpush1.msra.mxu0 %v1210
      %1219 = vmatprep.subr.mxu0 0.0
      %1220 = vmatpush1.msra.mxu0 %v1211
      %1221 = vmatprep.subr.mxu0 0.0
      %1222 = vmatpush1.msra.mxu0 %v1212
      %1223 = vmatprep.subr.mxu0 0.0
      %1224 = vmatpush1.msra.mxu0 %v1213
      %1225 = vmatprep.subr.mxu0 0.0
      %1226 = vmatpush1.msra.mxu0 0.0
      %1227 = vmatprep.subr.mxu0 0.0
      %1228 = vmatpush1.msra.mxu0 0.0
      %1229 = vmatprep.subr.mxu0 0.0
      %1230 = vmatpush1.msra.mxu0 0.0
      %1231 = vmatprep.subr.mxu0 0.0
      %1232 = vmatpush1.msra.mxu0 0.0
      %1233 = vmatprep.subr.mxu0 0.0
      %1234 = vmatpush1.msra.mxu0 0.0
      %1235 = vmatprep.subr.mxu0 0.0
      %1236 = vmatpush1.msra.mxu0 0.0
      %1237 = vmatprep.subr.mxu0 0.0
      %1238 = vmatpush1.msra.mxu0 0.0
      %1239 = vmatprep.subr.mxu0 0.0
      %1240 = vmatpush1.msra.mxu0 0.0
      %1241 = vmatprep.subr.mxu0 0.0
      %1242 = vmatpush1.msra.mxu0 0.0
      %1243 = vmatprep.subr.mxu0 0.0
      %1244 = vmatpush1.msra.mxu0 0.0
      %1245 = vmatprep.subr.mxu0 0.0
      %1246 = vmatpush1.msra.mxu0 0.0
      %1247 = vmatprep.subr.mxu0 0.0
      %1248 = vmatpush1.msra.mxu0 0.0
      %1249 = vmatprep.subr.mxu0 0.0
      %1250 = vmatpush1.msra.mxu0 0.0
      %1251 = vmatprep.subr.mxu0 0.0
      %1252 = vmatpush1.msra.mxu0 0.0
      %1253 = vmatprep.subr.mxu0 0.0
      %1254 = vmatpush1.msra.mxu0 0.0
      %1255 = vmatprep.subr.mxu0 0.0
      %1256 = vmatpush1.msra.mxu0 0.0
      %1257 = vmatprep.subr.mxu0 0.0
      %1258 = vmatpush1.msra.mxu0 0.0
      %1259 = vmatprep.subr.mxu0 0.0
      %1260 = vmatpush1.msra.mxu0 0.0
      %1261 = vmatprep.subr.mxu0 0.0
      %1262 = vmatpush1.msra.mxu0 0.0
      %1263 = vmatprep.subr.mxu0 0.0
      %1264 = vmatpush1.msra.mxu0 0.0
      %1265 = vmatprep.subr.mxu0 0.0
      %1266 = vmatpush1.msra.mxu0 0.0
      %1267 = vmatprep.subr.mxu0 0.0
      %1268 = vmatpush1.msra.mxu0 0.0
      %1269 = vmatprep.subr.mxu0 0.0
      %1270 = vmatpush1.msra.mxu0 0.0
      %1271 = vmatprep.subr.mxu0 0.0
      %1272 = vmatpush1.msra.mxu0 0.0
      %1273 = vmatprep.subr.mxu0 0.0
      %1274 = vmatpush1.msra.mxu0 0.0
      %1275 = vmatprep.subr.mxu0 0.0
      %1276 = vmatpush1.msra.mxu0 0.0
      %1277 = vmatprep.subr.mxu0 0.0
      %1278 = vmatpush1.msra.mxu0 0.0
      %1279 = vmatprep.subr.mxu0 0.0
      %1280 = vmatpush1.msra.mxu0 0.0
      %1281 = vmatprep.mubr.f32.mxu0 0.0
      %1282 = vmatmul.mubr.f32.gmra.mrb[0].mxu0 %v1215
      %v1283 = vpop.f32.mrb[0].mxu0
      %v1284 = vadd.f32 0.0, %v1283
      %v1285 = vpop.f32.mrb[0].mxu0
      %1286 = vdwg.mxu0
      %v1287 = vadd.f32 %v1208, %v1284
      %s1288 = scalar_lea.vmem %s6, 128
      %v1289 = vld [vmem:[%s1288] sm:$0xff]
      %v1290 = vld [vmem:[%s1288 + $0x8] sm:$0xff]
      %v1291 = vld [vmem:[%s1288 + $0x10] sm:$0xff]
      %v1292 = vld [vmem:[%s1288 + $0x18] sm:$0xff]
      %v1294 = vsel %vm983, %v916, 0
      %1296 = vmatprep.subr.mxu0 0.0
      %1297 = vmatpush1.msra.mxu0 %v1289
      %1298 = vmatprep.subr.mxu0 0.0
      %1299 = vmatpush1.msra.mxu0 %v1290
      %1300 = vmatprep.subr.mxu0 0.0
      %1301 = vmatpush1.msra.mxu0 %v1291
      %1302 = vmatprep.subr.mxu0 0.0
      %1303 = vmatpush1.msra.mxu0 %v1292
      %1304 = vmatprep.subr.mxu0 0.0
      %1305 = vmatpush1.msra.mxu0 0.0
      %1306 = vmatprep.subr.mxu0 0.0
      %1307 = vmatpush1.msra.mxu0 0.0
      %1308 = vmatprep.subr.mxu0 0.0
      %1309 = vmatpush1.msra.mxu0 0.0
      %1310 = vmatprep.subr.mxu0 0.0
      %1311 = vmatpush1.msra.mxu0 0.0
      %1312 = vmatprep.subr.mxu0 0.0
      %1313 = vmatpush1.msra.mxu0 0.0
      %1314 = vmatprep.subr.mxu0 0.0
      %1315 = vmatpush1.msra.mxu0 0.0
      %1316 = vmatprep.subr.mxu0 0.0
      %1317 = vmatpush1.msra.mxu0 0.0
      %1318 = vmatprep.subr.mxu0 0.0
      %1319 = vmatpush1.msra.mxu0 0.0
      %1320 = vmatprep.subr.mxu0 0.0
      %1321 = vmatpush1.msra.mxu0 0.0
      %1322 = vmatprep.subr.mxu0 0.0
      %1323 = vmatpush1.msra.mxu0 0.0
      %1324 = vmatprep.subr.mxu0 0.0
      %1325 = vmatpush1.msra.mxu0 0.0
      %1326 = vmatprep.subr.mxu0 0.0
      %1327 = vmatpush1.msra.mxu0 0.0
      %1328 = vmatprep.subr.mxu0 0.0
      %1329 = vmatpush1.msra.mxu0 0.0
      %1330 = vmatprep.subr.mxu0 0.0
      %1331 = vmatpush1.msra.mxu0 0.0
      %1332 = vmatprep.subr.mxu0 0.0
      %1333 = vmatpush1.msra.mxu0 0.0
      %1334 = vmatprep.subr.mxu0 0.0
      %1335 = vmatpush1.msra.mxu0 0.0
      %1336 = vmatprep.subr.mxu0 0.0
      %1337 = vmatpush1.msra.mxu0 0.0
      %1338 = vmatprep.subr.mxu0 0.0
      %1339 = vmatpush1.msra.mxu0 0.0
      %1340 = vmatprep.subr.mxu0 0.0
      %1341 = vmatpush1.msra.mxu0 0.0
      %1342 = vmatprep.subr.mxu0 0.0
      %1343 = vmatpush1.msra.mxu0 0.0
      %1344 = vmatprep.subr.mxu0 0.0
      %1345 = vmatpush1.msra.mxu0 0.0
      %1346 = vmatprep.subr.mxu0 0.0
      %1347 = vmatpush1.msra.mxu0 0.0
      %1348 = vmatprep.subr.mxu0 0.0
      %1349 = vmatpush1.msra.mxu0 0.0
      %1350 = vmatprep.subr.mxu0 0.0
      %1351 = vmatpush1.msra.mxu0 0.0
      %1352 = vmatprep.subr.mxu0 0.0
      %1353 = vmatpush1.msra.mxu0 0.0
      %1354 = vmatprep.subr.mxu0 0.0
      %1355 = vmatpush1.msra.mxu0 0.0
      %1356 = vmatprep.subr.mxu0 0.0
      %1357 = vmatpush1.msra.mxu0 0.0
      %1358 = vmatprep.subr.mxu0 0.0
      %1359 = vmatpush1.msra.mxu0 0.0
      %1360 = vmatprep.mubr.f32.mxu0 0.0
      %1361 = vmatmul.mubr.f32.gmra.mrb[0].mxu0 %v1294
      %v1362 = vpop.f32.mrb[0].mxu0
      %v1363 = vadd.f32 0.0, %v1362
      %v1364 = vpop.f32.mrb[0].mxu0
      %1365 = vdwg.mxu0
      %v1366 = vadd.f32 %v1287, %v1363
      %s1367 = scalar_lea.vmem %s6, 160
      %v1368 = vld [vmem:[%s1367] sm:$0xff]
      %v1369 = vld [vmem:[%s1367 + $0x8] sm:$0xff]
      %v1370 = vld [vmem:[%s1367 + $0x10] sm:$0xff]
      %v1371 = vld [vmem:[%s1367 + $0x18] sm:$0xff]
      %v1373 = vsel %vm983, %v921, 0
      %1375 = vmatprep.subr.mxu0 0.0
      %1376 = vmatpush1.msra.mxu0 %v1368
      %1377 = vmatprep.subr.mxu0 0.0
      %1378 = vmatpush1.msra.mxu0 %v1369
      %1379 = vmatprep.subr.mxu0 0.0
      %1380 = vmatpush1.msra.mxu0 %v1370
      %1381 = vmatprep.subr.mxu0 0.0
      %1382 = vmatpush1.msra.mxu0 %v1371
      %1383 = vmatprep.subr.mxu0 0.0
      %1384 = vmatpush1.msra.mxu0 0.0
      %1385 = vmatprep.subr.mxu0 0.0
      %1386 = vmatpush1.msra.mxu0 0.0
      %1387 = vmatprep.subr.mxu0 0.0
      %1388 = vmatpush1.msra.mxu0 0.0
      %1389 = vmatprep.subr.mxu0 0.0
      %1390 = vmatpush1.msra.mxu0 0.0
      %1391 = vmatprep.subr.mxu0 0.0
      %1392 = vmatpush1.msra.mxu0 0.0
      %1393 = vmatprep.subr.mxu0 0.0
      %1394 = vmatpush1.msra.mxu0 0.0
      %1395 = vmatprep.subr.mxu0 0.0
      %1396 = vmatpush1.msra.mxu0 0.0
      %1397 = vmatprep.subr.mxu0 0.0
      %1398 = vmatpush1.msra.mxu0 0.0
      %1399 = vmatprep.subr.mxu0 0.0
      %1400 = vmatpush1.msra.mxu0 0.0
      %1401 = vmatprep.subr.mxu0 0.0
      %1402 = vmatpush1.msra.mxu0 0.0
      %1403 = vmatprep.subr.mxu0 0.0
      %1404 = vmatpush1.msra.mxu0 0.0
      %1405 = vmatprep.subr.mxu0 0.0
      %1406 = vmatpush1.msra.mxu0 0.0
      %1407 = vmatprep.subr.mxu0 0.0
      %1408 = vmatpush1.msra.mxu0 0.0
      %1409 = vmatprep.subr.mxu0 0.0
      %1410 = vmatpush1.msra.mxu0 0.0
      %1411 = vmatprep.subr.mxu0 0.0
      %1412 = vmatpush1.msra.mxu0 0.0
      %1413 = vmatprep.subr.mxu0 0.0
      %1414 = vmatpush1.msra.mxu0 0.0
      %1415 = vmatprep.subr.mxu0 0.0
      %1416 = vmatpush1.msra.mxu0 0.0
      %1417 = vmatprep.subr.mxu0 0.0
      %1418 = vmatpush1.msra.mxu0 0.0
      %1419 = vmatprep.subr.mxu0 0.0
      %1420 = vmatpush1.msra.mxu0 0.0
      %1421 = vmatprep.subr.mxu0 0.0
      %1422 = vmatpush1.msra.mxu0 0.0
      %1423 = vmatprep.subr.mxu0 0.0
      %1424 = vmatpush1.msra.mxu0 0.0
      %1425 = vmatprep.subr.mxu0 0.0
      %1426 = vmatpush1.msra.mxu0 0.0
      %1427 = vmatprep.subr.mxu0 0.0
      %1428 = vmatpush1.msra.mxu0 0.0
      %1429 = vmatprep.subr.mxu0 0.0
      %1430 = vmatpush1.msra.mxu0 0.0
      %1431 = vmatprep.subr.mxu0 0.0
      %1432 = vmatpush1.msra.mxu0 0.0
      %1433 = vmatprep.subr.mxu0 0.0
      %1434 = vmatpush1.msra.mxu0 0.0
      %1435 = vmatprep.subr.mxu0 0.0
      %1436 = vmatpush1.msra.mxu0 0.0
      %1437 = vmatprep.subr.mxu0 0.0
      %1438 = vmatpush1.msra.mxu0 0.0
      %1439 = vmatprep.mubr.f32.mxu0 0.0
      %1440 = vmatmul.mubr.f32.gmra.mrb[0].mxu0 %v1373
      %v1441 = vpop.f32.mrb[0].mxu0
      %v1442 = vadd.f32 0.0, %v1441
      %v1443 = vpop.f32.mrb[0].mxu0
      %1444 = vdwg.mxu0
      %v1445 = vadd.f32 %v1366, %v1442
      %s1446 = scalar_lea.vmem %s6, 192
      %v1447 = vld [vmem:[%s1446] sm:$0xff]
      %v1448 = vld [vmem:[%s1446 + $0x8] sm:$0xff]
      %v1449 = vld [vmem:[%s1446 + $0x10] sm:$0xff]
      %v1450 = vld [vmem:[%s1446 + $0x18] sm:$0xff]
      %v1452 = vsel %vm983, %v926, 0
      %1454 = vmatprep.subr.mxu0 0.0
      %1455 = vmatpush1.msra.mxu0 %v1447
      %1456 = vmatprep.subr.mxu0 0.0
      %1457 = vmatpush1.msra.mxu0 %v1448
      %1458 = vmatprep.subr.mxu0 0.0
      %1459 = vmatpush1.msra.mxu0 %v1449
      %1460 = vmatprep.subr.mxu0 0.0
      %1461 = vmatpush1.msra.mxu0 %v1450
      %1462 = vmatprep.subr.mxu0 0.0
      %1463 = vmatpush1.msra.mxu0 0.0
      %1464 = vmatprep.subr.mxu0 0.0
      %1465 = vmatpush1.msra.mxu0 0.0
      %1466 = vmatprep.subr.mxu0 0.0
      %1467 = vmatpush1.msra.mxu0 0.0
      %1468 = vmatprep.subr.mxu0 0.0
      %1469 = vmatpush1.msra.mxu0 0.0
      %1470 = vmatprep.subr.mxu0 0.0
      %1471 = vmatpush1.msra.mxu0 0.0
      %1472 = vmatprep.subr.mxu0 0.0
      %1473 = vmatpush1.msra.mxu0 0.0
      %1474 = vmatprep.subr.mxu0 0.0
      %1475 = vmatpush1.msra.mxu0 0.0
      %1476 = vmatprep.subr.mxu0 0.0
      %1477 = vmatpush1.msra.mxu0 0.0
      %1478 = vmatprep.subr.mxu0 0.0
      %1479 = vmatpush1.msra.mxu0 0.0
      %1480 = vmatprep.subr.mxu0 0.0
      %1481 = vmatpush1.msra.mxu0 0.0
      %1482 = vmatprep.subr.mxu0 0.0
      %1483 = vmatpush1.msra.mxu0 0.0
      %1484 = vmatprep.subr.mxu0 0.0
      %1485 = vmatpush1.msra.mxu0 0.0
      %1486 = vmatprep.subr.mxu0 0.0
      %1487 = vmatpush1.msra.mxu0 0.0
      %1488 = vmatprep.subr.mxu0 0.0
      %1489 = vmatpush1.msra.mxu0 0.0
      %1490 = vmatprep.subr.mxu0 0.0
      %1491 = vmatpush1.msra.mxu0 0.0
      %1492 = vmatprep.subr.mxu0 0.0
      %1493 = vmatpush1.msra.mxu0 0.0
      %1494 = vmatprep.subr.mxu0 0.0
      %1495 = vmatpush1.msra.mxu0 0.0
      %1496 = vmatprep.subr.mxu0 0.0
      %1497 = vmatpush1.msra.mxu0 0.0
      %1498 = vmatprep.subr.mxu0 0.0
      %1499 = vmatpush1.msra.mxu0 0.0
      %1500 = vmatprep.subr.mxu0 0.0
      %1501 = vmatpush1.msra.mxu0 0.0
      %1502 = vmatprep.subr.mxu0 0.0
      %1503 = vmatpush1.msra.mxu0 0.0
      %1504 = vmatprep.subr.mxu0 0.0
      %1505 = vmatpush1.msra.mxu0 0.0
      %1506 = vmatprep.subr.mxu0 0.0
      %1507 = vmatpush1.msra.mxu0 0.0
      %1508 = vmatprep.subr.mxu0 0.0
      %1509 = vmatpush1.msra.mxu0 0.0
      %1510 = vmatprep.subr.mxu0 0.0
      %1511 = vmatpush1.msra.mxu0 0.0
      %1512 = vmatprep.subr.mxu0 0.0
      %1513 = vmatpush1.msra.mxu0 0.0
      %1514 = vmatprep.subr.mxu0 0.0
      %1515 = vmatpush1.msra.mxu0 0.0
      %1516 = vmatprep.subr.mxu0 0.0
      %1517 = vmatpush1.msra.mxu0 0.0
      %1518 = vmatprep.mubr.f32.mxu0 0.0
      %1519 = vmatmul.mubr.f32.gmra.mrb[0].mxu0 %v1452
      %v1520 = vpop.f32.mrb[0].mxu0
      %v1521 = vadd.f32 0.0, %v1520
      %v1522 = vpop.f32.mrb[0].mxu0
      %1523 = vdwg.mxu0
      %v1524 = vadd.f32 %v1445, %v1521
      %s1525 = scalar_lea.vmem %s6, 224
      %v1526 = vld [vmem:[%s1525] sm:$0xff]
      %v1527 = vld [vmem:[%s1525 + $0x8] sm:$0xff]
      %v1528 = vld [vmem:[%s1525 + $0x10] sm:$0xff]
      %v1529 = vld [vmem:[%s1525 + $0x18] sm:$0xff]
      %v1531 = vsel %vm983, %v931, 0
      %1533 = vmatprep.subr.mxu0 0.0
      %1534 = vmatpush1.msra.mxu0 %v1526
      %1535 = vmatprep.subr.mxu0 0.0
      %1536 = vmatpush1.msra.mxu0 %v1527
      %1537 = vmatprep.subr.mxu0 0.0
      %1538 = vmatpush1.msra.mxu0 %v1528
      %1539 = vmatprep.subr.mxu0 0.0
      %1540 = vmatpush1.msra.mxu0 %v1529
      %1541 = vmatprep.subr.mxu0 0.0
      %1542 = vmatpush1.msra.mxu0 0.0
      %1543 = vmatprep.subr.mxu0 0.0
      %1544 = vmatpush1.msra.mxu0 0.0
      %1545 = vmatprep.subr.mxu0 0.0
      %1546 = vmatpush1.msra.mxu0 0.0
      %1547 = vmatprep.subr.mxu0 0.0
      %1548 = vmatpush1.msra.mxu0 0.0
      %1549 = vmatprep.subr.mxu0 0.0
      %1550 = vmatpush1.msra.mxu0 0.0
      %1551 = vmatprep.subr.mxu0 0.0
      %1552 = vmatpush1.msra.mxu0 0.0
      %1553 = vmatprep.subr.mxu0 0.0
      %1554 = vmatpush1.msra.mxu0 0.0
      %1555 = vmatprep.subr.mxu0 0.0
      %1556 = vmatpush1.msra.mxu0 0.0
      %1557 = vmatprep.subr.mxu0 0.0
      %1558 = vmatpush1.msra.mxu0 0.0
      %1559 = vmatprep.subr.mxu0 0.0
      %1560 = vmatpush1.msra.mxu0 0.0
      %1561 = vmatprep.subr.mxu0 0.0
      %1562 = vmatpush1.msra.mxu0 0.0
      %1563 = vmatprep.subr.mxu0 0.0
      %1564 = vmatpush1.msra.mxu0 0.0
      %1565 = vmatprep.subr.mxu0 0.0
      %1566 = vmatpush1.msra.mxu0 0.0
      %1567 = vmatprep.subr.mxu0 0.0
      %1568 = vmatpush1.msra.mxu0 0.0
      %1569 = vmatprep.subr.mxu0 0.0
      %1570 = vmatpush1.msra.mxu0 0.0
      %1571 = vmatprep.subr.mxu0 0.0
      %1572 = vmatpush1.msra.mxu0 0.0
      %1573 = vmatprep.subr.mxu0 0.0
      %1574 = vmatpush1.msra.mxu0 0.0
      %1575 = vmatprep.subr.mxu0 0.0
      %1576 = vmatpush1.msra.mxu0 0.0
      %1577 = vmatprep.subr.mxu0 0.0
      %1578 = vmatpush1.msra.mxu0 0.0
      %1579 = vmatprep.subr.mxu0 0.0
      %1580 = vmatpush1.msra.mxu0 0.0
      %1581 = vmatprep.subr.mxu0 0.0
      %1582 = vmatpush1.msra.mxu0 0.0
      %1583 = vmatprep.subr.mxu0 0.0
      %1584 = vmatpush1.msra.mxu0 0.0
      %1585 = vmatprep.subr.mxu0 0.0
      %1586 = vmatpush1.msra.mxu0 0.0
      %1587 = vmatprep.subr.mxu0 0.0
      %1588 = vmatpush1.msra.mxu0 0.0
      %1589 = vmatprep.subr.mxu0 0.0
      %1590 = vmatpush1.msra.mxu0 0.0
      %1591 = vmatprep.subr.mxu0 0.0
      %1592 = vmatpush1.msra.mxu0 0.0
      %1593 = vmatprep.subr.mxu0 0.0
      %1594 = vmatpush1.msra.mxu0 0.0
      %1595 = vmatprep.subr.mxu0 0.0
      %1596 = vmatpush1.msra.mxu0 0.0
      %1597 = vmatprep.mubr.f32.mxu0 0.0
      %1598 = vmatmul.mubr.f32.gmra.mrb[0].mxu0 %v1531
      %v1599 = vpop.f32.mrb[0].mxu0
      %v1600 = vadd.f32 0.0, %v1599
      %v1601 = vpop.f32.mrb[0].mxu0
      %1602 = vdwg.mxu0
      %v1603 = vadd.f32 %v1524, %v1600
      %s1604 = scalar_lea.vmem %s6, 256
      %v1605 = vld [vmem:[%s1604] sm:$0xff]
      %v1606 = vld [vmem:[%s1604 + $0x8] sm:$0xff]
      %v1607 = vld [vmem:[%s1604 + $0x10] sm:$0xff]
      %v1608 = vld [vmem:[%s1604 + $0x18] sm:$0xff]
      %v1610 = vsel %vm983, %v936, 0
      %1612 = vmatprep.subr.mxu0 0.0
      %1613 = vmatpush1.msra.mxu0 %v1605
      %1614 = vmatprep.subr.mxu0 0.0
      %1615 = vmatpush1.msra.mxu0 %v1606
      %1616 = vmatprep.subr.mxu0 0.0
      %1617 = vmatpush1.msra.mxu0 %v1607
      %1618 = vmatprep.subr.mxu0 0.0
      %1619 = vmatpush1.msra.mxu0 %v1608
      %1620 = vmatprep.subr.mxu0 0.0
      %1621 = vmatpush1.msra.mxu0 0.0
      %1622 = vmatprep.subr.mxu0 0.0
      %1623 = vmatpush1.msra.mxu0 0.0
      %1624 = vmatprep.subr.mxu0 0.0
      %1625 = vmatpush1.msra.mxu0 0.0
      %1626 = vmatprep.subr.mxu0 0.0
      %1627 = vmatpush1.msra.mxu0 0.0
      %1628 = vmatprep.subr.mxu0 0.0
      %1629 = vmatpush1.msra.mxu0 0.0
      %1630 = vmatprep.subr.mxu0 0.0
      %1631 = vmatpush1.msra.mxu0 0.0
      %1632 = vmatprep.subr.mxu0 0.0
      %1633 = vmatpush1.msra.mxu0 0.0
      %1634 = vmatprep.subr.mxu0 0.0
      %1635 = vmatpush1.msra.mxu0 0.0
      %1636 = vmatprep.subr.mxu0 0.0
      %1637 = vmatpush1.msra.mxu0 0.0
      %1638 = vmatprep.subr.mxu0 0.0
      %1639 = vmatpush1.msra.mxu0 0.0
      %1640 = vmatprep.subr.mxu0 0.0
      %1641 = vmatpush1.msra.mxu0 0.0
      %1642 = vmatprep.subr.mxu0 0.0
      %1643 = vmatpush1.msra.mxu0 0.0
      %1644 = vmatprep.subr.mxu0 0.0
      %1645 = vmatpush1.msra.mxu0 0.0
      %1646 = vmatprep.subr.mxu0 0.0
      %1647 = vmatpush1.msra.mxu0 0.0
      %1648 = vmatprep.subr.mxu0 0.0
      %1649 = vmatpush1.msra.mxu0 0.0
      %1650 = vmatprep.subr.mxu0 0.0
      %1651 = vmatpush1.msra.mxu0 0.0
      %1652 = vmatprep.subr.mxu0 0.0
      %1653 = vmatpush1.msra.mxu0 0.0
      %1654 = vmatprep.subr.mxu0 0.0
      %1655 = vmatpush1.msra.mxu0 0.0
      %1656 = vmatprep.subr.mxu0 0.0
      %1657 = vmatpush1.msra.mxu0 0.0
      %1658 = vmatprep.subr.mxu0 0.0
      %1659 = vmatpush1.msra.mxu0 0.0
      %1660 = vmatprep.subr.mxu0 0.0
      %1661 = vmatpush1.msra.mxu0 0.0
      %1662 = vmatprep.subr.mxu0 0.0
      %1663 = vmatpush1.msra.mxu0 0.0
      %1664 = vmatprep.subr.mxu0 0.0
      %1665 = vmatpush1.msra.mxu0 0.0
      %1666 = vmatprep.subr.mxu0 0.0
      %1667 = vmatpush1.msra.mxu0 0.0
      %1668 = vmatprep.subr.mxu0 0.0
      %1669 = vmatpush1.msra.mxu0 0.0
      %1670 = vmatprep.subr.mxu0 0.0
      %1671 = vmatpush1.msra.mxu0 0.0
      %1672 = vmatprep.subr.mxu0 0.0
      %1673 = vmatpush1.msra.mxu0 0.0
      %1674 = vmatprep.subr.mxu0 0.0
      %1675 = vmatpush1.msra.mxu0 0.0
      %1676 = vmatprep.mubr.f32.mxu0 0.0
      %1677 = vmatmul.mubr.f32.gmra.mrb[0].mxu0 %v1610
      %v1678 = vpop.f32.mrb[0].mxu0
      %v1679 = vadd.f32 0.0, %v1678
      %v1680 = vpop.f32.mrb[0].mxu0
      %1681 = vdwg.mxu0
      %v1682 = vadd.f32 %v1603, %v1679
      %s1683 = scalar_lea.vmem %s6, 288
      %v1684 = vld [vmem:[%s1683] sm:$0xff]
      %v1685 = vld [vmem:[%s1683 + $0x8] sm:$0xff]
      %v1686 = vld [vmem:[%s1683 + $0x10] sm:$0xff]
      %v1687 = vld [vmem:[%s1683 + $0x18] sm:$0xff]
      %v1689 = vsel %vm983, %v941, 0
      %1691 = vmatprep.subr.mxu0 0.0
      %1692 = vmatpush1.msra.mxu0 %v1684
      %1693 = vmatprep.subr.mxu0 0.0
      %1694 = vmatpush1.msra.mxu0 %v1685
      %1695 = vmatprep.subr.mxu0 0.0
      %1696 = vmatpush1.msra.mxu0 %v1686
      %1697 = vmatprep.subr.mxu0 0.0
      %1698 = vmatpush1.msra.mxu0 %v1687
      %1699 = vmatprep.subr.mxu0 0.0
      %1700 = vmatpush1.msra.mxu0 0.0
      %1701 = vmatprep.subr.mxu0 0.0
      %1702 = vmatpush1.msra.mxu0 0.0
      %1703 = vmatprep.subr.mxu0 0.0
      %1704 = vmatpush1.msra.mxu0 0.0
      %1705 = vmatprep.subr.mxu0 0.0
      %1706 = vmatpush1.msra.mxu0 0.0
      %1707 = vmatprep.subr.mxu0 0.0
      %1708 = vmatpush1.msra.mxu0 0.0
      %1709 = vmatprep.subr.mxu0 0.0
      %1710 = vmatpush1.msra.mxu0 0.0
      %1711 = vmatprep.subr.mxu0 0.0
      %1712 = vmatpush1.msra.mxu0 0.0
      %1713 = vmatprep.subr.mxu0 0.0
      %1714 = vmatpush1.msra.mxu0 0.0
      %1715 = vmatprep.subr.mxu0 0.0
      %1716 = vmatpush1.msra.mxu0 0.0
      %1717 = vmatprep.subr.mxu0 0.0
      %1718 = vmatpush1.msra.mxu0 0.0
      %1719 = vmatprep.subr.mxu0 0.0
      %1720 = vmatpush1.msra.mxu0 0.0
      %1721 = vmatprep.subr.mxu0 0.0
      %1722 = vmatpush1.msra.mxu0 0.0
      %1723 = vmatprep.subr.mxu0 0.0
      %1724 = vmatpush1.msra.mxu0 0.0
      %1725 = vmatprep.subr.mxu0 0.0
      %1726 = vmatpush1.msra.mxu0 0.0
      %1727 = vmatprep.subr.mxu0 0.0
      %1728 = vmatpush1.msra.mxu0 0.0
      %1729 = vmatprep.subr.mxu0 0.0
      %1730 = vmatpush1.msra.mxu0 0.0
      %1731 = vmatprep.subr.mxu0 0.0
      %1732 = vmatpush1.msra.mxu0 0.0
      %1733 = vmatprep.subr.mxu0 0.0
      %1734 = vmatpush1.msra.mxu0 0.0
      %1735 = vmatprep.subr.mxu0 0.0
      %1736 = vmatpush1.msra.mxu0 0.0
      %1737 = vmatprep.subr.mxu0 0.0
      %1738 = vmatpush1.msra.mxu0 0.0
      %1739 = vmatprep.subr.mxu0 0.0
      %1740 = vmatpush1.msra.mxu0 0.0
      %1741 = vmatprep.subr.mxu0 0.0
      %1742 = vmatpush1.msra.mxu0 0.0
      %1743 = vmatprep.subr.mxu0 0.0
      %1744 = vmatpush1.msra.mxu0 0.0
      %1745 = vmatprep.subr.mxu0 0.0
      %1746 = vmatpush1.msra.mxu0 0.0
      %1747 = vmatprep.subr.mxu0 0.0
      %1748 = vmatpush1.msra.mxu0 0.0
      %1749 = vmatprep.subr.mxu0 0.0
      %1750 = vmatpush1.msra.mxu0 0.0
      %1751 = vmatprep.subr.mxu0 0.0
      %1752 = vmatpush1.msra.mxu0 0.0
      %1753 = vmatprep.subr.mxu0 0.0
      %1754 = vmatpush1.msra.mxu0 0.0
      %1755 = vmatprep.mubr.f32.mxu0 0.0
      %1756 = vmatmul.mubr.f32.gmra.mrb[0].mxu0 %v1689
      %v1757 = vpop.f32.mrb[0].mxu0
      %v1758 = vadd.f32 0.0, %v1757
      %v1759 = vpop.f32.mrb[0].mxu0
      %1760 = vdwg.mxu0
      %v1761 = vadd.f32 %v1682, %v1758
      %s1762 = scalar_lea.vmem %s6, 320
      %v1763 = vld [vmem:[%s1762] sm:$0xff]
      %v1764 = vld [vmem:[%s1762 + $0x8] sm:$0xff]
      %v1765 = vld [vmem:[%s1762 + $0x10] sm:$0xff]
      %v1766 = vld [vmem:[%s1762 + $0x18] sm:$0xff]
      %v1768 = vsel %vm983, %v946, 0
      %1770 = vmatprep.subr.mxu0 0.0
      %1771 = vmatpush1.msra.mxu0 %v1763
      %1772 = vmatprep.subr.mxu0 0.0
      %1773 = vmatpush1.msra.mxu0 %v1764
      %1774 = vmatprep.subr.mxu0 0.0
      %1775 = vmatpush1.msra.mxu0 %v1765
      %1776 = vmatprep.subr.mxu0 0.0
      %1777 = vmatpush1.msra.mxu0 %v1766
      %1778 = vmatprep.subr.mxu0 0.0
      %1779 = vmatpush1.msra.mxu0 0.0
      %1780 = vmatprep.subr.mxu0 0.0
      %1781 = vmatpush1.msra.mxu0 0.0
      %1782 = vmatprep.subr.mxu0 0.0
      %1783 = vmatpush1.msra.mxu0 0.0
      %1784 = vmatprep.subr.mxu0 0.0
      %1785 = vmatpush1.msra.mxu0 0.0
      %1786 = vmatprep.subr.mxu0 0.0
      %1787 = vmatpush1.msra.mxu0 0.0
      %1788 = vmatprep.subr.mxu0 0.0
      %1789 = vmatpush1.msra.mxu0 0.0
      %1790 = vmatprep.subr.mxu0 0.0
      %1791 = vmatpush1.msra.mxu0 0.0
      %1792 = vmatprep.subr.mxu0 0.0
      %1793 = vmatpush1.msra.mxu0 0.0
      %1794 = vmatprep.subr.mxu0 0.0
      %1795 = vmatpush1.msra.mxu0 0.0
      %1796 = vmatprep.subr.mxu0 0.0
      %1797 = vmatpush1.msra.mxu0 0.0
      %1798 = vmatprep.subr.mxu0 0.0
      %1799 = vmatpush1.msra.mxu0 0.0
      %1800 = vmatprep.subr.mxu0 0.0
      %1801 = vmatpush1.msra.mxu0 0.0
      %1802 = vmatprep.subr.mxu0 0.0
      %1803 = vmatpush1.msra.mxu0 0.0
      %1804 = vmatprep.subr.mxu0 0.0
      %1805 = vmatpush1.msra.mxu0 0.0
      %1806 = vmatprep.subr.mxu0 0.0
      %1807 = vmatpush1.msra.mxu0 0.0
      %1808 = vmatprep.subr.mxu0 0.0
      %1809 = vmatpush1.msra.mxu0 0.0
      %1810 = vmatprep.subr.mxu0 0.0
      %1811 = vmatpush1.msra.mxu0 0.0
      %1812 = vmatprep.subr.mxu0 0.0
      %1813 = vmatpush1.msra.mxu0 0.0
      %1814 = vmatprep.subr.mxu0 0.0
      %1815 = vmatpush1.msra.mxu0 0.0
      %1816 = vmatprep.subr.mxu0 0.0
      %1817 = vmatpush1.msra.mxu0 0.0
      %1818 = vmatprep.subr.mxu0 0.0
      %1819 = vmatpush1.msra.mxu0 0.0
      %1820 = vmatprep.subr.mxu0 0.0
      %1821 = vmatpush1.msra.mxu0 0.0
      %1822 = vmatprep.subr.mxu0 0.0
      %1823 = vmatpush1.msra.mxu0 0.0
      %1824 = vmatprep.subr.mxu0 0.0
      %1825 = vmatpush1.msra.mxu0 0.0
      %1826 = vmatprep.subr.mxu0 0.0
      %1827 = vmatpush1.msra.mxu0 0.0
      %1828 = vmatprep.subr.mxu0 0.0
      %1829 = vmatpush1.msra.mxu0 0.0
      %1830 = vmatprep.subr.mxu0 0.0
      %1831 = vmatpush1.msra.mxu0 0.0
      %1832 = vmatprep.subr.mxu0 0.0
      %1833 = vmatpush1.msra.mxu0 0.0
      %1834 = vmatprep.mubr.f32.mxu0 0.0
      %1835 = vmatmul.mubr.f32.gmra.mrb[0].mxu0 %v1768
      %v1836 = vpop.f32.mrb[0].mxu0
      %v1837 = vadd.f32 0.0, %v1836
      %v1838 = vpop.f32.mrb[0].mxu0
      %1839 = vdwg.mxu0
      %v1840 = vadd.f32 %v1761, %v1837
      %s1841 = scalar_lea.vmem %s6, 352
      %v1842 = vld [vmem:[%s1841] sm:$0xff]
      %v1843 = vld [vmem:[%s1841 + $0x8] sm:$0xff]
      %v1844 = vld [vmem:[%s1841 + $0x10] sm:$0xff]
      %v1845 = vld [vmem:[%s1841 + $0x18] sm:$0xff]
      %v1847 = vsel %vm983, %v951, 0
      %1849 = vmatprep.subr.mxu0 0.0
      %1850 = vmatpush1.msra.mxu0 %v1842
      %1851 = vmatprep.subr.mxu0 0.0
      %1852 = vmatpush1.msra.mxu0 %v1843
      %1853 = vmatprep.subr.mxu0 0.0
      %1854 = vmatpush1.msra.mxu0 %v1844
      %1855 = vmatprep.subr.mxu0 0.0
      %1856 = vmatpush1.msra.mxu0 %v1845
      %1857 = vmatprep.subr.mxu0 0.0
      %1858 = vmatpush1.msra.mxu0 0.0
      %1859 = vmatprep.subr.mxu0 0.0
      %1860 = vmatpush1.msra.mxu0 0.0
      %1861 = vmatprep.subr.mxu0 0.0
      %1862 = vmatpush1.msra.mxu0 0.0
      %1863 = vmatprep.subr.mxu0 0.0
      %1864 = vmatpush1.msra.mxu0 0.0
      %1865 = vmatprep.subr.mxu0 0.0
      %1866 = vmatpush1.msra.mxu0 0.0
      %1867 = vmatprep.subr.mxu0 0.0
      %1868 = vmatpush1.msra.mxu0 0.0
      %1869 = vmatprep.subr.mxu0 0.0
      %1870 = vmatpush1.msra.mxu0 0.0
      %1871 = vmatprep.subr.mxu0 0.0
      %1872 = vmatpush1.msra.mxu0 0.0
      %1873 = vmatprep.subr.mxu0 0.0
      %1874 = vmatpush1.msra.mxu0 0.0
      %1875 = vmatprep.subr.mxu0 0.0
      %1876 = vmatpush1.msra.mxu0 0.0
      %1877 = vmatprep.subr.mxu0 0.0
      %1878 = vmatpush1.msra.mxu0 0.0
      %1879 = vmatprep.subr.mxu0 0.0
      %1880 = vmatpush1.msra.mxu0 0.0
      %1881 = vmatprep.subr.mxu0 0.0
      %1882 = vmatpush1.msra.mxu0 0.0
      %1883 = vmatprep.subr.mxu0 0.0
      %1884 = vmatpush1.msra.mxu0 0.0
      %1885 = vmatprep.subr.mxu0 0.0
      %1886 = vmatpush1.msra.mxu0 0.0
      %1887 = vmatprep.subr.mxu0 0.0
      %1888 = vmatpush1.msra.mxu0 0.0
      %1889 = vmatprep.subr.mxu0 0.0
      %1890 = vmatpush1.msra.mxu0 0.0
      %1891 = vmatprep.subr.mxu0 0.0
      %1892 = vmatpush1.msra.mxu0 0.0
      %1893 = vmatprep.subr.mxu0 0.0
      %1894 = vmatpush1.msra.mxu0 0.0
      %1895 = vmatprep.subr.mxu0 0.0
      %1896 = vmatpush1.msra.mxu0 0.0
      %1897 = vmatprep.subr.mxu0 0.0
      %1898 = vmatpush1.msra.mxu0 0.0
      %1899 = vmatprep.subr.mxu0 0.0
      %1900 = vmatpush1.msra.mxu0 0.0
      %1901 = vmatprep.subr.mxu0 0.0
      %1902 = vmatpush1.msra.mxu0 0.0
      %1903 = vmatprep.subr.mxu0 0.0
      %1904 = vmatpush1.msra.mxu0 0.0
      %1905 = vmatprep.subr.mxu0 0.0
      %1906 = vmatpush1.msra.mxu0 0.0
      %1907 = vmatprep.subr.mxu0 0.0
      %1908 = vmatpush1.msra.mxu0 0.0
      %1909 = vmatprep.subr.mxu0 0.0
      %1910 = vmatpush1.msra.mxu0 0.0
      %1911 = vmatprep.subr.mxu0 0.0
      %1912 = vmatpush1.msra.mxu0 0.0
      %1913 = vmatprep.mubr.f32.mxu0 0.0
      %1914 = vmatmul.mubr.f32.gmra.mrb[0].mxu0 %v1847
      %v1915 = vpop.f32.mrb[0].mxu0
      %v1916 = vadd.f32 0.0, %v1915
      %v1917 = vpop.f32.mrb[0].mxu0
      %1918 = vdwg.mxu0
      %v1919 = vadd.f32 %v1840, %v1916
      %s1920 = scalar_lea.vmem %s6, 384
      %v1921 = vld [vmem:[%s1920] sm:$0xff]
      %v1922 = vld [vmem:[%s1920 + $0x8] sm:$0xff]
      %v1923 = vld [vmem:[%s1920 + $0x10] sm:$0xff]
      %v1924 = vld [vmem:[%s1920 + $0x18] sm:$0xff]
      %v1926 = vsel %vm983, %v956, 0
      %1928 = vmatprep.subr.mxu0 0.0
      %1929 = vmatpush1.msra.mxu0 %v1921
      %1930 = vmatprep.subr.mxu0 0.0
      %1931 = vmatpush1.msra.mxu0 %v1922
      %1932 = vmatprep.subr.mxu0 0.0
      %1933 = vmatpush1.msra.mxu0 %v1923
      %1934 = vmatprep.subr.mxu0 0.0
      %1935 = vmatpush1.msra.mxu0 %v1924
      %1936 = vmatprep.subr.mxu0 0.0
      %1937 = vmatpush1.msra.mxu0 0.0
      %1938 = vmatprep.subr.mxu0 0.0
      %1939 = vmatpush1.msra.mxu0 0.0
      %1940 = vmatprep.subr.mxu0 0.0
      %1941 = vmatpush1.msra.mxu0 0.0
      %1942 = vmatprep.subr.mxu0 0.0
      %1943 = vmatpush1.msra.mxu0 0.0
      %1944 = vmatprep.subr.mxu0 0.0
      %1945 = vmatpush1.msra.mxu0 0.0
      %1946 = vmatprep.subr.mxu0 0.0
      %1947 = vmatpush1.msra.mxu0 0.0
      %1948 = vmatprep.subr.mxu0 0.0
      %1949 = vmatpush1.msra.mxu0 0.0
      %1950 = vmatprep.subr.mxu0 0.0
      %1951 = vmatpush1.msra.mxu0 0.0
      %1952 = vmatprep.subr.mxu0 0.0
      %1953 = vmatpush1.msra.mxu0 0.0
      %1954 = vmatprep.subr.mxu0 0.0
      %1955 = vmatpush1.msra.mxu0 0.0
      %1956 = vmatprep.subr.mxu0 0.0
      %1957 = vmatpush1.msra.mxu0 0.0
      %1958 = vmatprep.subr.mxu0 0.0
      %1959 = vmatpush1.msra.mxu0 0.0
      %1960 = vmatprep.subr.mxu0 0.0
      %1961 = vmatpush1.msra.mxu0 0.0
      %1962 = vmatprep.subr.mxu0 0.0
      %1963 = vmatpush1.msra.mxu0 0.0
      %1964 = vmatprep.subr.mxu0 0.0
      %1965 = vmatpush1.msra.mxu0 0.0
      %1966 = vmatprep.subr.mxu0 0.0
      %1967 = vmatpush1.msra.mxu0 0.0
      %1968 = vmatprep.subr.mxu0 0.0
      %1969 = vmatpush1.msra.mxu0 0.0
      %1970 = vmatprep.subr.mxu0 0.0
      %1971 = vmatpush1.msra.mxu0 0.0
      %1972 = vmatprep.subr.mxu0 0.0
      %1973 = vmatpush1.msra.mxu0 0.0
      %1974 = vmatprep.subr.mxu0 0.0
      %1975 = vmatpush1.msra.mxu0 0.0
      %1976 = vmatprep.subr.mxu0 0.0
      %1977 = vmatpush1.msra.mxu0 0.0
      %1978 = vmatprep.subr.mxu0 0.0
      %1979 = vmatpush1.msra.mxu0 0.0
      %1980 = vmatprep.subr.mxu0 0.0
      %1981 = vmatpush1.msra.mxu0 0.0
      %1982 = vmatprep.subr.mxu0 0.0
      %1983 = vmatpush1.msra.mxu0 0.0
      %1984 = vmatprep.subr.mxu0 0.0
      %1985 = vmatpush1.msra.mxu0 0.0
      %1986 = vmatprep.subr.mxu0 0.0
      %1987 = vmatpush1.msra.mxu0 0.0
      %1988 = vmatprep.subr.mxu0 0.0
      %1989 = vmatpush1.msra.mxu0 0.0
      %1990 = vmatprep.subr.mxu0 0.0
      %1991 = vmatpush1.msra.mxu0 0.0
      %1992 = vmatprep.mubr.f32.mxu0 0.0
      %1993 = vmatmul.mubr.f32.gmra.mrb[0].mxu0 %v1926
      %v1994 = vpop.f32.mrb[0].mxu0
      %v1995 = vadd.f32 0.0, %v1994
      %v1996 = vpop.f32.mrb[0].mxu0
      %1997 = vdwg.mxu0
      %v1998 = vadd.f32 %v1919, %v1995
      %s1999 = scalar_lea.vmem %s6, 416
      %v2000 = vld [vmem:[%s1999] sm:$0xff]
      %v2001 = vld [vmem:[%s1999 + $0x8] sm:$0xff]
      %v2002 = vld [vmem:[%s1999 + $0x10] sm:$0xff]
      %v2003 = vld [vmem:[%s1999 + $0x18] sm:$0xff]
      %v2005 = vsel %vm983, %v961, 0
      %2007 = vmatprep.subr.mxu0 0.0
      %2008 = vmatpush1.msra.mxu0 %v2000
      %2009 = vmatprep.subr.mxu0 0.0
      %2010 = vmatpush1.msra.mxu0 %v2001
      %2011 = vmatprep.subr.mxu0 0.0
      %2012 = vmatpush1.msra.mxu0 %v2002
      %2013 = vmatprep.subr.mxu0 0.0
      %2014 = vmatpush1.msra.mxu0 %v2003
      %2015 = vmatprep.subr.mxu0 0.0
      %2016 = vmatpush1.msra.mxu0 0.0
      %2017 = vmatprep.subr.mxu0 0.0
      %2018 = vmatpush1.msra.mxu0 0.0
      %2019 = vmatprep.subr.mxu0 0.0
      %2020 = vmatpush1.msra.mxu0 0.0
      %2021 = vmatprep.subr.mxu0 0.0
      %2022 = vmatpush1.msra.mxu0 0.0
      %2023 = vmatprep.subr.mxu0 0.0
      %2024 = vmatpush1.msra.mxu0 0.0
      %2025 = vmatprep.subr.mxu0 0.0
      %2026 = vmatpush1.msra.mxu0 0.0
      %2027 = vmatprep.subr.mxu0 0.0
      %2028 = vmatpush1.msra.mxu0 0.0
      %2029 = vmatprep.subr.mxu0 0.0
      %2030 = vmatpush1.msra.mxu0 0.0
      %2031 = vmatprep.subr.mxu0 0.0
      %2032 = vmatpush1.msra.mxu0 0.0
      %2033 = vmatprep.subr.mxu0 0.0
      %2034 = vmatpush1.msra.mxu0 0.0
      %2035 = vmatprep.subr.mxu0 0.0
      %2036 = vmatpush1.msra.mxu0 0.0
      %2037 = vmatprep.subr.mxu0 0.0
      %2038 = vmatpush1.msra.mxu0 0.0
      %2039 = vmatprep.subr.mxu0 0.0
      %2040 = vmatpush1.msra.mxu0 0.0
      %2041 = vmatprep.subr.mxu0 0.0
      %2042 = vmatpush1.msra.mxu0 0.0
      %2043 = vmatprep.subr.mxu0 0.0
      %2044 = vmatpush1.msra.mxu0 0.0
      %2045 = vmatprep.subr.mxu0 0.0
      %2046 = vmatpush1.msra.mxu0 0.0
      %2047 = vmatprep.subr.mxu0 0.0
      %2048 = vmatpush1.msra.mxu0 0.0
      %2049 = vmatprep.subr.mxu0 0.0
      %2050 = vmatpush1.msra.mxu0 0.0
      %2051 = vmatprep.subr.mxu0 0.0
      %2052 = vmatpush1.msra.mxu0 0.0
      %2053 = vmatprep.subr.mxu0 0.0
      %2054 = vmatpush1.msra.mxu0 0.0
      %2055 = vmatprep.subr.mxu0 0.0
      %2056 = vmatpush1.msra.mxu0 0.0
      %2057 = vmatprep.subr.mxu0 0.0
      %2058 = vmatpush1.msra.mxu0 0.0
      %2059 = vmatprep.subr.mxu0 0.0
      %2060 = vmatpush1.msra.mxu0 0.0
      %2061 = vmatprep.subr.mxu0 0.0
      %2062 = vmatpush1.msra.mxu0 0.0
      %2063 = vmatprep.subr.mxu0 0.0
      %2064 = vmatpush1.msra.mxu0 0.0
      %2065 = vmatprep.subr.mxu0 0.0
      %2066 = vmatpush1.msra.mxu0 0.0
      %2067 = vmatprep.subr.mxu0 0.0
      %2068 = vmatpush1.msra.mxu0 0.0
      %2069 = vmatprep.subr.mxu0 0.0
      %2070 = vmatpush1.msra.mxu0 0.0
      %2071 = vmatprep.mubr.f32.mxu0 0.0
      %2072 = vmatmul.mubr.f32.gmra.mrb[0].mxu0 %v2005
      %v2073 = vpop.f32.mrb[0].mxu0
      %v2074 = vadd.f32 0.0, %v2073
      %v2075 = vpop.f32.mrb[0].mxu0
      %2076 = vdwg.mxu0
      %v2077 = vadd.f32 %v1998, %v2074
      %s2078 = scalar_lea.vmem %s6, 448
      %v2079 = vld [vmem:[%s2078] sm:$0xff]
      %v2080 = vld [vmem:[%s2078 + $0x8] sm:$0xff]
      %v2081 = vld [vmem:[%s2078 + $0x10] sm:$0xff]
      %v2082 = vld [vmem:[%s2078 + $0x18] sm:$0xff]
      %v2084 = vsel %vm983, %v966, 0
      %2086 = vmatprep.subr.mxu0 0.0
      %2087 = vmatpush1.msra.mxu0 %v2079
      %2088 = vmatprep.subr.mxu0 0.0
      %2089 = vmatpush1.msra.mxu0 %v2080
      %2090 = vmatprep.subr.mxu0 0.0
      %2091 = vmatpush1.msra.mxu0 %v2081
      %2092 = vmatprep.subr.mxu0 0.0
      %2093 = vmatpush1.msra.mxu0 %v2082
      %2094 = vmatprep.subr.mxu0 0.0
      %2095 = vmatpush1.msra.mxu0 0.0
      %2096 = vmatprep.subr.mxu0 0.0
      %2097 = vmatpush1.msra.mxu0 0.0
      %2098 = vmatprep.subr.mxu0 0.0
      %2099 = vmatpush1.msra.mxu0 0.0
      %2100 = vmatprep.subr.mxu0 0.0
      %2101 = vmatpush1.msra.mxu0 0.0
      %2102 = vmatprep.subr.mxu0 0.0
      %2103 = vmatpush1.msra.mxu0 0.0
      %2104 = vmatprep.subr.mxu0 0.0
      %2105 = vmatpush1.msra.mxu0 0.0
      %2106 = vmatprep.subr.mxu0 0.0
      %2107 = vmatpush1.msra.mxu0 0.0
      %2108 = vmatprep.subr.mxu0 0.0
      %2109 = vmatpush1.msra.mxu0 0.0
      %2110 = vmatprep.subr.mxu0 0.0
      %2111 = vmatpush1.msra.mxu0 0.0
      %2112 = vmatprep.subr.mxu0 0.0
      %2113 = vmatpush1.msra.mxu0 0.0
      %2114 = vmatprep.subr.mxu0 0.0
      %2115 = vmatpush1.msra.mxu0 0.0
      %2116 = vmatprep.subr.mxu0 0.0
      %2117 = vmatpush1.msra.mxu0 0.0
      %2118 = vmatprep.subr.mxu0 0.0
      %2119 = vmatpush1.msra.mxu0 0.0
      %2120 = vmatprep.subr.mxu0 0.0
      %2121 = vmatpush1.msra.mxu0 0.0
      %2122 = vmatprep.subr.mxu0 0.0
      %2123 = vmatpush1.msra.mxu0 0.0
      %2124 = vmatprep.subr.mxu0 0.0
      %2125 = vmatpush1.msra.mxu0 0.0
      %2126 = vmatprep.subr.mxu0 0.0
      %2127 = vmatpush1.msra.mxu0 0.0
      %2128 = vmatprep.subr.mxu0 0.0
      %2129 = vmatpush1.msra.mxu0 0.0
      %2130 = vmatprep.subr.mxu0 0.0
      %2131 = vmatpush1.msra.mxu0 0.0
      %2132 = vmatprep.subr.mxu0 0.0
      %2133 = vmatpush1.msra.mxu0 0.0
      %2134 = vmatprep.subr.mxu0 0.0
      %2135 = vmatpush1.msra.mxu0 0.0
      %2136 = vmatprep.subr.mxu0 0.0
      %2137 = vmatpush1.msra.mxu0 0.0
      %2138 = vmatprep.subr.mxu0 0.0
      %2139 = vmatpush1.msra.mxu0 0.0
      %2140 = vmatprep.subr.mxu0 0.0
      %2141 = vmatpush1.msra.mxu0 0.0
      %2142 = vmatprep.subr.mxu0 0.0
      %2143 = vmatpush1.msra.mxu0 0.0
      %2144 = vmatprep.subr.mxu0 0.0
      %2145 = vmatpush1.msra.mxu0 0.0
      %2146 = vmatprep.subr.mxu0 0.0
      %2147 = vmatpush1.msra.mxu0 0.0
      %2148 = vmatprep.subr.mxu0 0.0
      %2149 = vmatpush1.msra.mxu0 0.0
      %2150 = vmatprep.mubr.f32.mxu0 0.0
      %2151 = vmatmul.mubr.f32.gmra.mrb[0].mxu0 %v2084
      %v2152 = vpop.f32.mrb[0].mxu0
      %v2153 = vadd.f32 0.0, %v2152
      %v2154 = vpop.f32.mrb[0].mxu0
      %2155 = vdwg.mxu0
      %v2156 = vadd.f32 %v2077, %v2153
      %s2157 = scalar_lea.vmem %s6, 480
      %v2158 = vld [vmem:[%s2157] sm:$0xff]
      %v2159 = vld [vmem:[%s2157 + $0x8] sm:$0xff]
      %v2160 = vld [vmem:[%s2157 + $0x10] sm:$0xff]
      %v2161 = vld [vmem:[%s2157 + $0x18] sm:$0xff]
      %v2163 = vsel %vm983, %v971, 0
      %2165 = vmatprep.subr.mxu0 0.0
      %2166 = vmatpush1.msra.mxu0 %v2158
      %2167 = vmatprep.subr.mxu0 0.0
      %2168 = vmatpush1.msra.mxu0 %v2159
      %2169 = vmatprep.subr.mxu0 0.0
      %2170 = vmatpush1.msra.mxu0 %v2160
      %2171 = vmatprep.subr.mxu0 0.0
      %2172 = vmatpush1.msra.mxu0 %v2161
      %2173 = vmatprep.subr.mxu0 0.0
      %2174 = vmatpush1.msra.mxu0 0.0
      %2175 = vmatprep.subr.mxu0 0.0
      %2176 = vmatpush1.msra.mxu0 0.0
      %2177 = vmatprep.subr.mxu0 0.0
      %2178 = vmatpush1.msra.mxu0 0.0
      %2179 = vmatprep.subr.mxu0 0.0
      %2180 = vmatpush1.msra.mxu0 0.0
      %2181 = vmatprep.subr.mxu0 0.0
      %2182 = vmatpush1.msra.mxu0 0.0
      %2183 = vmatprep.subr.mxu0 0.0
      %2184 = vmatpush1.msra.mxu0 0.0
      %2185 = vmatprep.subr.mxu0 0.0
      %2186 = vmatpush1.msra.mxu0 0.0
      %2187 = vmatprep.subr.mxu0 0.0
      %2188 = vmatpush1.msra.mxu0 0.0
      %2189 = vmatprep.subr.mxu0 0.0
      %2190 = vmatpush1.msra.mxu0 0.0
      %2191 = vmatprep.subr.mxu0 0.0
      %2192 = vmatpush1.msra.mxu0 0.0
      %2193 = vmatprep.subr.mxu0 0.0
      %2194 = vmatpush1.msra.mxu0 0.0
      %2195 = vmatprep.subr.mxu0 0.0
      %2196 = vmatpush1.msra.mxu0 0.0
      %2197 = vmatprep.subr.mxu0 0.0
      %2198 = vmatpush1.msra.mxu0 0.0
      %2199 = vmatprep.subr.mxu0 0.0
      %2200 = vmatpush1.msra.mxu0 0.0
      %2201 = vmatprep.subr.mxu0 0.0
      %2202 = vmatpush1.msra.mxu0 0.0
      %2203 = vmatprep.subr.mxu0 0.0
      %2204 = vmatpush1.msra.mxu0 0.0
      %2205 = vmatprep.subr.mxu0 0.0
      %2206 = vmatpush1.msra.mxu0 0.0
      %2207 = vmatprep.subr.mxu0 0.0
      %2208 = vmatpush1.msra.mxu0 0.0
      %2209 = vmatprep.subr.mxu0 0.0
      %2210 = vmatpush1.msra.mxu0 0.0
      %2211 = vmatprep.subr.mxu0 0.0
      %2212 = vmatpush1.msra.mxu0 0.0
      %2213 = vmatprep.subr.mxu0 0.0
      %2214 = vmatpush1.msra.mxu0 0.0
      %2215 = vmatprep.subr.mxu0 0.0
      %2216 = vmatpush1.msra.mxu0 0.0
      %2217 = vmatprep.subr.mxu0 0.0
      %2218 = vmatpush1.msra.mxu0 0.0
      %2219 = vmatprep.subr.mxu0 0.0
      %2220 = vmatpush1.msra.mxu0 0.0
      %2221 = vmatprep.subr.mxu0 0.0
      %2222 = vmatpush1.msra.mxu0 0.0
      %2223 = vmatprep.subr.mxu0 0.0
      %2224 = vmatpush1.msra.mxu0 0.0
      %2225 = vmatprep.subr.mxu0 0.0
      %2226 = vmatpush1.msra.mxu0 0.0
      %2227 = vmatprep.subr.mxu0 0.0
      %2228 = vmatpush1.msra.mxu0 0.0
      %2229 = vmatprep.mubr.f32.mxu0 0.0
      %2230 = vmatmul.mubr.f32.gmra.mrb[0].mxu0 %v2163
      %v2231 = vpop.f32.mrb[0].mxu0
      %v2232 = vadd.f32 0.0, %v2231
      %v2233 = vpop.f32.mrb[0].mxu0
      %2234 = vdwg.mxu0
      %v2235 = vadd.f32 %v2156, %v2232
      %v2236 = vld [vmem:[%s7] sm:$0x1]
      %v2238 = vlaneseq
      %v2239 = vshrl.u32 %v2238, 7
      %v2240 = vsub.s32 0, %v2239
      %v2241 = vrot.slane %v2236, %v2240
      %v2243 = vadd.f32 %v2235, %v2241
      %v2244 = vmax.f32 %v2243, 0.0
      %v2245 = vld [vmem:[%s12] sm:$0xff]
      %v2246 = vld [vmem:[%s12 + $0x8] sm:$0xff]
      %v2247 = vld [vmem:[%s12 + $0x10] sm:$0xff]
      %v2248 = vld [vmem:[%s12 + $0x18] sm:$0xff]
      %v2249 = vld [vmem:[%s13] sm:$0x1]
      %v2251 = vlaneseq
      %v2252 = vshrl.u32 %v2251, 7
      %v2253 = vsub.s32 0, %v2252
      %v2254 = vrot.slane %v2249, %v2253
      %v2257 = vsel %vm983, %v483, 0
      %2259 = vmatprep.subr.mxu0 0.0
      %2260 = vmatpush1.msra.mxu0 %v2245
      %2261 = vmatprep.subr.mxu0 0.0
      %2262 = vmatpush1.msra.mxu0 %v2246
      %2263 = vmatprep.subr.mxu0 0.0
      %2264 = vmatpush1.msra.mxu0 %v2247
      %2265 = vmatprep.subr.mxu0 0.0
      %2266 = vmatpush1.msra.mxu0 %v2248
      %2267 = vmatprep.subr.mxu0 0.0
      %2268 = vmatpush1.msra.mxu0 0.0
      %2269 = vmatprep.subr.mxu0 0.0
      %2270 = vmatpush1.msra.mxu0 0.0
      %2271 = vmatprep.subr.mxu0 0.0
      %2272 = vmatpush1.msra.mxu0 0.0
      %2273 = vmatprep.subr.mxu0 0.0
      %2274 = vmatpush1.msra.mxu0 0.0
      %2275 = vmatprep.subr.mxu0 0.0
      %2276 = vmatpush1.msra.mxu0 0.0
      %2277 = vmatprep.subr.mxu0 0.0
      %2278 = vmatpush1.msra.mxu0 0.0
      %2279 = vmatprep.subr.mxu0 0.0
      %2280 = vmatpush1.msra.mxu0 0.0
      %2281 = vmatprep.subr.mxu0 0.0
      %2282 = vmatpush1.msra.mxu0 0.0
      %2283 = vmatprep.subr.mxu0 0.0
      %2284 = vmatpush1.msra.mxu0 0.0
      %2285 = vmatprep.subr.mxu0 0.0
      %2286 = vmatpush1.msra.mxu0 0.0
      %2287 = vmatprep.subr.mxu0 0.0
      %2288 = vmatpush1.msra.mxu0 0.0
      %2289 = vmatprep.subr.mxu0 0.0
      %2290 = vmatpush1.msra.mxu0 0.0
      %2291 = vmatprep.subr.mxu0 0.0
      %2292 = vmatpush1.msra.mxu0 0.0
      %2293 = vmatprep.subr.mxu0 0.0
      %2294 = vmatpush1.msra.mxu0 0.0
      %2295 = vmatprep.subr.mxu0 0.0
      %2296 = vmatpush1.msra.mxu0 0.0
      %2297 = vmatprep.subr.mxu0 0.0
      %2298 = vmatpush1.msra.mxu0 0.0
      %2299 = vmatprep.subr.mxu0 0.0
      %2300 = vmatpush1.msra.mxu0 0.0
      %2301 = vmatprep.subr.mxu0 0.0
      %2302 = vmatpush1.msra.mxu0 0.0
      %2303 = vmatprep.subr.mxu0 0.0
      %2304 = vmatpush1.msra.mxu0 0.0
      %2305 = vmatprep.subr.mxu0 0.0
      %2306 = vmatpush1.msra.mxu0 0.0
      %2307 = vmatprep.subr.mxu0 0.0
      %2308 = vmatpush1.msra.mxu0 0.0
      %2309 = vmatprep.subr.mxu0 0.0
      %2310 = vmatpush1.msra.mxu0 0.0
      %2311 = vmatprep.subr.mxu0 0.0
      %2312 = vmatpush1.msra.mxu0 0.0
      %2313 = vmatprep.subr.mxu0 0.0
      %2314 = vmatpush1.msra.mxu0 0.0
      %2315 = vmatprep.subr.mxu0 0.0
      %2316 = vmatpush1.msra.mxu0 0.0
      %2317 = vmatprep.subr.mxu0 0.0
      %2318 = vmatpush1.msra.mxu0 0.0
      %2319 = vmatprep.subr.mxu0 0.0
      %2320 = vmatpush1.msra.mxu0 0.0
      %2321 = vmatprep.subr.mxu0 0.0
      %2322 = vmatpush1.msra.mxu0 0.0
      %2323 = vmatprep.mubr.f32.mxu0 0.0
      %2324 = vmatmul.mubr.f32.gmra.mrb[0].mxu0 %v2257
      %v2325 = vpop.f32.mrb[0].mxu0
      %v2326 = vadd.f32 %v2254, %v2325
      %v2327 = vpop.f32.mrb[0].mxu0
      %2328 = vdwg.mxu0
      %p2329 = scmp.ge.s32.totalorder %s25, 4
      // Predicated region
      $region85: #{_social_lstm_forward.1} parent=75 // pred_check
        %p2330 = pneg %p2329
      $region86: #{_social_lstm_forward.1} parent=75 // pred_check_branch
        %2332 = sbr.rel (%p2330) target = $region88
      $region87: #{_social_lstm_forward.1} parent=75 // pred_region
        %v2333 = vld [vmem:[#allocation4] sm:$0xff]
        %v2334 = vadd.f32 %v2333, %v2326
        %vm2335 = vcmask 15360
        %2336 = vst.msk [vmem:[#allocation4] sm:$0xff] %vm2335, %v2334
        %s2337 = ssub.s32 %s25, 4
        %s2338 = smul.u32 %s2337, 8
        %s2339 = scalar_lea.vmem %s14, %s2338
        %2340 = vst.msk [vmem:[%s2339] sm:$0xff] %vm2335, %v2326
      $region88: #{_social_lstm_forward.1} parent=75 // pred_fallthru
        _
      %s2341 = scalar_select %p476, 1, 0
      %s2342 = scvt.s32.f32 %s2341
      %v2343 = vld [vmem:[%s462] sm:$0xff]
      %v2344 = vstv %s2342
      %v2345 = vmul.f32 %v2344, %v2343
      %s2346 = ssub.f32 1.0, %s2342
      %v2347 = vstv %s2346
      %v2348 = vmul.f32 %v2347, %v2326
      %v2349 = vadd.f32 %v2345, %v2348
      %v2350 = vld [vmem:[%s4] sm:$0x3]
      %v2351 = vld [vmem:[%s5] sm:$0x1]
      %v2353 = vlaneseq
      %v2354 = vshrl.u32 %v2353, 7
      %v2355 = vsub.s32 0, %v2354
      %v2356 = vrot.slane %v2351, %v2355
      %vm2358 = vcmask 15360
      %v2360 = vsel %vm2358, %v2349, 0
      %vm2362 = vcmask 1041408
      %v2364 = vsel %vm2362, %v2350, 0
      %2366 = vmatprep.subr.mxu0 0.0
      %2367 = vmatpush1.msra.mxu0 %v2364
      %2368 = vmatprep.subr.mxu0 0.0
      %2369 = vmatpush1.msra.mxu0 0.0
      %2370 = vmatprep.subr.mxu0 0.0
      %2371 = vmatpush1.msra.mxu0 0.0
      %2372 = vmatprep.subr.mxu0 0.0
      %2373 = vmatpush1.msra.mxu0 0.0
      %2374 = vmatprep.subr.mxu0 0.0
      %2375 = vmatpush1.msra.mxu0 0.0
      %2376 = vmatprep.subr.mxu0 0.0
      %2377 = vmatpush1.msra.mxu0 0.0
      %2378 = vmatprep.subr.mxu0 0.0
      %2379 = vmatpush1.msra.mxu0 0.0
      %2380 = vmatprep.subr.mxu0 0.0
      %2381 = vmatpush1.msra.mxu0 0.0
      %2382 = vmatprep.subr.mxu0 0.0
      %2383 = vmatpush1.msra.mxu0 0.0
      %2384 = vmatprep.subr.mxu0 0.0
      %2385 = vmatpush1.msra.mxu0 0.0
      %2386 = vmatprep.subr.mxu0 0.0
      %2387 = vmatpush1.msra.mxu0 0.0
      %2388 = vmatprep.subr.mxu0 0.0
      %2389 = vmatpush1.msra.mxu0 0.0
      %2390 = vmatprep.subr.mxu0 0.0
      %2391 = vmatpush1.msra.mxu0 0.0
      %2392 = vmatprep.subr.mxu0 0.0
      %2393 = vmatpush1.msra.mxu0 0.0
      %2394 = vmatprep.subr.mxu0 0.0
      %2395 = vmatpush1.msra.mxu0 0.0
      %2396 = vmatprep.subr.mxu0 0.0
      %2397 = vmatpush1.msra.mxu0 0.0
      %2398 = vmatprep.subr.mxu0 0.0
      %2399 = vmatpush1.msra.mxu0 0.0
      %2400 = vmatprep.subr.mxu0 0.0
      %2401 = vmatpush1.msra.mxu0 0.0
      %2402 = vmatprep.subr.mxu0 0.0
      %2403 = vmatpush1.msra.mxu0 0.0
      %2404 = vmatprep.subr.mxu0 0.0
      %2405 = vmatpush1.msra.mxu0 0.0
      %2406 = vmatprep.subr.mxu0 0.0
      %2407 = vmatpush1.msra.mxu0 0.0
      %2408 = vmatprep.subr.mxu0 0.0
      %2409 = vmatpush1.msra.mxu0 0.0
      %2410 = vmatprep.subr.mxu0 0.0
      %2411 = vmatpush1.msra.mxu0 0.0
      %2412 = vmatprep.subr.mxu0 0.0
      %2413 = vmatpush1.msra.mxu0 0.0
      %2414 = vmatprep.subr.mxu0 0.0
      %2415 = vmatpush1.msra.mxu0 0.0
      %2416 = vmatprep.subr.mxu0 0.0
      %2417 = vmatpush1.msra.mxu0 0.0
      %2418 = vmatprep.subr.mxu0 0.0
      %2419 = vmatpush1.msra.mxu0 0.0
      %2420 = vmatprep.subr.mxu0 0.0
      %2421 = vmatpush1.msra.mxu0 0.0
      %2422 = vmatprep.subr.mxu0 0.0
      %2423 = vmatpush1.msra.mxu0 0.0
      %2424 = vmatprep.subr.mxu0 0.0
      %2425 = vmatpush1.msra.mxu0 0.0
      %2426 = vmatprep.subr.mxu0 0.0
      %2427 = vmatpush1.msra.mxu0 0.0
      %2428 = vmatprep.subr.mxu0 0.0
      %2429 = vmatpush1.msra.mxu0 0.0
      %2430 = vmatprep.mubr.f32.mxu0 0.0
      %2431 = vmatmul.mubr.f32.gmra.mrb[0].mxu0 %v2360
      %v2432 = vpop.f32.mrb[0].mxu0
      %v2433 = vadd.f32 %v2356, %v2432
      %v2434 = vpop.f32.mrb[0].mxu0
      %2435 = vdwg.mxu0
      %v2436 = vld [vmem:[%s8] sm:$0xff]
      %v2437 = vld [vmem:[%s8 + $0x8] sm:$0xff]
      %v2438 = vld [vmem:[%s9] sm:$0xff]
      %v2439 = vld [vmem:[%s9 + $0x8] sm:$0xff]
      %v2440 = vld [vmem:[%s9 + $0x10] sm:$0xff]
      %v2441 = vld [vmem:[%s9 + $0x18] sm:$0xff]
      %2442 = vmatprep.subr.mxu0 0.0
      %2443 = vmatpush1.msra.mxu0 %v2438
      %2444 = vmatprep.subr.mxu0 0.0
      %2445 = vmatpush1.msra.mxu0 %v2439
      %2446 = vmatprep.subr.mxu0 0.0
      %2447 = vmatpush1.msra.mxu0 %v2440
      %2448 = vmatprep.subr.mxu0 0.0
      %2449 = vmatpush1.msra.mxu0 %v2441
      %2450 = vmatprep.subr.mxu0 0.0
      %2451 = vmatpush1.msra.mxu0 0.0
      %2452 = vmatprep.subr.mxu0 0.0
      %2453 = vmatpush1.msra.mxu0 0.0
      %2454 = vmatprep.subr.mxu0 0.0
      %2455 = vmatpush1.msra.mxu0 0.0
      %2456 = vmatprep.subr.mxu0 0.0
      %2457 = vmatpush1.msra.mxu0 0.0
      %2458 = vmatprep.subr.mxu0 0.0
      %2459 = vmatpush1.msra.mxu0 0.0
      %2460 = vmatprep.subr.mxu0 0.0
      %2461 = vmatpush1.msra.mxu0 0.0
      %2462 = vmatprep.subr.mxu0 0.0
      %2463 = vmatpush1.msra.mxu0 0.0
      %2464 = vmatprep.subr.mxu0 0.0
      %2465 = vmatpush1.msra.mxu0 0.0
      %2466 = vmatprep.subr.mxu0 0.0
      %2467 = vmatpush1.msra.mxu0 0.0
      %2468 = vmatprep.subr.mxu0 0.0
      %2469 = vmatpush1.msra.mxu0 0.0
      %2470 = vmatprep.subr.mxu0 0.0
      %2471 = vmatpush1.msra.mxu0 0.0
      %2472 = vmatprep.subr.mxu0 0.0
      %2473 = vmatpush1.msra.mxu0 0.0
      %2474 = vmatprep.subr.mxu0 0.0
      %2475 = vmatpush1.msra.mxu0 0.0
      %2476 = vmatprep.subr.mxu0 0.0
      %2477 = vmatpush1.msra.mxu0 0.0
      %2478 = vmatprep.subr.mxu0 0.0
      %2479 = vmatpush1.msra.mxu0 0.0
      %2480 = vmatprep.subr.mxu0 0.0
      %2481 = vmatpush1.msra.mxu0 0.0
      %2482 = vmatprep.subr.mxu0 0.0
      %2483 = vmatpush1.msra.mxu0 0.0
      %2484 = vmatprep.subr.mxu0 0.0
      %2485 = vmatpush1.msra.mxu0 0.0
      %2486 = vmatprep.subr.mxu0 0.0
      %2487 = vmatpush1.msra.mxu0 0.0
      %2488 = vmatprep.subr.mxu0 0.0
      %2489 = vmatpush1.msra.mxu0 0.0
      %2490 = vmatprep.subr.mxu0 0.0
      %2491 = vmatpush1.msra.mxu0 0.0
      %2492 = vmatprep.subr.mxu0 0.0
      %2493 = vmatpush1.msra.mxu0 0.0
      %2494 = vmatprep.subr.mxu0 0.0
      %2495 = vmatpush1.msra.mxu0 0.0
      %2496 = vmatprep.subr.mxu0 0.0
      %2497 = vmatpush1.msra.mxu0 0.0
      %2498 = vmatprep.subr.mxu0 0.0
      %2499 = vmatpush1.msra.mxu0 0.0
      %2500 = vmatprep.subr.mxu0 0.0
      %2501 = vmatpush1.msra.mxu0 0.0
      %2502 = vmatprep.subr.mxu0 0.0
      %2503 = vmatpush1.msra.mxu0 0.0
      %2504 = vmatprep.subr.mxu0 0.0
      %2505 = vmatpush1.msra.mxu0 0.0
      %2506 = vmatprep.mubr.f32.mxu0 0.0
      %2507 = vmatmul.mubr.f32.gmra.mrb[0].mxu0 %v2257
      %v2508 = vpop.f32.mrb[0].mxu0
      %v2509 = vadd.f32 0.0, %v2508
      %v2510 = vpop.f32.mrb[0].mxu0
      %2511 = vdwg.mxu0
      %vm2512 = vcmask 130048
      %v2514 = vsel %vm2512, %v2433, 0
      %2516 = vmatprep.subr.mxu0 0.0
      %2517 = vmatpush1.msra.mxu0 %v2436
      %2518 = vmatprep.subr.mxu0 0.0
      %2519 = vmatpush1.msra.mxu0 %v2437
      %2520 = vmatprep.subr.mxu0 0.0
      %2521 = vmatpush1.msra.mxu0 0.0
      %2522 = vmatprep.subr.mxu0 0.0
      %2523 = vmatpush1.msra.mxu0 0.0
      %2524 = vmatprep.subr.mxu0 0.0
      %2525 = vmatpush1.msra.mxu0 0.0
      %2526 = vmatprep.subr.mxu0 0.0
      %2527 = vmatpush1.msra.mxu0 0.0
      %2528 = vmatprep.subr.mxu0 0.0
      %2529 = vmatpush1.msra.mxu0 0.0
      %2530 = vmatprep.subr.mxu0 0.0
      %2531 = vmatpush1.msra.mxu0 0.0
      %2532 = vmatprep.subr.mxu0 0.0
      %2533 = vmatpush1.msra.mxu0 0.0
      %2534 = vmatprep.subr.mxu0 0.0
      %2535 = vmatpush1.msra.mxu0 0.0
      %2536 = vmatprep.subr.mxu0 0.0
      %2537 = vmatpush1.msra.mxu0 0.0
      %2538 = vmatprep.subr.mxu0 0.0
      %2539 = vmatpush1.msra.mxu0 0.0
      %2540 = vmatprep.subr.mxu0 0.0
      %2541 = vmatpush1.msra.mxu0 0.0
      %2542 = vmatprep.subr.mxu0 0.0
      %2543 = vmatpush1.msra.mxu0 0.0
      %2544 = vmatprep.subr.mxu0 0.0
      %2545 = vmatpush1.msra.mxu0 0.0
      %2546 = vmatprep.subr.mxu0 0.0
      %2547 = vmatpush1.msra.mxu0 0.0
      %2548 = vmatprep.subr.mxu0 0.0
      %2549 = vmatpush1.msra.mxu0 0.0
      %2550 = vmatprep.subr.mxu0 0.0
      %2551 = vmatpush1.msra.mxu0 0.0
      %2552 = vmatprep.subr.mxu0 0.0
      %2553 = vmatpush1.msra.mxu0 0.0
      %2554 = vmatprep.subr.mxu0 0.0
      %2555 = vmatpush1.msra.mxu0 0.0
      %2556 = vmatprep.subr.mxu0 0.0
      %2557 = vmatpush1.msra.mxu0 0.0
      %2558 = vmatprep.subr.mxu0 0.0
      %2559 = vmatpush1.msra.mxu0 0.0
      %2560 = vmatprep.subr.mxu0 0.0
      %2561 = vmatpush1.msra.mxu0 0.0
      %2562 = vmatprep.subr.mxu0 0.0
      %2563 = vmatpush1.msra.mxu0 0.0
      %2564 = vmatprep.subr.mxu0 0.0
      %2565 = vmatpush1.msra.mxu0 0.0
      %2566 = vmatprep.subr.mxu0 0.0
      %2567 = vmatpush1.msra.mxu0 0.0
      %2568 = vmatprep.subr.mxu0 0.0
      %2569 = vmatpush1.msra.mxu0 0.0
      %2570 = vmatprep.subr.mxu0 0.0
      %2571 = vmatpush1.msra.mxu0 0.0
      %2572 = vmatprep.subr.mxu0 0.0
      %2573 = vmatpush1.msra.mxu0 0.0
      %2574 = vmatprep.subr.mxu0 0.0
      %2575 = vmatpush1.msra.mxu0 0.0
      %2576 = vmatprep.subr.mxu0 0.0
      %2577 = vmatpush1.msra.mxu0 0.0
      %2578 = vmatprep.subr.mxu0 0.0
      %2579 = vmatpush1.msra.mxu0 0.0
      %2580 = vmatprep.mubr.f32.mxu0 0.0
      %2581 = vmatmul.mubr.f32.gmra.mrb[0].mxu0 %v2514
      %v2582 = vpop.f32.mrb[0].mxu0
      %v2583 = vadd.f32 %v2509, %v2582
      %v2584 = vpop.f32.mrb[0].mxu0
      %2585 = vdwg.mxu0
      %v2586 = vld [vmem:[%s10] sm:$0xff]
      %v2587 = vld [vmem:[%s10 + $0x8] sm:$0xff]
      %v2589 = vsel %vm2512, %v2244, 0
      %2591 = vmatprep.subr.mxu0 0.0
      %2592 = vmatpush1.msra.mxu0 %v2586
      %2593 = vmatprep.subr.mxu0 0.0
      %2594 = vmatpush1.msra.mxu0 %v2587
      %2595 = vmatprep.subr.mxu0 0.0
      %2596 = vmatpush1.msra.mxu0 0.0
      %2597 = vmatprep.subr.mxu0 0.0
      %2598 = vmatpush1.msra.mxu0 0.0
      %2599 = vmatprep.subr.mxu0 0.0
      %2600 = vmatpush1.msra.mxu0 0.0
      %2601 = vmatprep.subr.mxu0 0.0
      %2602 = vmatpush1.msra.mxu0 0.0
      %2603 = vmatprep.subr.mxu0 0.0
      %2604 = vmatpush1.msra.mxu0 0.0
      %2605 = vmatprep.subr.mxu0 0.0
      %2606 = vmatpush1.msra.mxu0 0.0
      %2607 = vmatprep.subr.mxu0 0.0
      %2608 = vmatpush1.msra.mxu0 0.0
      %2609 = vmatprep.subr.mxu0 0.0
      %2610 = vmatpush1.msra.mxu0 0.0
      %2611 = vmatprep.subr.mxu0 0.0
      %2612 = vmatpush1.msra.mxu0 0.0
      %2613 = vmatprep.subr.mxu0 0.0
      %2614 = vmatpush1.msra.mxu0 0.0
      %2615 = vmatprep.subr.mxu0 0.0
      %2616 = vmatpush1.msra.mxu0 0.0
      %2617 = vmatprep.subr.mxu0 0.0
      %2618 = vmatpush1.msra.mxu0 0.0
      %2619 = vmatprep.subr.mxu0 0.0
      %2620 = vmatpush1.msra.mxu0 0.0
      %2621 = vmatprep.subr.mxu0 0.0
      %2622 = vmatpush1.msra.mxu0 0.0
      %2623 = vmatprep.subr.mxu0 0.0
      %2624 = vmatpush1.msra.mxu0 0.0
      %2625 = vmatprep.subr.mxu0 0.0
      %2626 = vmatpush1.msra.mxu0 0.0
      %2627 = vmatprep.subr.mxu0 0.0
      %2628 = vmatpush1.msra.mxu0 0.0
      %2629 = vmatprep.subr.mxu0 0.0
      %2630 = vmatpush1.msra.mxu0 0.0
      %2631 = vmatprep.subr.mxu0 0.0
      %2632 = vmatpush1.msra.mxu0 0.0
      %2633 = vmatprep.subr.mxu0 0.0
      %2634 = vmatpush1.msra.mxu0 0.0
      %2635 = vmatprep.subr.mxu0 0.0
      %2636 = vmatpush1.msra.mxu0 0.0
      %2637 = vmatprep.subr.mxu0 0.0
      %2638 = vmatpush1.msra.mxu0 0.0
      %2639 = vmatprep.subr.mxu0 0.0
      %2640 = vmatpush1.msra.mxu0 0.0
      %2641 = vmatprep.subr.mxu0 0.0
      %2642 = vmatpush1.msra.mxu0 0.0
      %2643 = vmatprep.subr.mxu0 0.0
      %2644 = vmatpush1.msra.mxu0 0.0
      %2645 = vmatprep.subr.mxu0 0.0
      %2646 = vmatpush1.msra.mxu0 0.0
      %2647 = vmatprep.subr.mxu0 0.0
      %2648 = vmatpush1.msra.mxu0 0.0
      %2649 = vmatprep.subr.mxu0 0.0
      %2650 = vmatpush1.msra.mxu0 0.0
      %2651 = vmatprep.subr.mxu0 0.0
      %2652 = vmatpush1.msra.mxu0 0.0
      %2653 = vmatprep.subr.mxu0 0.0
      %2654 = vmatpush1.msra.mxu0 0.0
      %2655 = vmatprep.mubr.f32.mxu0 0.0
      %2656 = vmatmul.mubr.f32.gmra.mrb[0].mxu0 %v2589
      %v2657 = vpop.f32.mrb[0].mxu0
      %v2658 = vadd.f32 0.0, %v2657
      %v2659 = vpop.f32.mrb[0].mxu0
      %2660 = vdwg.mxu0
      %v2661 = vadd.f32 %v2583, %v2658
      %v2662 = vld [vmem:[%s11] sm:$0x1]
      %v2664 = vlaneseq
      %v2665 = vshrl.u32 %v2664, 7
      %v2666 = vsub.s32 0, %v2665
      %v2667 = vrot.slane %v2662, %v2666
      %v2669 = vadd.f32 %v2661, %v2667
      %v2670 = vxor.u32 %v2669, 2147483648
      %v2671 = vmul.f32 %v2670, 1.442695
      %v2672 = vpow.pop %v2671
      %v2673 = vadd.f32 %v2672, 1.0
      %v2674 = vrcp.pop %v2673
      %v2675 = vmul.f32 1.0, %v2674
      %v2676 = vtanh.pop %v2669
      %v2677 = vld [vmem:[#allocation3] sm:$0xff]
      %2679 = vrot.lane.b32.xlu0 %v2677, 32
      %v2680 = vpop.permute.xlu0 %2679
      %v2682 = vmul.f32 %v2675, %v2680
      %2684 = vrot.lane.b32.xlu0 %v2676, 32
      %v2685 = vpop.permute.xlu0 %2684
      %v2687 = vmul.f32 %v2675, %v2685
      %2689 = vrot.lane.b32.xlu0 %v2687, 32
      %v2690 = vpop.permute.xlu0 %2689
      %v2692 = vadd.f32 %v2682, %v2690
      %v2693 = vtanh.pop %v2692
      %2695 = vrot.lane.b32.xlu0 %v2693, 32
      %v2696 = vpop.permute.xlu0 %2695
      %v2698 = vmul.f32 %v2675, %v2696
      %2700 = vrot.lane.b32.xlu0 %v2698, 64
      %v2701 = vpop.permute.xlu0 %2700
      %2703 = vst.msk [vmem:[#allocation2] sm:$0xff] %vm983, %v2701
      %2705 = vrot.lane.b32.xlu0 %v2692, 96
      %v2706 = vpop.permute.xlu0 %2705
      %2708 = vst.msk [vmem:[#allocation3] sm:$0xff] %vm983, %v2706
      // Predicated region
      $region89: #{_social_lstm_forward.1} parent=75 // pred_check
        %p2709 = pneg %p342
      $region90: #{_social_lstm_forward.1} parent=75 // pred_check_branch
        %2711 = sbr.rel (%p2709) target = $region92
      $region91: #{_social_lstm_forward.1} parent=75 // pred_region
        _
      $region92: #{_social_lstm_forward.1} parent=75 // pred_fallthru
        _
      // Predicated region
      $region93: #{_social_lstm_forward.1} parent=75 // pred_check
        %p2712 = pneg %p342
      $region94: #{_social_lstm_forward.1} parent=75 // pred_check_branch
        %2714 = sbr.rel (%p2712) target = $region96
      $region95: #{_social_lstm_forward.1} parent=75 // pred_region
        _
      $region96: #{_social_lstm_forward.1} parent=75 // pred_fallthru
        _
    $region76: #{_social_lstm_forward.1} parent=5 // pred_fallthru
      _
    %p2715 = scmp.le.s32.totalorder 2, %s20
    // Predicated region
    $region97: #{_social_lstm_forward.1} parent=5 // pred_check
      %p2716 = pneg %p2715
    $region98: #{_social_lstm_forward.1} parent=5 // pred_check_branch
      %2718 = sbr.rel (%p2716) target = $region100
    $region99: #{_social_lstm_forward.1} parent=5 // pred_region
      %s2719 = ssub.s32 %s20, 2
    $region100: #{_social_lstm_forward.1} parent=5 // pred_fallthru
      _
  $region6: #{_social_lstm_forward.1} parent=0 // loop_footer
    %s24 = sadd.s32 1, %s20
  $region7: #{_social_lstm_forward.1} parent=0 // loop_footer_branch
    %19 = sbr.rel target = $region3
  $region8: #{_social_lstm_forward.1} parent=0 // loop_exit
    _

</llo_original>
